<compile_context>
chip_gen: v6e
topology: v6e:2x2x1
jax: 0.10.0
libtpu: 0.0.40
codegen_flags: <defaults>
</compile_context>

<pallas_src>
import functools

import jax
import jax.numpy as jnp
from jax.experimental import pallas as pl
from jax.experimental.pallas import tpu as pltpu


def _conv_bn_relu_kernel(w_ref, x_ref, gamma_ref, beta_ref, o_ref, *, p, eps, mxu_bf16):
    # w_ref:     (BC, Cin)   slice of the (Cout, Cin) weight
    # x_ref:     (Cin, P)    full activation block
    # gamma_ref: (BC, 1)
    # beta_ref:  (BC, 1)
    # o_ref:     (BC, P)
    w = w_ref[...]
    x = x_ref[...]
    if mxu_bf16:
        # Optional native-MXU fast path (halves weight bytes if weights are shipped bf16);
        # left off by default to keep exact f32 conv semantics.
        w = w.astype(jnp.bfloat16)
        x = x.astype(jnp.bfloat16)

    # 1x1 convolution == matmul on the MXU, f32 accumulate: (BC, Cin) @ (Cin, P) -> (BC, P).
    y = jnp.dot(w, x, preferred_element_type=jnp.float32)

    # One-pass batch statistics per output channel (reduce over the P lane axis).
    inv_p = 1.0 / p
    s1 = jnp.sum(y, axis=1, keepdims=True)       # (BC, 1)
    s2 = jnp.sum(y * y, axis=1, keepdims=True)   # (BC, 1)
    mean = s1 * inv_p
    var = jnp.maximum(s2 * inv_p - mean * mean, 0.0)

    # Fold BN + affine into a single per-channel scale/bias, then ReLU. Rsqrt goes to the EUP.
    scale = gamma_ref[...] * jax.lax.rsqrt(var + eps)    # (BC, 1)
    bias = beta_ref[...] - mean * scale                  # (BC, 1)
    o_ref[...] = jnp.maximum(y * scale + bias, 0.0).astype(o_ref.dtype)


def conv2d_bn_relu(x_nchw, w_oihw, gamma, beta, *, eps=1e-5, block_cout=640, mxu_bf16=False):
    """x_nchw: (N, Cin, H, W) f32; w_oihw: (Cout, Cin, 1, 1) f32; gamma/beta: (Cout,) f32."""
    n, cin, h, wd = x_nchw.shape
    cout = w_oihw.shape[0]
    p = n * h * wd

    # ---- Layout plumbing: pure reshapes (no HBM transposes) for the module's N=1 case. ----
    if n == 1:
        x_cp = x_nchw.reshape(cin, p)                                  # (Cin, P), free
    else:
        x_cp = jnp.transpose(x_nchw, (1, 0, 2, 3)).reshape(cin, p)     # general N fallback
    w_oc = w_oihw.reshape(cout, cin)                                   # (Cout, Cin), free
    gamma2 = gamma.reshape(cout, 1)
    beta2 = beta.reshape(cout, 1)

    # Grid over Cout only; stats over P stay inside each block, so the split is exact.
    if cout % block_cout != 0 or block_cout % 8 != 0:
        block_cout = cout
    grid = (cout // block_cout,)

    kernel = functools.partial(_conv_bn_relu_kernel, p=p, eps=eps, mxu_bf16=mxu_bf16)

    out_cp = pl.pallas_call(
        kernel,
        out_shape=jax.ShapeDtypeStruct((cout, p), jnp.float32),
        grid=grid,
        in_specs=[
            pl.BlockSpec((block_cout, cin), lambda i: (i, 0)),   # weight slice
            pl.BlockSpec((cin, p), lambda i: (0, 0)),            # full activations, replicated
            pl.BlockSpec((block_cout, 1), lambda i: (i, 0)),     # gamma slice
            pl.BlockSpec((block_cout, 1), lambda i: (i, 0)),     # beta slice
        ],
        out_specs=pl.BlockSpec((block_cout, p), lambda i: (i, 0)),
        compiler_params=pltpu.CompilerParams(
            dimension_semantics=("parallel",),   # 2 TCs on v7x; sequential+pipelined elsewhere
        ),
    )(w_oc, x_cp, gamma2, beta2)

    # (Cout, P) -> (N, Cout, H, W): pure reshape for N=1.
    if n == 1:
        return out_cp.reshape(1, cout, h, wd)
    return jnp.transpose(out_cp.reshape(cout, n, h, wd), (1, 0, 2, 3))


def _reference(x_nchw, w_oihw, gamma, beta, eps=1e-5):
    """Pure-JAX reference: 1x1 conv + train-mode BN (batch stats) + ReLU."""
    n, cin, h, wd = x_nchw.shape
    cout = w_oihw.shape[0]
    w2 = w_oihw.reshape(cout, cin)
    xr = x_nchw.reshape(n, cin, h * wd)
    y = jnp.einsum("oc,ncp->nop", w2, xr, precision=jax.lax.Precision.HIGHEST)
    mean = jnp.mean(y, axis=(0, 2), keepdims=True)
    var = jnp.mean(jnp.square(y - mean), axis=(0, 2), keepdims=True)
    yhat = (y - mean) * jax.lax.rsqrt(var + eps)
    out = yhat * gamma.reshape(1, cout, 1) + beta.reshape(1, cout, 1)
    return jnp.maximum(out, 0.0).reshape(n, cout, h, wd)


if __name__ == "__main__":
    key = jax.random.PRNGKey(0)
    k_x, k_w = jax.random.split(key)

    # Shapes fixed by the PyTorch module: Conv2d(320, 1280, 1x1), input (1, 320, 7, 7).
    N, CIN, H, W = 1, 320, 7, 7
    COUT = 1280

    x = jax.random.normal(k_x, (N, CIN, H, W), dtype=jnp.float32)
    w = jax.random.normal(k_w, (COUT, CIN, 1, 1), dtype=jnp.float32) * 0.05
    gamma = jnp.ones((COUT,), dtype=jnp.float32)   # BatchNorm2d default affine init
    beta = jnp.zeros((COUT,), dtype=jnp.float32)

    out = conv2d_bn_relu(x, w, gamma, beta)
    jax.block_until_ready(out)
    assert out.shape == (N, COUT, H, W), out.shape

    # Correctness check (also validates the padded-lane BN stats at P=49).
    ref = _reference(x, w, gamma, beta)
    max_err = float(jnp.max(jnp.abs(out - ref)))
    assert jnp.allclose(out, ref, rtol=1e-2, atol=1e-2), max_err

    print("KERNEL_OK")
</pallas_src>

<mosaic_0001>
module attributes {stable_mosaic.version = 11 : i64} {
  func.func @_conv_bn_relu_kernel(%arg0: i32, %arg1: memref<640x320xf32, #tpu.memory_space<vmem>>, %arg2: memref<320x49xf32, #tpu.memory_space<vmem>>, %arg3: memref<640x1xf32, #tpu.memory_space<vmem>>, %arg4: memref<640x1xf32, #tpu.memory_space<vmem>>, %arg5: memref<640x49xf32, #tpu.memory_space<vmem>>) attributes {dimension_semantics = [#tpu.dimension_semantics<parallel>], iteration_bounds = array<i64: 2>, scalar_prefetch = 0 : i64, scratch_operands = 0 : i64, tpu.core_type = #tpu.core_type<tc>, window_params = [{transform_indices = @transform_0, window_bounds = array<i64: 640, 320>}, {pipeline_mode = #tpu.pipeline_mode<synchronous>, transform_indices = @transform_1, window_bounds = array<i64: 320, 49>}, {transform_indices = @transform_2, window_bounds = array<i64: 640, 1>}, {transform_indices = @transform_3, window_bounds = array<i64: 640, 1>}, {transform_indices = @transform_4, window_bounds = array<i64: 640, 49>}]} {
    %c0 = arith.constant 0 : index
    %c0_0 = arith.constant 0 : index
    %0 = vector.load %arg1[%c0, %c0_0] : memref<640x320xf32, #tpu.memory_space<vmem>>, vector<640x320xf32>
    %c0_1 = arith.constant 0 : index
    %c0_2 = arith.constant 0 : index
    %1 = vector.load %arg2[%c0_1, %c0_2] : memref<320x49xf32, #tpu.memory_space<vmem>>, vector<320x49xf32>
    %cst = arith.constant dense<0.000000e+00> : vector<640x49xf32>
    %2 = tpu.matmul %0, %1, %cst {dimension_numbers = #tpu.dot_dimension_numbers<[1], [0], [0], [1], [0, 0, 1, 1], [], []>} : vector<640x320xf32>, vector<320x49xf32>, vector<640x49xf32> -> vector<640x49xf32>
    %cst_3 = arith.constant dense<0.000000e+00> : vector<640xf32>
    %3 = vector.multi_reduction <add>, %2, %cst_3 [1] : vector<640x49xf32> to vector<640xf32>
    %4 = vector.shape_cast %3 : vector<640xf32> to vector<640x1xf32>
    %5 = arith.mulf %2, %2 : vector<640x49xf32>
    %cst_4 = arith.constant dense<0.000000e+00> : vector<640xf32>
    %6 = vector.multi_reduction <add>, %5, %cst_4 [1] : vector<640x49xf32> to vector<640xf32>
    %7 = vector.shape_cast %6 : vector<640xf32> to vector<640x1xf32>
    %cst_5 = arith.constant 0.0204081628 : f32
    %8 = vector.broadcast %cst_5 : f32 to vector<640x1xf32>
    %9 = arith.mulf %4, %8 : vector<640x1xf32>
    %cst_6 = arith.constant 0.0204081628 : f32
    %10 = vector.broadcast %cst_6 : f32 to vector<640x1xf32>
    %11 = arith.mulf %7, %10 : vector<640x1xf32>
    %12 = arith.mulf %9, %9 : vector<640x1xf32>
    %13 = arith.subf %11, %12 : vector<640x1xf32>
    %cst_7 = arith.constant 0.000000e+00 : f32
    %14 = vector.broadcast %cst_7 : f32 to vector<640x1xf32>
    %15 = arith.maximumf %13, %14 : vector<640x1xf32>
    %c0_8 = arith.constant 0 : index
    %c0_9 = arith.constant 0 : index
    %16 = vector.load %arg3[%c0_8, %c0_9] : memref<640x1xf32, #tpu.memory_space<vmem>>, vector<640x1xf32>
    %cst_10 = arith.constant 9.99999974E-6 : f32
    %17 = vector.broadcast %cst_10 : f32 to vector<640x1xf32>
    %18 = arith.addf %15, %17 : vector<640x1xf32>
    %19 = math.rsqrt %18 : vector<640x1xf32>
    %20 = arith.mulf %16, %19 : vector<640x1xf32>
    %c0_11 = arith.constant 0 : index
    %c0_12 = arith.constant 0 : index
    %21 = vector.load %arg4[%c0_11, %c0_12] : memref<640x1xf32, #tpu.memory_space<vmem>>, vector<640x1xf32>
    %22 = arith.mulf %9, %20 : vector<640x1xf32>
    %23 = arith.subf %21, %22 : vector<640x1xf32>
    %24 = vector.broadcast %20 : vector<640x1xf32> to vector<640x49xf32>
    %25 = arith.mulf %2, %24 : vector<640x49xf32>
    %26 = vector.broadcast %23 : vector<640x1xf32> to vector<640x49xf32>
    %27 = arith.addf %25, %26 : vector<640x49xf32>
    %cst_13 = arith.constant 0.000000e+00 : f32
    %28 = vector.broadcast %cst_13 : f32 to vector<640x49xf32>
    %29 = arith.maximumf %27, %28 : vector<640x49xf32>
    %c0_14 = arith.constant 0 : index
    %c0_15 = arith.constant 0 : index
    %30 = vector.load %arg5[%c0_14, %c0_15] : memref<640x49xf32, #tpu.memory_space<vmem>>, vector<640x49xf32>
    tpu.vector_store %arg5[%c0_14, %c0_15], %29 {strides = array<i32>} : memref<640x49xf32, #tpu.memory_space<vmem>>, vector<640x49xf32>,
    return
  }
  func.func @transform_0(%arg0: i32) -> (i32, i32) {
    %c0_i32 = arith.constant 0 : i32
    %c0_i32_0 = arith.constant 0 : i32
    return %arg0, %c0_i32 : i32, i32
  }
  func.func @transform_1(%arg0: i32) -> (i32, i32) {
    %c0_i32 = arith.constant 0 : i32
    %c0_i32_0 = arith.constant 0 : i32
    %c0_i32_1 = arith.constant 0 : i32
    return %c0_i32, %c0_i32_0 : i32, i32
  }
  func.func @transform_2(%arg0: i32) -> (i32, i32) {
    %c0_i32 = arith.constant 0 : i32
    %c0_i32_0 = arith.constant 0 : i32
    return %arg0, %c0_i32 : i32, i32
  }
  func.func @transform_3(%arg0: i32) -> (i32, i32) {
    %c0_i32 = arith.constant 0 : i32
    %c0_i32_0 = arith.constant 0 : i32
    return %arg0, %c0_i32 : i32, i32
  }
  func.func @transform_4(%arg0: i32) -> (i32, i32) {
    %c0_i32 = arith.constant 0 : i32
    %c0_i32_0 = arith.constant 0 : i32
    return %arg0, %c0_i32 : i32, i32
  }
}

</mosaic_0001>

<llo_original>
// kernel: tpu_custom_call.1
$region0: #{tpu_custom_call.1}
  #allocation0 [shape = 'u32[]', space=smem, size = 0x4, offset = 0x4, fixed_abs, tag = 'smem constant byte address 0x4 - core index']
  #allocation1 [shape = 'u32[144,128]{1,0:T(1,128)}', space=vmem, size = 0x12000, scoped, tag = 'internal scratch']
  %s0 = inlined_call_operand.vmem [shape: f32[1280,320], index: 0, kind: input, shape index: {}]
  %s1 = inlined_call_operand.vmem [shape: f32[320,49], index: 1, kind: input, shape index: {}]
  %s2 = inlined_call_operand.vmem [shape: f32[1280,1], index: 2, kind: input, shape index: {}]
  %s3 = inlined_call_operand.vmem [shape: f32[1280,1], index: 3, kind: input, shape index: {}]
  %s4 = inlined_call_operand.vmem [shape: f32[1280,49], index: 4, kind: output, shape index: {}]
  %s5 = sld [smem:[#allocation0]]
  $region49: #{tpu_custom_call.1} parent=0
    _
  %s7 = ssub.s32 1, %s5
  %s8 = scalar_select 0, %s7, %s5
  loop: start=0, step=1, limit=4
  $region2: #{tpu_custom_call.1} parent=0 // loop_pre_header
    _
  $region3: #{tpu_custom_call.1} parent=0 // loop_header
    %s10 = sphi 0, %s14
    %p11 = scmp.ge.s32.totalorder %s10, 4
    %s20 = sphi 0, %s22
    %s23 = sphi 0, %s20
    %s24 = sphi 0, %s23
    %s40 = sphi 0, %s24
    %s44 = sphi 0, %s44
    %s46 = sphi 0, %s44
    %s47 = sphi 0, %s46
    %s61 = sphi 0, %s47
    %s67 = sphi 0, %s69
    %s70 = sphi 0, %s67
    %s71 = sphi 0, %s70
    %s87 = sphi 0, %s71
    %s93 = sphi 0, %s95
    %s96 = sphi 0, %s93
    %s97 = sphi 0, %s96
    %s113 = sphi 0, %s97
    %s119 = sphi 0, %s121
    %s122 = sphi 0, %s119
    %s123 = sphi 0, %s122
    %s139 = sphi 0, %s123
  $region4: #{tpu_custom_call.1} parent=0 // loop_header_branch
    %13 = sbr.rel (%p11) target = $region8
  $region5: #{tpu_custom_call.1} parent=0 // loop_body
    %s15 = ssub.s32 %s10, 1
    %s16 = ssub.s32 %s10, 2
    %s17 = sadd.s32 %s10, 1
    %s18 = ssub.s32 %s10, %s17
    %p19 = scmp.eq.s32.totalorder %s18, 0
    %s21 = sadd.s32 %s20, 1
    %s22 = scalar_select %p19, %s20, %s21
    %p25 = pneg %p19
    %p26 = scmp.eq.s32.totalorder %s10, 1
    %p27 = por %p25, %p26
    %p28 = scmp.ne.s32.totalorder %s20, %s23
    %p29 = scmp.eq.s32.totalorder %s10, 0
    %p30 = por %p28, %p29
    %p31 = scmp.ne.s32.totalorder %s20, %s23
    %p32 = scmp.eq.s32.totalorder %s15, 1
    %p33 = por %p31, %p32
    %p34 = scmp.ne.s32.totalorder %s23, %s24
    %p35 = scmp.eq.s32.totalorder %s15, 0
    %p36 = por %p34, %p35
    %p37 = scmp.ne.s32.totalorder %s23, %s24
    %p38 = scmp.eq.s32.totalorder %s16, 1
    %p39 = por %p37, %p38
    %p41 = scmp.ne.s32.totalorder %s24, %s40
    %p42 = scmp.eq.s32.totalorder %s16, 0
    %p43 = por %p41, %p42
    %s45 = sadd.s32 %s44, 1
    %p48 = scmp.eq.s32.totalorder %s10, 1
    %p49 = scmp.ne.s32.totalorder %s44, %s46
    %p50 = scmp.eq.s32.totalorder %s10, 0
    %p51 = por %p49, %p50
    %p52 = scmp.ne.s32.totalorder %s44, %s46
    %p53 = scmp.eq.s32.totalorder %s15, 1
    %p54 = por %p52, %p53
    %p55 = scmp.ne.s32.totalorder %s46, %s47
    %p56 = scmp.eq.s32.totalorder %s15, 0
    %p57 = por %p55, %p56
    %p58 = scmp.ne.s32.totalorder %s46, %s47
    %p59 = scmp.eq.s32.totalorder %s16, 1
    %p60 = por %p58, %p59
    %p62 = scmp.ne.s32.totalorder %s47, %s61
    %p63 = scmp.eq.s32.totalorder %s16, 0
    %p64 = por %p62, %p63
    %s65 = ssub.s32 %s10, %s17
    %p66 = scmp.eq.s32.totalorder %s65, 0
    %s68 = sadd.s32 %s67, 1
    %s69 = scalar_select %p66, %s67, %s68
    %p72 = pneg %p66
    %p73 = scmp.eq.s32.totalorder %s10, 1
    %p74 = por %p72, %p73
    %p75 = scmp.ne.s32.totalorder %s67, %s70
    %p76 = scmp.eq.s32.totalorder %s10, 0
    %p77 = por %p75, %p76
    %p78 = scmp.ne.s32.totalorder %s67, %s70
    %p79 = scmp.eq.s32.totalorder %s15, 1
    %p80 = por %p78, %p79
    %p81 = scmp.ne.s32.totalorder %s70, %s71
    %p82 = scmp.eq.s32.totalorder %s15, 0
    %p83 = por %p81, %p82
    %p84 = scmp.ne.s32.totalorder %s70, %s71
    %p85 = scmp.eq.s32.totalorder %s16, 1
    %p86 = por %p84, %p85
    %p88 = scmp.ne.s32.totalorder %s71, %s87
    %p89 = scmp.eq.s32.totalorder %s16, 0
    %p90 = por %p88, %p89
    %s91 = ssub.s32 %s10, %s17
    %p92 = scmp.eq.s32.totalorder %s91, 0
    %s94 = sadd.s32 %s93, 1
    %s95 = scalar_select %p92, %s93, %s94
    %p98 = pneg %p92
    %p99 = scmp.eq.s32.totalorder %s10, 1
    %p100 = por %p98, %p99
    %p101 = scmp.ne.s32.totalorder %s93, %s96
    %p102 = scmp.eq.s32.totalorder %s10, 0
    %p103 = por %p101, %p102
    %p104 = scmp.ne.s32.totalorder %s93, %s96
    %p105 = scmp.eq.s32.totalorder %s15, 1
    %p106 = por %p104, %p105
    %p107 = scmp.ne.s32.totalorder %s96, %s97
    %p108 = scmp.eq.s32.totalorder %s15, 0
    %p109 = por %p107, %p108
    %p110 = scmp.ne.s32.totalorder %s96, %s97
    %p111 = scmp.eq.s32.totalorder %s16, 1
    %p112 = por %p110, %p111
    %p114 = scmp.ne.s32.totalorder %s97, %s113
    %p115 = scmp.eq.s32.totalorder %s16, 0
    %p116 = por %p114, %p115
    %s117 = ssub.s32 %s10, %s17
    %p118 = scmp.eq.s32.totalorder %s117, 0
    %s120 = sadd.s32 %s119, 1
    %s121 = scalar_select %p118, %s119, %s120
    %p124 = pneg %p118
    %p125 = scmp.eq.s32.totalorder %s10, 1
    %p126 = por %p124, %p125
    %p127 = scmp.ne.s32.totalorder %s119, %s122
    %p128 = scmp.eq.s32.totalorder %s10, 0
    %p129 = por %p127, %p128
    %p130 = scmp.ne.s32.totalorder %s119, %s122
    %p131 = scmp.eq.s32.totalorder %s15, 1
    %p132 = por %p130, %p131
    %p133 = scmp.ne.s32.totalorder %s122, %s123
    %p134 = scmp.eq.s32.totalorder %s15, 0
    %p135 = por %p133, %p134
    %p136 = scmp.ne.s32.totalorder %s122, %s123
    %p137 = scmp.eq.s32.totalorder %s16, 1
    %p138 = por %p136, %p137
    %p140 = scmp.ne.s32.totalorder %s123, %s139
    %p141 = scmp.eq.s32.totalorder %s16, 0
    %p142 = por %p140, %p141
    %p143 = scmp.le.s32.totalorder 1, %s10
    %p144 = scmp.lt.s32.totalorder %s10, 3
    %p145 = pnand %p143, %p144
    %p146 = pneg %p145
    // Predicated region
    $region9: #{tpu_custom_call.1} parent=5 // pred_check
      _
    $region10: #{tpu_custom_call.1} parent=5 // pred_check_branch
      %148 = sbr.rel (%p145) target = $region12
    $region11: #{tpu_custom_call.1} parent=5 // pred_region
      %s149 = ssub.s32 %s10, 1
      // Predicated region
      $region13: #{tpu_custom_call.1} parent=11 // pred_check
        %p150 = pneg %p57
      $region14: #{tpu_custom_call.1} parent=11 // pred_check_branch
        %152 = sbr.rel (%p150) target = $region16
      $region15: #{tpu_custom_call.1} parent=11 // pred_region
        _
      $region16: #{tpu_custom_call.1} parent=11 // pred_fallthru
        _
    $region12: #{tpu_custom_call.1} parent=5 // pred_fallthru
      _
    %p153 = scmp.lt.s32.totalorder %s10, 2
    // Predicated region
    $region17: #{tpu_custom_call.1} parent=5 // pred_check
      %p154 = pneg %p153
    $region18: #{tpu_custom_call.1} parent=5 // pred_check_branch
      %156 = sbr.rel (%p154) target = $region20
    $region19: #{tpu_custom_call.1} parent=5 // pred_region
      // Predicated region
      $region21: #{tpu_custom_call.1} parent=19 // pred_check
        %p157 = pneg %p30
      $region22: #{tpu_custom_call.1} parent=19 // pred_check_branch
        %159 = sbr.rel (%p157) target = $region24
      $region23: #{tpu_custom_call.1} parent=19 // pred_region
        %s160 = smul.u32 80, %s10
        %p161 = scmp.lt.s32.totalorder %s160, 159
        %s162 = scalar_select %p161, %s160, 159
        %s163 = smul.addr %s162, 3
        %s164 = smul.addr %s163, 8
        %s165 = scalar_lea.vmem %s0, %s164
        %s166 = smul.u32 80, %s10
      $region24: #{tpu_custom_call.1} parent=19 // pred_fallthru
        _
      // Predicated region
      $region25: #{tpu_custom_call.1} parent=19 // pred_check
        %p167 = pneg %p77
      $region26: #{tpu_custom_call.1} parent=19 // pred_check_branch
        %169 = sbr.rel (%p167) target = $region28
      $region27: #{tpu_custom_call.1} parent=19 // pred_region
        %s170 = smul.u32 80, %s10
        %p171 = scmp.lt.s32.totalorder %s170, 159
        %s172 = scalar_select %p171, %s170, 159
        %s173 = smul.addr %s172, 8
        %s174 = scalar_lea.vmem %s2, %s173
        %s175 = smul.u32 80, %s10
      $region28: #{tpu_custom_call.1} parent=19 // pred_fallthru
        _
      // Predicated region
      $region29: #{tpu_custom_call.1} parent=19 // pred_check
        %p176 = pneg %p103
      $region30: #{tpu_custom_call.1} parent=19 // pred_check_branch
        %178 = sbr.rel (%p176) target = $region32
      $region31: #{tpu_custom_call.1} parent=19 // pred_region
        %s179 = smul.u32 80, %s10
        %p180 = scmp.lt.s32.totalorder %s179, 159
        %s181 = scalar_select %p180, %s179, 159
        %s182 = smul.addr %s181, 8
        %s183 = scalar_lea.vmem %s3, %s182
        %s184 = smul.u32 80, %s10
      $region32: #{tpu_custom_call.1} parent=19 // pred_fallthru
        _
    $region20: #{tpu_custom_call.1} parent=5 // pred_fallthru
      _
    %p185 = scmp.le.s32.totalorder 1, %s10
    %p186 = scmp.lt.s32.totalorder %s10, 3
    %p187 = pnand %p185, %p186
    %p188 = pneg %p187
    // Predicated region
    $region33: #{tpu_custom_call.1} parent=5 // pred_check
      _
    $region34: #{tpu_custom_call.1} parent=5 // pred_check_branch
      %190 = sbr.rel (%p187) target = $region36
    $region35: #{tpu_custom_call.1} parent=5 // pred_region
      %s191 = ssub.s32 %s10, 1
      %s192 = smul.u32 80, %s15
      %p193 = scmp.lt.s32.totalorder %s192, 159
      %s194 = scalar_select %p193, %s192, 159
      %s195 = smul.addr %s194, 3
      %s196 = smul.addr %s195, 8
      %s197 = scalar_lea.vmem %s0, %s196
      %p198 = pneg %p36
      %p199 = pneg %p33
      %p200 = pneg %p57
      %p201 = pneg %p54
      %s202 = smul.u32 80, %s15
      %p203 = scmp.lt.s32.totalorder %s202, 159
      %s204 = scalar_select %p203, %s202, 159
      %s205 = smul.addr %s204, 8
      %s206 = scalar_lea.vmem %s2, %s205
      %p207 = pneg %p83
      %p208 = pneg %p80
      %s209 = smul.u32 80, %s15
      %p210 = scmp.lt.s32.totalorder %s209, 159
      %s211 = scalar_select %p210, %s209, 159
      %s212 = smul.addr %s211, 8
      %s213 = scalar_lea.vmem %s3, %s212
      %p214 = pneg %p109
      %p215 = pneg %p106
      %p216 = pneg %p135
      %p217 = pneg %p132
      %s218 = smul.u32 80, %s15
      %p219 = scmp.lt.s32.totalorder %s218, 159
      %s220 = scalar_select %p219, %s218, 159
      %s221 = smul.addr %s220, 8
      %s222 = scalar_lea.vmem %s4, %s221
      %s223 = smul.u32 80, %s15
      %p224 = scmp.lt.s32.totalorder %s223, 159
      %s225 = scalar_select %p224, %s223, 159
      %s226 = smul.addr %s225, 3
      %s227 = smul.addr %s226, 8
      %s228 = scalar_lea.vmem %s0, %s227
      %s229 = smul.u32 80, %s15
      %s230 = smul.u32 80, %s15
      %p231 = scmp.lt.s32.totalorder %s230, 159
      %s232 = scalar_select %p231, %s230, 159
      %s233 = smul.addr %s232, 8
      %s234 = scalar_lea.vmem %s2, %s233
      %s235 = smul.u32 80, %s15
      %s236 = smul.u32 80, %s15
      %p237 = scmp.lt.s32.totalorder %s236, 159
      %s238 = scalar_select %p237, %s236, 159
      %s239 = smul.addr %s238, 8
      %s240 = scalar_lea.vmem %s3, %s239
      %s241 = smul.u32 80, %s15
      %s242 = smul.u32 80, %s15
      %p243 = scmp.lt.s32.totalorder %s242, 159
      %s244 = scalar_select %p243, %s242, 159
      %s245 = smul.addr %s244, 8
      %s246 = scalar_lea.vmem %s4, %s245
      %s247 = smul.u32 80, %s15
      %v248 = vld [vmem:[%s228] sm:$0xff]
      %v249 = vld [vmem:[%s228 + $0x8] sm:$0xff]
      %v250 = vld [vmem:[%s228 + $0x10] sm:$0xff]
      %v251 = vld [vmem:[%s228 + $0x18] sm:$0xff]
      %v252 = vld [vmem:[%s228 + $0x20] sm:$0xff]
      %v253 = vld [vmem:[%s228 + $0x28] sm:$0xff]
      %v254 = vld [vmem:[%s228 + $0x30] sm:$0xff]
      %v255 = vld [vmem:[%s228 + $0x38] sm:$0xff]
      %v256 = vld [vmem:[%s228 + $0x40] sm:$0xff]
      %v257 = vld [vmem:[%s228 + $0x48] sm:$0xff]
      %v258 = vld [vmem:[%s228 + $0x50] sm:$0xff]
      %v259 = vld [vmem:[%s228 + $0x58] sm:$0xff]
      %v260 = vld [vmem:[%s228 + $0x60] sm:$0xff]
      %v261 = vld [vmem:[%s228 + $0x68] sm:$0xff]
      %v262 = vld [vmem:[%s228 + $0x70] sm:$0xff]
      %v263 = vld [vmem:[%s228 + $0x78] sm:$0xff]
      %v264 = vld [vmem:[%s228 + $0x80] sm:$0xff]
      %v265 = vld [vmem:[%s228 + $0x88] sm:$0xff]
      %v266 = vld [vmem:[%s228 + $0x90] sm:$0xff]
      %v267 = vld [vmem:[%s228 + $0x98] sm:$0xff]
      %v268 = vld [vmem:[%s228 + $0xa0] sm:$0xff]
      %v269 = vld [vmem:[%s228 + $0xa8] sm:$0xff]
      %v270 = vld [vmem:[%s228 + $0xb0] sm:$0xff]
      %v271 = vld [vmem:[%s228 + $0xb8] sm:$0xff]
      %v272 = vld [vmem:[%s228 + $0xc0] sm:$0xff]
      %v273 = vld [vmem:[%s228 + $0xc8] sm:$0xff]
      %v274 = vld [vmem:[%s228 + $0xd0] sm:$0xff]
      %v275 = vld [vmem:[%s228 + $0xd8] sm:$0xff]
      %v276 = vld [vmem:[%s228 + $0xe0] sm:$0xff]
      %v277 = vld [vmem:[%s228 + $0xe8] sm:$0xff]
      %v278 = vld [vmem:[%s228 + $0xf0] sm:$0xff]
      %v279 = vld [vmem:[%s228 + $0xf8] sm:$0xff]
      %v280 = vld [vmem:[%s228 + $0x100] sm:$0xff]
      %v281 = vld [vmem:[%s228 + $0x108] sm:$0xff]
      %v282 = vld [vmem:[%s228 + $0x110] sm:$0xff]
      %v283 = vld [vmem:[%s228 + $0x118] sm:$0xff]
      %v284 = vld [vmem:[%s228 + $0x120] sm:$0xff]
      %v285 = vld [vmem:[%s228 + $0x128] sm:$0xff]
      %v286 = vld [vmem:[%s228 + $0x130] sm:$0xff]
      %v287 = vld [vmem:[%s228 + $0x138] sm:$0xff]
      %v288 = vld [vmem:[%s228 + $0x140] sm:$0xff]
      %v289 = vld [vmem:[%s228 + $0x148] sm:$0xff]
      %v290 = vld [vmem:[%s228 + $0x150] sm:$0xff]
      %v291 = vld [vmem:[%s228 + $0x158] sm:$0xff]
      %v292 = vld [vmem:[%s228 + $0x160] sm:$0xff]
      %v293 = vld [vmem:[%s228 + $0x168] sm:$0xff]
      %v294 = vld [vmem:[%s228 + $0x170] sm:$0xff]
      %v295 = vld [vmem:[%s228 + $0x178] sm:$0xff]
      %v296 = vld [vmem:[%s228 + $0x180] sm:$0xff]
      %v297 = vld [vmem:[%s228 + $0x188] sm:$0xff]
      %v298 = vld [vmem:[%s228 + $0x190] sm:$0xff]
      %v299 = vld [vmem:[%s228 + $0x198] sm:$0xff]
      %v300 = vld [vmem:[%s228 + $0x1a0] sm:$0xff]
      %v301 = vld [vmem:[%s228 + $0x1a8] sm:$0xff]
      %v302 = vld [vmem:[%s228 + $0x1b0] sm:$0xff]
      %v303 = vld [vmem:[%s228 + $0x1b8] sm:$0xff]
      %v304 = vld [vmem:[%s228 + $0x1c0] sm:$0xff]
      %v305 = vld [vmem:[%s228 + $0x1c8] sm:$0xff]
      %v306 = vld [vmem:[%s228 + $0x1d0] sm:$0xff]
      %v307 = vld [vmem:[%s228 + $0x1d8] sm:$0xff]
      %v308 = vld [vmem:[%s228 + $0x1e0] sm:$0xff]
      %v309 = vld [vmem:[%s228 + $0x1e8] sm:$0xff]
      %v310 = vld [vmem:[%s228 + $0x1f0] sm:$0xff]
      %v311 = vld [vmem:[%s228 + $0x1f8] sm:$0xff]
      %v312 = vld [vmem:[%s228 + $0x200] sm:$0xff]
      %v313 = vld [vmem:[%s228 + $0x208] sm:$0xff]
      %v314 = vld [vmem:[%s228 + $0x210] sm:$0xff]
      %v315 = vld [vmem:[%s228 + $0x218] sm:$0xff]
      %v316 = vld [vmem:[%s228 + $0x220] sm:$0xff]
      %v317 = vld [vmem:[%s228 + $0x228] sm:$0xff]
      %v318 = vld [vmem:[%s228 + $0x230] sm:$0xff]
      %v319 = vld [vmem:[%s228 + $0x238] sm:$0xff]
      %v320 = vld [vmem:[%s228 + $0x240] sm:$0xff]
      %v321 = vld [vmem:[%s228 + $0x248] sm:$0xff]
      %v322 = vld [vmem:[%s228 + $0x250] sm:$0xff]
      %v323 = vld [vmem:[%s228 + $0x258] sm:$0xff]
      %v324 = vld [vmem:[%s228 + $0x260] sm:$0xff]
      %v325 = vld [vmem:[%s228 + $0x268] sm:$0xff]
      %v326 = vld [vmem:[%s228 + $0x270] sm:$0xff]
      %v327 = vld [vmem:[%s228 + $0x278] sm:$0xff]
      %v328 = vld [vmem:[%s228 + $0x280] sm:$0xff]
      %v329 = vld [vmem:[%s228 + $0x288] sm:$0xff]
      %v330 = vld [vmem:[%s228 + $0x290] sm:$0xff]
      %v331 = vld [vmem:[%s228 + $0x298] sm:$0xff]
      %v332 = vld [vmem:[%s228 + $0x2a0] sm:$0xff]
      %v333 = vld [vmem:[%s228 + $0x2a8] sm:$0xff]
      %v334 = vld [vmem:[%s228 + $0x2b0] sm:$0xff]
      %v335 = vld [vmem:[%s228 + $0x2b8] sm:$0xff]
      %v336 = vld [vmem:[%s228 + $0x2c0] sm:$0xff]
      %v337 = vld [vmem:[%s228 + $0x2c8] sm:$0xff]
      %v338 = vld [vmem:[%s228 + $0x2d0] sm:$0xff]
      %v339 = vld [vmem:[%s228 + $0x2d8] sm:$0xff]
      %v340 = vld [vmem:[%s228 + $0x2e0] sm:$0xff]
      %v341 = vld [vmem:[%s228 + $0x2e8] sm:$0xff]
      %v342 = vld [vmem:[%s228 + $0x2f0] sm:$0xff]
      %v343 = vld [vmem:[%s228 + $0x2f8] sm:$0xff]
      %v344 = vld [vmem:[%s228 + $0x300] sm:$0xff]
      %v345 = vld [vmem:[%s228 + $0x308] sm:$0xff]
      %v346 = vld [vmem:[%s228 + $0x310] sm:$0xff]
      %v347 = vld [vmem:[%s228 + $0x318] sm:$0xff]
      %v348 = vld [vmem:[%s228 + $0x320] sm:$0xff]
      %v349 = vld [vmem:[%s228 + $0x328] sm:$0xff]
      %v350 = vld [vmem:[%s228 + $0x330] sm:$0xff]
      %v351 = vld [vmem:[%s228 + $0x338] sm:$0xff]
      %v352 = vld [vmem:[%s228 + $0x340] sm:$0xff]
      %v353 = vld [vmem:[%s228 + $0x348] sm:$0xff]
      %v354 = vld [vmem:[%s228 + $0x350] sm:$0xff]
      %v355 = vld [vmem:[%s228 + $0x358] sm:$0xff]
      %v356 = vld [vmem:[%s228 + $0x360] sm:$0xff]
      %v357 = vld [vmem:[%s228 + $0x368] sm:$0xff]
      %v358 = vld [vmem:[%s228 + $0x370] sm:$0xff]
      %v359 = vld [vmem:[%s228 + $0x378] sm:$0xff]
      %v360 = vld [vmem:[%s228 + $0x380] sm:$0xff]
      %v361 = vld [vmem:[%s228 + $0x388] sm:$0xff]
      %v362 = vld [vmem:[%s228 + $0x390] sm:$0xff]
      %v363 = vld [vmem:[%s228 + $0x398] sm:$0xff]
      %v364 = vld [vmem:[%s228 + $0x3a0] sm:$0xff]
      %v365 = vld [vmem:[%s228 + $0x3a8] sm:$0xff]
      %v366 = vld [vmem:[%s228 + $0x3b0] sm:$0xff]
      %v367 = vld [vmem:[%s228 + $0x3b8] sm:$0xff]
      %v368 = vld [vmem:[%s228 + $0x3c0] sm:$0xff]
      %v369 = vld [vmem:[%s228 + $0x3c8] sm:$0xff]
      %v370 = vld [vmem:[%s228 + $0x3d0] sm:$0xff]
      %v371 = vld [vmem:[%s228 + $0x3d8] sm:$0xff]
      %v372 = vld [vmem:[%s228 + $0x3e0] sm:$0xff]
      %v373 = vld [vmem:[%s228 + $0x3e8] sm:$0xff]
      %v374 = vld [vmem:[%s228 + $0x3f0] sm:$0xff]
      %v375 = vld [vmem:[%s228 + $0x3f8] sm:$0xff]
      %v376 = vld [vmem:[%s228 + $0x400] sm:$0xff]
      %v377 = vld [vmem:[%s228 + $0x408] sm:$0xff]
      %v378 = vld [vmem:[%s228 + $0x410] sm:$0xff]
      %v379 = vld [vmem:[%s228 + $0x418] sm:$0xff]
      %v380 = vld [vmem:[%s228 + $0x420] sm:$0xff]
      %v381 = vld [vmem:[%s228 + $0x428] sm:$0xff]
      %v382 = vld [vmem:[%s228 + $0x430] sm:$0xff]
      %v383 = vld [vmem:[%s228 + $0x438] sm:$0xff]
      %v384 = vld [vmem:[%s228 + $0x440] sm:$0xff]
      %v385 = vld [vmem:[%s228 + $0x448] sm:$0xff]
      %v386 = vld [vmem:[%s228 + $0x450] sm:$0xff]
      %v387 = vld [vmem:[%s228 + $0x458] sm:$0xff]
      %v388 = vld [vmem:[%s228 + $0x460] sm:$0xff]
      %v389 = vld [vmem:[%s228 + $0x468] sm:$0xff]
      %v390 = vld [vmem:[%s228 + $0x470] sm:$0xff]
      %v391 = vld [vmem:[%s228 + $0x478] sm:$0xff]
      %v392 = vld [vmem:[%s228 + $0x480] sm:$0xff]
      %v393 = vld [vmem:[%s228 + $0x488] sm:$0xff]
      %v394 = vld [vmem:[%s228 + $0x490] sm:$0xff]
      %v395 = vld [vmem:[%s228 + $0x498] sm:$0xff]
      %v396 = vld [vmem:[%s228 + $0x4a0] sm:$0xff]
      %v397 = vld [vmem:[%s228 + $0x4a8] sm:$0xff]
      %v398 = vld [vmem:[%s228 + $0x4b0] sm:$0xff]
      %v399 = vld [vmem:[%s228 + $0x4b8] sm:$0xff]
      %v400 = vld [vmem:[%s228 + $0x4c0] sm:$0xff]
      %v401 = vld [vmem:[%s228 + $0x4c8] sm:$0xff]
      %v402 = vld [vmem:[%s228 + $0x4d0] sm:$0xff]
      %v403 = vld [vmem:[%s228 + $0x4d8] sm:$0xff]
      %v404 = vld [vmem:[%s228 + $0x4e0] sm:$0xff]
      %v405 = vld [vmem:[%s228 + $0x4e8] sm:$0xff]
      %v406 = vld [vmem:[%s228 + $0x4f0] sm:$0xff]
      %v407 = vld [vmem:[%s228 + $0x4f8] sm:$0xff]
      %v408 = vld [vmem:[%s228 + $0x500] sm:$0xff]
      %v409 = vld [vmem:[%s228 + $0x508] sm:$0xff]
      %v410 = vld [vmem:[%s228 + $0x510] sm:$0xff]
      %v411 = vld [vmem:[%s228 + $0x518] sm:$0xff]
      %v412 = vld [vmem:[%s228 + $0x520] sm:$0xff]
      %v413 = vld [vmem:[%s228 + $0x528] sm:$0xff]
      %v414 = vld [vmem:[%s228 + $0x530] sm:$0xff]
      %v415 = vld [vmem:[%s228 + $0x538] sm:$0xff]
      %v416 = vld [vmem:[%s228 + $0x540] sm:$0xff]
      %v417 = vld [vmem:[%s228 + $0x548] sm:$0xff]
      %v418 = vld [vmem:[%s228 + $0x550] sm:$0xff]
      %v419 = vld [vmem:[%s228 + $0x558] sm:$0xff]
      %v420 = vld [vmem:[%s228 + $0x560] sm:$0xff]
      %v421 = vld [vmem:[%s228 + $0x568] sm:$0xff]
      %v422 = vld [vmem:[%s228 + $0x570] sm:$0xff]
      %v423 = vld [vmem:[%s228 + $0x578] sm:$0xff]
      %v424 = vld [vmem:[%s228 + $0x580] sm:$0xff]
      %v425 = vld [vmem:[%s228 + $0x588] sm:$0xff]
      %v426 = vld [vmem:[%s228 + $0x590] sm:$0xff]
      %v427 = vld [vmem:[%s228 + $0x598] sm:$0xff]
      %v428 = vld [vmem:[%s228 + $0x5a0] sm:$0xff]
      %v429 = vld [vmem:[%s228 + $0x5a8] sm:$0xff]
      %v430 = vld [vmem:[%s228 + $0x5b0] sm:$0xff]
      %v431 = vld [vmem:[%s228 + $0x5b8] sm:$0xff]
      %v432 = vld [vmem:[%s228 + $0x5c0] sm:$0xff]
      %v433 = vld [vmem:[%s228 + $0x5c8] sm:$0xff]
      %v434 = vld [vmem:[%s228 + $0x5d0] sm:$0xff]
      %v435 = vld [vmem:[%s228 + $0x5d8] sm:$0xff]
      %v436 = vld [vmem:[%s228 + $0x5e0] sm:$0xff]
      %v437 = vld [vmem:[%s228 + $0x5e8] sm:$0xff]
      %v438 = vld [vmem:[%s228 + $0x5f0] sm:$0xff]
      %v439 = vld [vmem:[%s228 + $0x5f8] sm:$0xff]
      %v440 = vld [vmem:[%s228 + $0x600] sm:$0xff]
      %v441 = vld [vmem:[%s228 + $0x608] sm:$0xff]
      %v442 = vld [vmem:[%s228 + $0x610] sm:$0xff]
      %v443 = vld [vmem:[%s228 + $0x618] sm:$0xff]
      %v444 = vld [vmem:[%s228 + $0x620] sm:$0xff]
      %v445 = vld [vmem:[%s228 + $0x628] sm:$0xff]
      %v446 = vld [vmem:[%s228 + $0x630] sm:$0xff]
      %v447 = vld [vmem:[%s228 + $0x638] sm:$0xff]
      %v448 = vld [vmem:[%s228 + $0x640] sm:$0xff]
      %v449 = vld [vmem:[%s228 + $0x648] sm:$0xff]
      %v450 = vld [vmem:[%s228 + $0x650] sm:$0xff]
      %v451 = vld [vmem:[%s228 + $0x658] sm:$0xff]
      %v452 = vld [vmem:[%s228 + $0x660] sm:$0xff]
      %v453 = vld [vmem:[%s228 + $0x668] sm:$0xff]
      %v454 = vld [vmem:[%s228 + $0x670] sm:$0xff]
      %v455 = vld [vmem:[%s228 + $0x678] sm:$0xff]
      %v456 = vld [vmem:[%s228 + $0x680] sm:$0xff]
      %v457 = vld [vmem:[%s228 + $0x688] sm:$0xff]
      %v458 = vld [vmem:[%s228 + $0x690] sm:$0xff]
      %v459 = vld [vmem:[%s228 + $0x698] sm:$0xff]
      %v460 = vld [vmem:[%s228 + $0x6a0] sm:$0xff]
      %v461 = vld [vmem:[%s228 + $0x6a8] sm:$0xff]
      %v462 = vld [vmem:[%s228 + $0x6b0] sm:$0xff]
      %v463 = vld [vmem:[%s228 + $0x6b8] sm:$0xff]
      %v464 = vld [vmem:[%s228 + $0x6c0] sm:$0xff]
      %v465 = vld [vmem:[%s228 + $0x6c8] sm:$0xff]
      %v466 = vld [vmem:[%s228 + $0x6d0] sm:$0xff]
      %v467 = vld [vmem:[%s228 + $0x6d8] sm:$0xff]
      %v468 = vld [vmem:[%s228 + $0x6e0] sm:$0xff]
      %v469 = vld [vmem:[%s228 + $0x6e8] sm:$0xff]
      %v470 = vld [vmem:[%s228 + $0x6f0] sm:$0xff]
      %v471 = vld [vmem:[%s228 + $0x6f8] sm:$0xff]
      %v472 = vld [vmem:[%s228 + $0x700] sm:$0xff]
      %v473 = vld [vmem:[%s228 + $0x708] sm:$0xff]
      %v474 = vld [vmem:[%s228 + $0x710] sm:$0xff]
      %v475 = vld [vmem:[%s228 + $0x718] sm:$0xff]
      %v476 = vld [vmem:[%s228 + $0x720] sm:$0xff]
      %v477 = vld [vmem:[%s228 + $0x728] sm:$0xff]
      %v478 = vld [vmem:[%s228 + $0x730] sm:$0xff]
      %v479 = vld [vmem:[%s228 + $0x738] sm:$0xff]
      %v480 = vld [vmem:[%s228 + $0x740] sm:$0xff]
      %v481 = vld [vmem:[%s228 + $0x748] sm:$0xff]
      %v482 = vld [vmem:[%s228 + $0x750] sm:$0xff]
      %v483 = vld [vmem:[%s228 + $0x758] sm:$0xff]
      %v484 = vld [vmem:[%s228 + $0x760] sm:$0xff]
      %v485 = vld [vmem:[%s228 + $0x768] sm:$0xff]
      %v486 = vld [vmem:[%s228 + $0x770] sm:$0xff]
      %v487 = vld [vmem:[%s228 + $0x778] sm:$0xff]
      %v488 = vld [vmem:[%s1] sm:$0xff]
      %v489 = vld [vmem:[%s1 + $0x8] sm:$0xff]
      %v490 = vld [vmem:[%s1 + $0x10] sm:$0xff]
      %v491 = vld [vmem:[%s1 + $0x18] sm:$0xff]
      %v492 = vld [vmem:[%s1 + $0x20] sm:$0xff]
      %v493 = vld [vmem:[%s1 + $0x28] sm:$0xff]
      %v494 = vld [vmem:[%s1 + $0x30] sm:$0xff]
      %v495 = vld [vmem:[%s1 + $0x38] sm:$0xff]
      %v496 = vld [vmem:[%s1 + $0x40] sm:$0xff]
      %v497 = vld [vmem:[%s1 + $0x48] sm:$0xff]
      %v498 = vld [vmem:[%s1 + $0x50] sm:$0xff]
      %v499 = vld [vmem:[%s1 + $0x58] sm:$0xff]
      %v500 = vld [vmem:[%s1 + $0x60] sm:$0xff]
      %v501 = vld [vmem:[%s1 + $0x68] sm:$0xff]
      %v502 = vld [vmem:[%s1 + $0x70] sm:$0xff]
      %v503 = vld [vmem:[%s1 + $0x78] sm:$0xff]
      %v504 = vld [vmem:[%s1 + $0x80] sm:$0xff]
      %v505 = vld [vmem:[%s1 + $0x88] sm:$0xff]
      %v506 = vld [vmem:[%s1 + $0x90] sm:$0xff]
      %v507 = vld [vmem:[%s1 + $0x98] sm:$0xff]
      %v508 = vld [vmem:[%s1 + $0xa0] sm:$0xff]
      %v509 = vld [vmem:[%s1 + $0xa8] sm:$0xff]
      %v510 = vld [vmem:[%s1 + $0xb0] sm:$0xff]
      %v511 = vld [vmem:[%s1 + $0xb8] sm:$0xff]
      %v512 = vld [vmem:[%s1 + $0xc0] sm:$0xff]
      %v513 = vld [vmem:[%s1 + $0xc8] sm:$0xff]
      %v514 = vld [vmem:[%s1 + $0xd0] sm:$0xff]
      %v515 = vld [vmem:[%s1 + $0xd8] sm:$0xff]
      %v516 = vld [vmem:[%s1 + $0xe0] sm:$0xff]
      %v517 = vld [vmem:[%s1 + $0xe8] sm:$0xff]
      %v518 = vld [vmem:[%s1 + $0xf0] sm:$0xff]
      %v519 = vld [vmem:[%s1 + $0xf8] sm:$0xff]
      %v520 = vld [vmem:[%s1 + $0x100] sm:$0xff]
      %v521 = vld [vmem:[%s1 + $0x108] sm:$0xff]
      %v522 = vld [vmem:[%s1 + $0x110] sm:$0xff]
      %v523 = vld [vmem:[%s1 + $0x118] sm:$0xff]
      %v524 = vld [vmem:[%s1 + $0x120] sm:$0xff]
      %v525 = vld [vmem:[%s1 + $0x128] sm:$0xff]
      %v526 = vld [vmem:[%s1 + $0x130] sm:$0xff]
      %v527 = vld [vmem:[%s1 + $0x138] sm:$0xff]
      %vm528 = vcmask 523264
      %v530 = vsel %vm528, %v250, 0
      %v533 = vsel %vm528, %v253, 0
      %v536 = vsel %vm528, %v256, 0
      %v539 = vsel %vm528, %v259, 0
      %v542 = vsel %vm528, %v262, 0
      %v545 = vsel %vm528, %v265, 0
      %v548 = vsel %vm528, %v268, 0
      %v551 = vsel %vm528, %v271, 0
      %v554 = vsel %vm528, %v274, 0
      %v557 = vsel %vm528, %v277, 0
      %v560 = vsel %vm528, %v280, 0
      %v563 = vsel %vm528, %v283, 0
      %v566 = vsel %vm528, %v286, 0
      %v569 = vsel %vm528, %v289, 0
      %v572 = vsel %vm528, %v292, 0
      %v575 = vsel %vm528, %v295, 0
      %v578 = vsel %vm528, %v298, 0
      %v581 = vsel %vm528, %v301, 0
      %v584 = vsel %vm528, %v304, 0
      %v587 = vsel %vm528, %v307, 0
      %v590 = vsel %vm528, %v310, 0
      %v593 = vsel %vm528, %v313, 0
      %v596 = vsel %vm528, %v316, 0
      %v599 = vsel %vm528, %v319, 0
      %v602 = vsel %vm528, %v322, 0
      %v605 = vsel %vm528, %v325, 0
      %v608 = vsel %vm528, %v328, 0
      %v611 = vsel %vm528, %v331, 0
      %v614 = vsel %vm528, %v334, 0
      %v617 = vsel %vm528, %v337, 0
      %v620 = vsel %vm528, %v340, 0
      %v623 = vsel %vm528, %v343, 0
      %v626 = vsel %vm528, %v346, 0
      %v629 = vsel %vm528, %v349, 0
      %v632 = vsel %vm528, %v352, 0
      %v635 = vsel %vm528, %v355, 0
      %v638 = vsel %vm528, %v358, 0
      %v641 = vsel %vm528, %v361, 0
      %v644 = vsel %vm528, %v364, 0
      %v647 = vsel %vm528, %v367, 0
      %v650 = vsel %vm528, %v370, 0
      %v653 = vsel %vm528, %v373, 0
      %v656 = vsel %vm528, %v376, 0
      %v659 = vsel %vm528, %v379, 0
      %v662 = vsel %vm528, %v382, 0
      %v665 = vsel %vm528, %v385, 0
      %v668 = vsel %vm528, %v388, 0
      %v671 = vsel %vm528, %v391, 0
      %v674 = vsel %vm528, %v394, 0
      %v677 = vsel %vm528, %v397, 0
      %v680 = vsel %vm528, %v400, 0
      %v683 = vsel %vm528, %v403, 0
      %v686 = vsel %vm528, %v406, 0
      %v689 = vsel %vm528, %v409, 0
      %v692 = vsel %vm528, %v412, 0
      %v695 = vsel %vm528, %v415, 0
      %v698 = vsel %vm528, %v418, 0
      %v701 = vsel %vm528, %v421, 0
      %v704 = vsel %vm528, %v424, 0
      %v707 = vsel %vm528, %v427, 0
      %v710 = vsel %vm528, %v430, 0
      %v713 = vsel %vm528, %v433, 0
      %v716 = vsel %vm528, %v436, 0
      %v719 = vsel %vm528, %v439, 0
      %v722 = vsel %vm528, %v442, 0
      %v725 = vsel %vm528, %v445, 0
      %v728 = vsel %vm528, %v448, 0
      %v731 = vsel %vm528, %v451, 0
      %v734 = vsel %vm528, %v454, 0
      %v737 = vsel %vm528, %v457, 0
      %v740 = vsel %vm528, %v460, 0
      %v743 = vsel %vm528, %v463, 0
      %v746 = vsel %vm528, %v466, 0
      %v749 = vsel %vm528, %v469, 0
      %v752 = vsel %vm528, %v472, 0
      %v755 = vsel %vm528, %v475, 0
      %v758 = vsel %vm528, %v478, 0
      %v761 = vsel %vm528, %v481, 0
      %v764 = vsel %vm528, %v484, 0
      %v767 = vsel %vm528, %v487, 0
      %769 = vmatprep.subr.mxu0 0.0
      %770 = vmatpush1.msra.mxu0 %v503
      %771 = vmatprep.subr.mxu0 0.0
      %772 = vmatpush1.msra.mxu0 %v502
      %773 = vmatprep.subr.mxu0 0.0
      %774 = vmatpush1.msra.mxu0 %v501
      %775 = vmatprep.subr.mxu0 0.0
      %776 = vmatpush1.msra.mxu0 %v500
      %777 = vmatprep.subr.mxu0 0.0
      %778 = vmatpush1.msra.mxu0 %v499
      %779 = vmatprep.subr.mxu0 0.0
      %780 = vmatpush1.msra.mxu0 %v498
      %781 = vmatprep.subr.mxu0 0.0
      %782 = vmatpush1.msra.mxu0 %v497
      %783 = vmatprep.subr.mxu0 0.0
      %784 = vmatpush1.msra.mxu0 %v496
      %785 = vmatprep.subr.mxu0 0.0
      %786 = vmatpush1.msra.mxu0 %v495
      %787 = vmatprep.subr.mxu0 0.0
      %788 = vmatpush1.msra.mxu0 %v494
      %789 = vmatprep.subr.mxu0 0.0
      %790 = vmatpush1.msra.mxu0 %v493
      %791 = vmatprep.subr.mxu0 0.0
      %792 = vmatpush1.msra.mxu0 %v492
      %793 = vmatprep.subr.mxu0 0.0
      %794 = vmatpush1.msra.mxu0 %v491
      %795 = vmatprep.subr.mxu0 0.0
      %796 = vmatpush1.msra.mxu0 %v490
      %797 = vmatprep.subr.mxu0 0.0
      %798 = vmatpush1.msra.mxu0 %v489
      %799 = vmatprep.subr.mxu0 0.0
      %800 = vmatpush1.msra.mxu0 %v488
      %801 = vmatprep.subr.mxu0 0.0
      %802 = vmatpush2.msra.mxu0 %v519
      %803 = vmatprep.subr.mxu0 0.0
      %804 = vmatpush2.msra.mxu0 %v518
      %805 = vmatprep.subr.mxu0 0.0
      %806 = vmatpush2.msra.mxu0 %v517
      %807 = vmatprep.subr.mxu0 0.0
      %808 = vmatpush2.msra.mxu0 %v516
      %809 = vmatprep.subr.mxu0 0.0
      %810 = vmatpush2.msra.mxu0 %v515
      %811 = vmatprep.subr.mxu0 0.0
      %812 = vmatpush2.msra.mxu0 %v514
      %813 = vmatprep.subr.mxu0 0.0
      %814 = vmatpush2.msra.mxu0 %v513
      %815 = vmatprep.subr.mxu0 0.0
      %816 = vmatpush2.msra.mxu0 %v512
      %817 = vmatprep.subr.mxu0 0.0
      %818 = vmatpush2.msra.mxu0 %v511
      %819 = vmatprep.subr.mxu0 0.0
      %820 = vmatpush2.msra.mxu0 %v510
      %821 = vmatprep.subr.mxu0 0.0
      %822 = vmatpush2.msra.mxu0 %v509
      %823 = vmatprep.subr.mxu0 0.0
      %824 = vmatpush2.msra.mxu0 %v508
      %825 = vmatprep.subr.mxu0 0.0
      %826 = vmatpush2.msra.mxu0 %v507
      %827 = vmatprep.subr.mxu0 0.0
      %828 = vmatpush2.msra.mxu0 %v506
      %829 = vmatprep.subr.mxu0 0.0
      %830 = vmatpush2.msra.mxu0 %v505
      %831 = vmatprep.subr.mxu0 0.0
      %832 = vmatpush2.msra.mxu0 %v504
      %833 = vmatprep.mubr.f32.mxu0 %v249
      %834 = vmatmul.mubr.f32.gmra.mxu0 %v248
      %v835 = vpop.f32.mrf.mxu0
      %v836 = vadd.f32 0.0, %v835
      %v837 = vpop.f32.mrf.mxu0
      %838 = vmatprep.mubr.f32.mxu0 %v252
      %839 = vmatmul.mubr.f32.gmra.mxu0 %v251
      %v840 = vpop.f32.mrf.mxu0
      %v841 = vadd.f32 0.0, %v840
      %v842 = vpop.f32.mrf.mxu0
      %843 = vmatprep.mubr.f32.mxu0 %v255
      %844 = vmatmul.mubr.f32.gmra.mxu0 %v254
      %v845 = vpop.f32.mrf.mxu0
      %v846 = vadd.f32 0.0, %v845
      %v847 = vpop.f32.mrf.mxu0
      %848 = vmatprep.mubr.f32.mxu0 %v258
      %849 = vmatmul.mubr.f32.gmra.mxu0 %v257
      %v850 = vpop.f32.mrf.mxu0
      %v851 = vadd.f32 0.0, %v850
      %v852 = vpop.f32.mrf.mxu0
      %853 = vmatprep.mubr.f32.mxu0 %v261
      %854 = vmatmul.mubr.f32.gmra.mxu0 %v260
      %v855 = vpop.f32.mrf.mxu0
      %v856 = vadd.f32 0.0, %v855
      %v857 = vpop.f32.mrf.mxu0
      %858 = vmatprep.mubr.f32.mxu0 %v264
      %859 = vmatmul.mubr.f32.gmra.mxu0 %v263
      %v860 = vpop.f32.mrf.mxu0
      %v861 = vadd.f32 0.0, %v860
      %v862 = vpop.f32.mrf.mxu0
      %863 = vmatprep.mubr.f32.mxu0 %v267
      %864 = vmatmul.mubr.f32.gmra.mxu0 %v266
      %v865 = vpop.f32.mrf.mxu0
      %v866 = vadd.f32 0.0, %v865
      %v867 = vpop.f32.mrf.mxu0
      %868 = vmatprep.mubr.f32.mxu0 %v270
      %869 = vmatmul.mubr.f32.gmra.mxu0 %v269
      %v870 = vpop.f32.mrf.mxu0
      %v871 = vadd.f32 0.0, %v870
      %v872 = vpop.f32.mrf.mxu0
      %873 = vmatprep.mubr.f32.mxu0 %v273
      %874 = vmatmul.mubr.f32.gmra.mxu0 %v272
      %v875 = vpop.f32.mrf.mxu0
      %v876 = vadd.f32 0.0, %v875
      %v877 = vpop.f32.mrf.mxu0
      %878 = vmatprep.mubr.f32.mxu0 %v276
      %879 = vmatmul.mubr.f32.gmra.mxu0 %v275
      %v880 = vpop.f32.mrf.mxu0
      %v881 = vadd.f32 0.0, %v880
      %v882 = vpop.f32.mrf.mxu0
      %883 = vmatprep.mubr.f32.mxu0 %v279
      %884 = vmatmul.mubr.f32.gmra.mxu0 %v278
      %v885 = vpop.f32.mrf.mxu0
      %v886 = vadd.f32 0.0, %v885
      %v887 = vpop.f32.mrf.mxu0
      %888 = vmatprep.mubr.f32.mxu0 %v282
      %889 = vmatmul.mubr.f32.gmra.mxu0 %v281
      %v890 = vpop.f32.mrf.mxu0
      %v891 = vadd.f32 0.0, %v890
      %v892 = vpop.f32.mrf.mxu0
      %893 = vmatprep.mubr.f32.mxu0 %v285
      %894 = vmatmul.mubr.f32.gmra.mxu0 %v284
      %v895 = vpop.f32.mrf.mxu0
      %v896 = vadd.f32 0.0, %v895
      %v897 = vpop.f32.mrf.mxu0
      %898 = vmatprep.mubr.f32.mxu0 %v288
      %899 = vmatmul.mubr.f32.gmra.mxu0 %v287
      %v900 = vpop.f32.mrf.mxu0
      %v901 = vadd.f32 0.0, %v900
      %v902 = vpop.f32.mrf.mxu0
      %903 = vmatprep.mubr.f32.mxu0 %v291
      %904 = vmatmul.mubr.f32.gmra.mxu0 %v290
      %v905 = vpop.f32.mrf.mxu0
      %v906 = vadd.f32 0.0, %v905
      %v907 = vpop.f32.mrf.mxu0
      %908 = vmatprep.mubr.f32.mxu0 %v294
      %909 = vmatmul.mubr.f32.gmra.mxu0 %v293
      %v910 = vpop.f32.mrf.mxu0
      %v911 = vadd.f32 0.0, %v910
      %v912 = vpop.f32.mrf.mxu0
      %913 = vmatprep.mubr.f32.mxu0 %v297
      %914 = vmatmul.mubr.f32.gmra.mxu0 %v296
      %v915 = vpop.f32.mrf.mxu0
      %v916 = vadd.f32 0.0, %v915
      %v917 = vpop.f32.mrf.mxu0
      %918 = vmatprep.mubr.f32.mxu0 %v300
      %919 = vmatmul.mubr.f32.gmra.mxu0 %v299
      %v920 = vpop.f32.mrf.mxu0
      %v921 = vadd.f32 0.0, %v920
      %v922 = vpop.f32.mrf.mxu0
      %923 = vmatprep.mubr.f32.mxu0 %v303
      %924 = vmatmul.mubr.f32.gmra.mxu0 %v302
      %v925 = vpop.f32.mrf.mxu0
      %v926 = vadd.f32 0.0, %v925
      %v927 = vpop.f32.mrf.mxu0
      %928 = vmatprep.mubr.f32.mxu0 %v306
      %929 = vmatmul.mubr.f32.gmra.mxu0 %v305
      %v930 = vpop.f32.mrf.mxu0
      %v931 = vadd.f32 0.0, %v930
      %v932 = vpop.f32.mrf.mxu0
      %933 = vmatprep.mubr.f32.mxu0 %v309
      %934 = vmatmul.mubr.f32.gmra.mxu0 %v308
      %v935 = vpop.f32.mrf.mxu0
      %v936 = vadd.f32 0.0, %v935
      %v937 = vpop.f32.mrf.mxu0
      %938 = vmatprep.mubr.f32.mxu0 %v312
      %939 = vmatmul.mubr.f32.gmra.mxu0 %v311
      %v940 = vpop.f32.mrf.mxu0
      %v941 = vadd.f32 0.0, %v940
      %v942 = vpop.f32.mrf.mxu0
      %943 = vmatprep.mubr.f32.mxu0 %v315
      %944 = vmatmul.mubr.f32.gmra.mxu0 %v314
      %v945 = vpop.f32.mrf.mxu0
      %v946 = vadd.f32 0.0, %v945
      %v947 = vpop.f32.mrf.mxu0
      %948 = vmatprep.mubr.f32.mxu0 %v318
      %949 = vmatmul.mubr.f32.gmra.mxu0 %v317
      %v950 = vpop.f32.mrf.mxu0
      %v951 = vadd.f32 0.0, %v950
      %v952 = vpop.f32.mrf.mxu0
      %953 = vmatprep.mubr.f32.mxu0 %v321
      %954 = vmatmul.mubr.f32.gmra.mxu0 %v320
      %v955 = vpop.f32.mrf.mxu0
      %v956 = vadd.f32 0.0, %v955
      %v957 = vpop.f32.mrf.mxu0
      %958 = vmatprep.mubr.f32.mxu0 %v324
      %959 = vmatmul.mubr.f32.gmra.mxu0 %v323
      %v960 = vpop.f32.mrf.mxu0
      %v961 = vadd.f32 0.0, %v960
      %v962 = vpop.f32.mrf.mxu0
      %963 = vmatprep.mubr.f32.mxu0 %v327
      %964 = vmatmul.mubr.f32.gmra.mxu0 %v326
      %v965 = vpop.f32.mrf.mxu0
      %v966 = vadd.f32 0.0, %v965
      %v967 = vpop.f32.mrf.mxu0
      %968 = vmatprep.mubr.f32.mxu0 %v330
      %969 = vmatmul.mubr.f32.gmra.mxu0 %v329
      %v970 = vpop.f32.mrf.mxu0
      %v971 = vadd.f32 0.0, %v970
      %v972 = vpop.f32.mrf.mxu0
      %973 = vmatprep.mubr.f32.mxu0 %v333
      %974 = vmatmul.mubr.f32.gmra.mxu0 %v332
      %v975 = vpop.f32.mrf.mxu0
      %v976 = vadd.f32 0.0, %v975
      %v977 = vpop.f32.mrf.mxu0
      %978 = vmatprep.mubr.f32.mxu0 %v336
      %979 = vmatmul.mubr.f32.gmra.mxu0 %v335
      %v980 = vpop.f32.mrf.mxu0
      %v981 = vadd.f32 0.0, %v980
      %v982 = vpop.f32.mrf.mxu0
      %983 = vmatprep.mubr.f32.mxu0 %v339
      %984 = vmatmul.mubr.f32.gmra.mxu0 %v338
      %v985 = vpop.f32.mrf.mxu0
      %v986 = vadd.f32 0.0, %v985
      %v987 = vpop.f32.mrf.mxu0
      %988 = vmatprep.mubr.f32.mxu0 %v342
      %989 = vmatmul.mubr.f32.gmra.mxu0 %v341
      %v990 = vpop.f32.mrf.mxu0
      %v991 = vadd.f32 0.0, %v990
      %v992 = vpop.f32.mrf.mxu0
      %993 = vmatprep.mubr.f32.mxu0 %v345
      %994 = vmatmul.mubr.f32.gmra.mxu0 %v344
      %v995 = vpop.f32.mrf.mxu0
      %v996 = vadd.f32 0.0, %v995
      %v997 = vpop.f32.mrf.mxu0
      %998 = vmatprep.mubr.f32.mxu0 %v348
      %999 = vmatmul.mubr.f32.gmra.mxu0 %v347
      %v1000 = vpop.f32.mrf.mxu0
      %v1001 = vadd.f32 0.0, %v1000
      %v1002 = vpop.f32.mrf.mxu0
      %1003 = vmatprep.mubr.f32.mxu0 %v351
      %1004 = vmatmul.mubr.f32.gmra.mxu0 %v350
      %v1005 = vpop.f32.mrf.mxu0
      %v1006 = vadd.f32 0.0, %v1005
      %v1007 = vpop.f32.mrf.mxu0
      %1008 = vmatprep.mubr.f32.mxu0 %v354
      %1009 = vmatmul.mubr.f32.gmra.mxu0 %v353
      %v1010 = vpop.f32.mrf.mxu0
      %v1011 = vadd.f32 0.0, %v1010
      %v1012 = vpop.f32.mrf.mxu0
      %1013 = vmatprep.mubr.f32.mxu0 %v357
      %1014 = vmatmul.mubr.f32.gmra.mxu0 %v356
      %v1015 = vpop.f32.mrf.mxu0
      %v1016 = vadd.f32 0.0, %v1015
      %v1017 = vpop.f32.mrf.mxu0
      %1018 = vmatprep.mubr.f32.mxu0 %v360
      %1019 = vmatmul.mubr.f32.gmra.mxu0 %v359
      %v1020 = vpop.f32.mrf.mxu0
      %v1021 = vadd.f32 0.0, %v1020
      %v1022 = vpop.f32.mrf.mxu0
      %1023 = vmatprep.mubr.f32.mxu0 %v363
      %1024 = vmatmul.mubr.f32.gmra.mxu0 %v362
      %v1025 = vpop.f32.mrf.mxu0
      %v1026 = vadd.f32 0.0, %v1025
      %v1027 = vpop.f32.mrf.mxu0
      %1028 = vmatprep.mubr.f32.mxu0 %v366
      %1029 = vmatmul.mubr.f32.gmra.mxu0 %v365
      %v1030 = vpop.f32.mrf.mxu0
      %v1031 = vadd.f32 0.0, %v1030
      %v1032 = vpop.f32.mrf.mxu0
      %1033 = vmatprep.mubr.f32.mxu0 %v369
      %1034 = vmatmul.mubr.f32.gmra.mxu0 %v368
      %v1035 = vpop.f32.mrf.mxu0
      %v1036 = vadd.f32 0.0, %v1035
      %v1037 = vpop.f32.mrf.mxu0
      %1038 = vmatprep.mubr.f32.mxu0 %v372
      %1039 = vmatmul.mubr.f32.gmra.mxu0 %v371
      %v1040 = vpop.f32.mrf.mxu0
      %v1041 = vadd.f32 0.0, %v1040
      %v1042 = vpop.f32.mrf.mxu0
      %1043 = vmatprep.mubr.f32.mxu0 %v375
      %1044 = vmatmul.mubr.f32.gmra.mxu0 %v374
      %v1045 = vpop.f32.mrf.mxu0
      %v1046 = vadd.f32 0.0, %v1045
      %v1047 = vpop.f32.mrf.mxu0
      %1048 = vmatprep.mubr.f32.mxu0 %v378
      %1049 = vmatmul.mubr.f32.gmra.mxu0 %v377
      %v1050 = vpop.f32.mrf.mxu0
      %v1051 = vadd.f32 0.0, %v1050
      %v1052 = vpop.f32.mrf.mxu0
      %1053 = vmatprep.mubr.f32.mxu0 %v381
      %1054 = vmatmul.mubr.f32.gmra.mxu0 %v380
      %v1055 = vpop.f32.mrf.mxu0
      %v1056 = vadd.f32 0.0, %v1055
      %v1057 = vpop.f32.mrf.mxu0
      %1058 = vmatprep.mubr.f32.mxu0 %v384
      %1059 = vmatmul.mubr.f32.gmra.mxu0 %v383
      %v1060 = vpop.f32.mrf.mxu0
      %v1061 = vadd.f32 0.0, %v1060
      %v1062 = vpop.f32.mrf.mxu0
      %1063 = vmatprep.mubr.f32.mxu0 %v387
      %1064 = vmatmul.mubr.f32.gmra.mxu0 %v386
      %v1065 = vpop.f32.mrf.mxu0
      %v1066 = vadd.f32 0.0, %v1065
      %v1067 = vpop.f32.mrf.mxu0
      %1068 = vmatprep.mubr.f32.mxu0 %v390
      %1069 = vmatmul.mubr.f32.gmra.mxu0 %v389
      %v1070 = vpop.f32.mrf.mxu0
      %v1071 = vadd.f32 0.0, %v1070
      %v1072 = vpop.f32.mrf.mxu0
      %1073 = vmatprep.mubr.f32.mxu0 %v393
      %1074 = vmatmul.mubr.f32.gmra.mxu0 %v392
      %v1075 = vpop.f32.mrf.mxu0
      %v1076 = vadd.f32 0.0, %v1075
      %v1077 = vpop.f32.mrf.mxu0
      %1078 = vmatprep.mubr.f32.mxu0 %v396
      %1079 = vmatmul.mubr.f32.gmra.mxu0 %v395
      %v1080 = vpop.f32.mrf.mxu0
      %v1081 = vadd.f32 0.0, %v1080
      %v1082 = vpop.f32.mrf.mxu0
      %1083 = vmatprep.mubr.f32.mxu0 %v399
      %1084 = vmatmul.mubr.f32.gmra.mxu0 %v398
      %v1085 = vpop.f32.mrf.mxu0
      %v1086 = vadd.f32 0.0, %v1085
      %v1087 = vpop.f32.mrf.mxu0
      %1088 = vmatprep.mubr.f32.mxu0 %v402
      %1089 = vmatmul.mubr.f32.gmra.mxu0 %v401
      %v1090 = vpop.f32.mrf.mxu0
      %v1091 = vadd.f32 0.0, %v1090
      %v1092 = vpop.f32.mrf.mxu0
      %1093 = vmatprep.mubr.f32.mxu0 %v405
      %1094 = vmatmul.mubr.f32.gmra.mxu0 %v404
      %v1095 = vpop.f32.mrf.mxu0
      %v1096 = vadd.f32 0.0, %v1095
      %v1097 = vpop.f32.mrf.mxu0
      %1098 = vmatprep.mubr.f32.mxu0 %v408
      %1099 = vmatmul.mubr.f32.gmra.mxu0 %v407
      %v1100 = vpop.f32.mrf.mxu0
      %v1101 = vadd.f32 0.0, %v1100
      %v1102 = vpop.f32.mrf.mxu0
      %1103 = vmatprep.mubr.f32.mxu0 %v411
      %1104 = vmatmul.mubr.f32.gmra.mxu0 %v410
      %v1105 = vpop.f32.mrf.mxu0
      %v1106 = vadd.f32 0.0, %v1105
      %v1107 = vpop.f32.mrf.mxu0
      %1108 = vmatprep.mubr.f32.mxu0 %v414
      %1109 = vmatmul.mubr.f32.gmra.mxu0 %v413
      %v1110 = vpop.f32.mrf.mxu0
      %v1111 = vadd.f32 0.0, %v1110
      %v1112 = vpop.f32.mrf.mxu0
      %1113 = vmatprep.mubr.f32.mxu0 %v417
      %1114 = vmatmul.mubr.f32.gmra.mxu0 %v416
      %v1115 = vpop.f32.mrf.mxu0
      %v1116 = vadd.f32 0.0, %v1115
      %v1117 = vpop.f32.mrf.mxu0
      %1118 = vmatprep.mubr.f32.mxu0 %v420
      %1119 = vmatmul.mubr.f32.gmra.mxu0 %v419
      %v1120 = vpop.f32.mrf.mxu0
      %v1121 = vadd.f32 0.0, %v1120
      %v1122 = vpop.f32.mrf.mxu0
      %1123 = vmatprep.mubr.f32.mxu0 %v423
      %1124 = vmatmul.mubr.f32.gmra.mxu0 %v422
      %v1125 = vpop.f32.mrf.mxu0
      %v1126 = vadd.f32 0.0, %v1125
      %v1127 = vpop.f32.mrf.mxu0
      %1128 = vmatprep.mubr.f32.mxu0 %v426
      %1129 = vmatmul.mubr.f32.gmra.mxu0 %v425
      %v1130 = vpop.f32.mrf.mxu0
      %v1131 = vadd.f32 0.0, %v1130
      %v1132 = vpop.f32.mrf.mxu0
      %1133 = vmatprep.mubr.f32.mxu0 %v429
      %1134 = vmatmul.mubr.f32.gmra.mxu0 %v428
      %v1135 = vpop.f32.mrf.mxu0
      %v1136 = vadd.f32 0.0, %v1135
      %v1137 = vpop.f32.mrf.mxu0
      %1138 = vmatprep.mubr.f32.mxu0 %v432
      %1139 = vmatmul.mubr.f32.gmra.mxu0 %v431
      %v1140 = vpop.f32.mrf.mxu0
      %v1141 = vadd.f32 0.0, %v1140
      %v1142 = vpop.f32.mrf.mxu0
      %1143 = vmatprep.mubr.f32.mxu0 %v435
      %1144 = vmatmul.mubr.f32.gmra.mxu0 %v434
      %v1145 = vpop.f32.mrf.mxu0
      %v1146 = vadd.f32 0.0, %v1145
      %v1147 = vpop.f32.mrf.mxu0
      %1148 = vmatprep.mubr.f32.mxu0 %v438
      %1149 = vmatmul.mubr.f32.gmra.mxu0 %v437
      %v1150 = vpop.f32.mrf.mxu0
      %v1151 = vadd.f32 0.0, %v1150
      %v1152 = vpop.f32.mrf.mxu0
      %1153 = vmatprep.mubr.f32.mxu0 %v441
      %1154 = vmatmul.mubr.f32.gmra.mxu0 %v440
      %v1155 = vpop.f32.mrf.mxu0
      %v1156 = vadd.f32 0.0, %v1155
      %v1157 = vpop.f32.mrf.mxu0
      %1158 = vmatprep.mubr.f32.mxu0 %v444
      %1159 = vmatmul.mubr.f32.gmra.mxu0 %v443
      %v1160 = vpop.f32.mrf.mxu0
      %v1161 = vadd.f32 0.0, %v1160
      %v1162 = vpop.f32.mrf.mxu0
      %1163 = vmatprep.mubr.f32.mxu0 %v447
      %1164 = vmatmul.mubr.f32.gmra.mxu0 %v446
      %v1165 = vpop.f32.mrf.mxu0
      %v1166 = vadd.f32 0.0, %v1165
      %v1167 = vpop.f32.mrf.mxu0
      %1168 = vmatprep.mubr.f32.mxu0 %v450
      %1169 = vmatmul.mubr.f32.gmra.mxu0 %v449
      %v1170 = vpop.f32.mrf.mxu0
      %v1171 = vadd.f32 0.0, %v1170
      %v1172 = vpop.f32.mrf.mxu0
      %1173 = vmatprep.mubr.f32.mxu0 %v453
      %1174 = vmatmul.mubr.f32.gmra.mxu0 %v452
      %v1175 = vpop.f32.mrf.mxu0
      %v1176 = vadd.f32 0.0, %v1175
      %v1177 = vpop.f32.mrf.mxu0
      %1178 = vmatprep.mubr.f32.mxu0 %v456
      %1179 = vmatmul.mubr.f32.gmra.mxu0 %v455
      %v1180 = vpop.f32.mrf.mxu0
      %v1181 = vadd.f32 0.0, %v1180
      %v1182 = vpop.f32.mrf.mxu0
      %1183 = vmatprep.mubr.f32.mxu0 %v459
      %1184 = vmatmul.mubr.f32.gmra.mxu0 %v458
      %v1185 = vpop.f32.mrf.mxu0
      %v1186 = vadd.f32 0.0, %v1185
      %v1187 = vpop.f32.mrf.mxu0
      %1188 = vmatprep.mubr.f32.mxu0 %v462
      %1189 = vmatmul.mubr.f32.gmra.mxu0 %v461
      %v1190 = vpop.f32.mrf.mxu0
      %v1191 = vadd.f32 0.0, %v1190
      %v1192 = vpop.f32.mrf.mxu0
      %1193 = vmatprep.mubr.f32.mxu0 %v465
      %1194 = vmatmul.mubr.f32.gmra.mxu0 %v464
      %v1195 = vpop.f32.mrf.mxu0
      %v1196 = vadd.f32 0.0, %v1195
      %v1197 = vpop.f32.mrf.mxu0
      %1198 = vmatprep.mubr.f32.mxu0 %v468
      %1199 = vmatmul.mubr.f32.gmra.mxu0 %v467
      %v1200 = vpop.f32.mrf.mxu0
      %v1201 = vadd.f32 0.0, %v1200
      %v1202 = vpop.f32.mrf.mxu0
      %1203 = vmatprep.mubr.f32.mxu0 %v471
      %1204 = vmatmul.mubr.f32.gmra.mxu0 %v470
      %v1205 = vpop.f32.mrf.mxu0
      %v1206 = vadd.f32 0.0, %v1205
      %v1207 = vpop.f32.mrf.mxu0
      %1208 = vmatprep.mubr.f32.mxu0 %v474
      %1209 = vmatmul.mubr.f32.gmra.mxu0 %v473
      %v1210 = vpop.f32.mrf.mxu0
      %v1211 = vadd.f32 0.0, %v1210
      %v1212 = vpop.f32.mrf.mxu0
      %1213 = vmatprep.mubr.f32.mxu0 %v477
      %1214 = vmatmul.mubr.f32.gmra.mxu0 %v476
      %v1215 = vpop.f32.mrf.mxu0
      %v1216 = vadd.f32 0.0, %v1215
      %v1217 = vpop.f32.mrf.mxu0
      %1218 = vmatprep.mubr.f32.mxu0 %v480
      %1219 = vmatmul.mubr.f32.gmra.mxu0 %v479
      %v1220 = vpop.f32.mrf.mxu0
      %v1221 = vadd.f32 0.0, %v1220
      %v1222 = vpop.f32.mrf.mxu0
      %1223 = vmatprep.mubr.f32.mxu0 %v483
      %1224 = vmatmul.mubr.f32.gmra.mxu0 %v482
      %v1225 = vpop.f32.mrf.mxu0
      %v1226 = vadd.f32 0.0, %v1225
      %v1227 = vpop.f32.mrf.mxu0
      %1228 = vmatprep.mubr.f32.mxu0 %v486
      %1229 = vmatmul.mubr.f32.gmra.mxu0 %v485
      %v1230 = vpop.f32.mrf.mxu0
      %v1231 = vadd.f32 0.0, %v1230
      %v1232 = vpop.f32.mrf.mxu0
      %1233 = vdwg.mxu0
      %1234 = vmatprep.subr.mxu0 0.0
      %1235 = vmatpush1.msra.mxu0 0.0
      %1236 = vmatprep.subr.mxu0 0.0
      %1237 = vmatpush1.msra.mxu0 0.0
      %1238 = vmatprep.subr.mxu0 0.0
      %1239 = vmatpush1.msra.mxu0 0.0
      %1240 = vmatprep.subr.mxu0 0.0
      %1241 = vmatpush1.msra.mxu0 0.0
      %1242 = vmatprep.subr.mxu0 0.0
      %1243 = vmatpush1.msra.mxu0 0.0
      %1244 = vmatprep.subr.mxu0 0.0
      %1245 = vmatpush1.msra.mxu0 0.0
      %1246 = vmatprep.subr.mxu0 0.0
      %1247 = vmatpush1.msra.mxu0 0.0
      %1248 = vmatprep.subr.mxu0 0.0
      %1249 = vmatpush1.msra.mxu0 0.0
      %1250 = vmatprep.subr.mxu0 0.0
      %1251 = vmatpush1.msra.mxu0 %v527
      %1252 = vmatprep.subr.mxu0 0.0
      %1253 = vmatpush1.msra.mxu0 %v526
      %1254 = vmatprep.subr.mxu0 0.0
      %1255 = vmatpush1.msra.mxu0 %v525
      %1256 = vmatprep.subr.mxu0 0.0
      %1257 = vmatpush1.msra.mxu0 %v524
      %1258 = vmatprep.subr.mxu0 0.0
      %1259 = vmatpush1.msra.mxu0 %v523
      %1260 = vmatprep.subr.mxu0 0.0
      %1261 = vmatpush1.msra.mxu0 %v522
      %1262 = vmatprep.subr.mxu0 0.0
      %1263 = vmatpush1.msra.mxu0 %v521
      %1264 = vmatprep.subr.mxu0 0.0
      %1265 = vmatpush1.msra.mxu0 %v520
      %1266 = vmatprep.subr.mxu0 0.0
      %1267 = vmatpush2.msra.mxu0 0.0
      %1268 = vmatprep.subr.mxu0 0.0
      %1269 = vmatpush2.msra.mxu0 0.0
      %1270 = vmatprep.subr.mxu0 0.0
      %1271 = vmatpush2.msra.mxu0 0.0
      %1272 = vmatprep.subr.mxu0 0.0
      %1273 = vmatpush2.msra.mxu0 0.0
      %1274 = vmatprep.subr.mxu0 0.0
      %1275 = vmatpush2.msra.mxu0 0.0
      %1276 = vmatprep.subr.mxu0 0.0
      %1277 = vmatpush2.msra.mxu0 0.0
      %1278 = vmatprep.subr.mxu0 0.0
      %1279 = vmatpush2.msra.mxu0 0.0
      %1280 = vmatprep.subr.mxu0 0.0
      %1281 = vmatpush2.msra.mxu0 0.0
      %1282 = vmatprep.subr.mxu0 0.0
      %1283 = vmatpush2.msra.mxu0 0.0
      %1284 = vmatprep.subr.mxu0 0.0
      %1285 = vmatpush2.msra.mxu0 0.0
      %1286 = vmatprep.subr.mxu0 0.0
      %1287 = vmatpush2.msra.mxu0 0.0
      %1288 = vmatprep.subr.mxu0 0.0
      %1289 = vmatpush2.msra.mxu0 0.0
      %1290 = vmatprep.subr.mxu0 0.0
      %1291 = vmatpush2.msra.mxu0 0.0
      %1292 = vmatprep.subr.mxu0 0.0
      %1293 = vmatpush2.msra.mxu0 0.0
      %1294 = vmatprep.subr.mxu0 0.0
      %1295 = vmatpush2.msra.mxu0 0.0
      %1296 = vmatprep.subr.mxu0 0.0
      %1297 = vmatpush2.msra.mxu0 0.0
      %1298 = vmatprep.mubr.f32.mxu0 0.0
      %1299 = vmatmul.mubr.f32.gmra.mxu0 %v530
      %v1300 = vpop.f32.mrf.mxu0
      %v1301 = vadd.f32 %v836, %v1300
      %v1302 = vpop.f32.mrf.mxu0
      %1303 = vmatprep.mubr.f32.mxu0 0.0
      %1304 = vmatmul.mubr.f32.gmra.mxu0 %v533
      %v1305 = vpop.f32.mrf.mxu0
      %v1306 = vadd.f32 %v841, %v1305
      %v1307 = vpop.f32.mrf.mxu0
      %1308 = vmatprep.mubr.f32.mxu0 0.0
      %1309 = vmatmul.mubr.f32.gmra.mxu0 %v536
      %v1310 = vpop.f32.mrf.mxu0
      %v1311 = vadd.f32 %v846, %v1310
      %v1312 = vpop.f32.mrf.mxu0
      %1313 = vmatprep.mubr.f32.mxu0 0.0
      %1314 = vmatmul.mubr.f32.gmra.mxu0 %v539
      %v1315 = vpop.f32.mrf.mxu0
      %v1316 = vadd.f32 %v851, %v1315
      %v1317 = vpop.f32.mrf.mxu0
      %1318 = vmatprep.mubr.f32.mxu0 0.0
      %1319 = vmatmul.mubr.f32.gmra.mxu0 %v542
      %v1320 = vpop.f32.mrf.mxu0
      %v1321 = vadd.f32 %v856, %v1320
      %v1322 = vpop.f32.mrf.mxu0
      %1323 = vmatprep.mubr.f32.mxu0 0.0
      %1324 = vmatmul.mubr.f32.gmra.mxu0 %v545
      %v1325 = vpop.f32.mrf.mxu0
      %v1326 = vadd.f32 %v861, %v1325
      %v1327 = vpop.f32.mrf.mxu0
      %1328 = vmatprep.mubr.f32.mxu0 0.0
      %1329 = vmatmul.mubr.f32.gmra.mxu0 %v548
      %v1330 = vpop.f32.mrf.mxu0
      %v1331 = vadd.f32 %v866, %v1330
      %v1332 = vpop.f32.mrf.mxu0
      %1333 = vmatprep.mubr.f32.mxu0 0.0
      %1334 = vmatmul.mubr.f32.gmra.mxu0 %v551
      %v1335 = vpop.f32.mrf.mxu0
      %v1336 = vadd.f32 %v871, %v1335
      %v1337 = vpop.f32.mrf.mxu0
      %1338 = vmatprep.mubr.f32.mxu0 0.0
      %1339 = vmatmul.mubr.f32.gmra.mxu0 %v554
      %v1340 = vpop.f32.mrf.mxu0
      %v1341 = vadd.f32 %v876, %v1340
      %v1342 = vpop.f32.mrf.mxu0
      %1343 = vmatprep.mubr.f32.mxu0 0.0
      %1344 = vmatmul.mubr.f32.gmra.mxu0 %v557
      %v1345 = vpop.f32.mrf.mxu0
      %v1346 = vadd.f32 %v881, %v1345
      %v1347 = vpop.f32.mrf.mxu0
      %1348 = vmatprep.mubr.f32.mxu0 0.0
      %1349 = vmatmul.mubr.f32.gmra.mxu0 %v560
      %v1350 = vpop.f32.mrf.mxu0
      %v1351 = vadd.f32 %v886, %v1350
      %v1352 = vpop.f32.mrf.mxu0
      %1353 = vmatprep.mubr.f32.mxu0 0.0
      %1354 = vmatmul.mubr.f32.gmra.mxu0 %v563
      %v1355 = vpop.f32.mrf.mxu0
      %v1356 = vadd.f32 %v891, %v1355
      %v1357 = vpop.f32.mrf.mxu0
      %1358 = vmatprep.mubr.f32.mxu0 0.0
      %1359 = vmatmul.mubr.f32.gmra.mxu0 %v566
      %v1360 = vpop.f32.mrf.mxu0
      %v1361 = vadd.f32 %v896, %v1360
      %v1362 = vpop.f32.mrf.mxu0
      %1363 = vmatprep.mubr.f32.mxu0 0.0
      %1364 = vmatmul.mubr.f32.gmra.mxu0 %v569
      %v1365 = vpop.f32.mrf.mxu0
      %v1366 = vadd.f32 %v901, %v1365
      %v1367 = vpop.f32.mrf.mxu0
      %1368 = vmatprep.mubr.f32.mxu0 0.0
      %1369 = vmatmul.mubr.f32.gmra.mxu0 %v572
      %v1370 = vpop.f32.mrf.mxu0
      %v1371 = vadd.f32 %v906, %v1370
      %v1372 = vpop.f32.mrf.mxu0
      %1373 = vmatprep.mubr.f32.mxu0 0.0
      %1374 = vmatmul.mubr.f32.gmra.mxu0 %v575
      %v1375 = vpop.f32.mrf.mxu0
      %v1376 = vadd.f32 %v911, %v1375
      %v1377 = vpop.f32.mrf.mxu0
      %1378 = vmatprep.mubr.f32.mxu0 0.0
      %1379 = vmatmul.mubr.f32.gmra.mxu0 %v578
      %v1380 = vpop.f32.mrf.mxu0
      %v1381 = vadd.f32 %v916, %v1380
      %v1382 = vpop.f32.mrf.mxu0
      %1383 = vmatprep.mubr.f32.mxu0 0.0
      %1384 = vmatmul.mubr.f32.gmra.mxu0 %v581
      %v1385 = vpop.f32.mrf.mxu0
      %v1386 = vadd.f32 %v921, %v1385
      %v1387 = vpop.f32.mrf.mxu0
      %1388 = vmatprep.mubr.f32.mxu0 0.0
      %1389 = vmatmul.mubr.f32.gmra.mxu0 %v584
      %v1390 = vpop.f32.mrf.mxu0
      %v1391 = vadd.f32 %v926, %v1390
      %v1392 = vpop.f32.mrf.mxu0
      %1393 = vmatprep.mubr.f32.mxu0 0.0
      %1394 = vmatmul.mubr.f32.gmra.mxu0 %v587
      %v1395 = vpop.f32.mrf.mxu0
      %v1396 = vadd.f32 %v931, %v1395
      %v1397 = vpop.f32.mrf.mxu0
      %1398 = vmatprep.mubr.f32.mxu0 0.0
      %1399 = vmatmul.mubr.f32.gmra.mxu0 %v590
      %v1400 = vpop.f32.mrf.mxu0
      %v1401 = vadd.f32 %v936, %v1400
      %v1402 = vpop.f32.mrf.mxu0
      %1403 = vmatprep.mubr.f32.mxu0 0.0
      %1404 = vmatmul.mubr.f32.gmra.mxu0 %v593
      %v1405 = vpop.f32.mrf.mxu0
      %v1406 = vadd.f32 %v941, %v1405
      %v1407 = vpop.f32.mrf.mxu0
      %1408 = vmatprep.mubr.f32.mxu0 0.0
      %1409 = vmatmul.mubr.f32.gmra.mxu0 %v596
      %v1410 = vpop.f32.mrf.mxu0
      %v1411 = vadd.f32 %v946, %v1410
      %v1412 = vpop.f32.mrf.mxu0
      %1413 = vmatprep.mubr.f32.mxu0 0.0
      %1414 = vmatmul.mubr.f32.gmra.mxu0 %v599
      %v1415 = vpop.f32.mrf.mxu0
      %v1416 = vadd.f32 %v951, %v1415
      %v1417 = vpop.f32.mrf.mxu0
      %1418 = vmatprep.mubr.f32.mxu0 0.0
      %1419 = vmatmul.mubr.f32.gmra.mxu0 %v602
      %v1420 = vpop.f32.mrf.mxu0
      %v1421 = vadd.f32 %v956, %v1420
      %v1422 = vpop.f32.mrf.mxu0
      %1423 = vmatprep.mubr.f32.mxu0 0.0
      %1424 = vmatmul.mubr.f32.gmra.mxu0 %v605
      %v1425 = vpop.f32.mrf.mxu0
      %v1426 = vadd.f32 %v961, %v1425
      %v1427 = vpop.f32.mrf.mxu0
      %1428 = vmatprep.mubr.f32.mxu0 0.0
      %1429 = vmatmul.mubr.f32.gmra.mxu0 %v608
      %v1430 = vpop.f32.mrf.mxu0
      %v1431 = vadd.f32 %v966, %v1430
      %v1432 = vpop.f32.mrf.mxu0
      %1433 = vmatprep.mubr.f32.mxu0 0.0
      %1434 = vmatmul.mubr.f32.gmra.mxu0 %v611
      %v1435 = vpop.f32.mrf.mxu0
      %v1436 = vadd.f32 %v971, %v1435
      %v1437 = vpop.f32.mrf.mxu0
      %1438 = vmatprep.mubr.f32.mxu0 0.0
      %1439 = vmatmul.mubr.f32.gmra.mxu0 %v614
      %v1440 = vpop.f32.mrf.mxu0
      %v1441 = vadd.f32 %v976, %v1440
      %v1442 = vpop.f32.mrf.mxu0
      %1443 = vmatprep.mubr.f32.mxu0 0.0
      %1444 = vmatmul.mubr.f32.gmra.mxu0 %v617
      %v1445 = vpop.f32.mrf.mxu0
      %v1446 = vadd.f32 %v981, %v1445
      %v1447 = vpop.f32.mrf.mxu0
      %1448 = vmatprep.mubr.f32.mxu0 0.0
      %1449 = vmatmul.mubr.f32.gmra.mxu0 %v620
      %v1450 = vpop.f32.mrf.mxu0
      %v1451 = vadd.f32 %v986, %v1450
      %v1452 = vpop.f32.mrf.mxu0
      %1453 = vmatprep.mubr.f32.mxu0 0.0
      %1454 = vmatmul.mubr.f32.gmra.mxu0 %v623
      %v1455 = vpop.f32.mrf.mxu0
      %v1456 = vadd.f32 %v991, %v1455
      %v1457 = vpop.f32.mrf.mxu0
      %1458 = vmatprep.mubr.f32.mxu0 0.0
      %1459 = vmatmul.mubr.f32.gmra.mxu0 %v626
      %v1460 = vpop.f32.mrf.mxu0
      %v1461 = vadd.f32 %v996, %v1460
      %v1462 = vpop.f32.mrf.mxu0
      %1463 = vmatprep.mubr.f32.mxu0 0.0
      %1464 = vmatmul.mubr.f32.gmra.mxu0 %v629
      %v1465 = vpop.f32.mrf.mxu0
      %v1466 = vadd.f32 %v1001, %v1465
      %v1467 = vpop.f32.mrf.mxu0
      %1468 = vmatprep.mubr.f32.mxu0 0.0
      %1469 = vmatmul.mubr.f32.gmra.mxu0 %v632
      %v1470 = vpop.f32.mrf.mxu0
      %v1471 = vadd.f32 %v1006, %v1470
      %v1472 = vpop.f32.mrf.mxu0
      %1473 = vmatprep.mubr.f32.mxu0 0.0
      %1474 = vmatmul.mubr.f32.gmra.mxu0 %v635
      %v1475 = vpop.f32.mrf.mxu0
      %v1476 = vadd.f32 %v1011, %v1475
      %v1477 = vpop.f32.mrf.mxu0
      %1478 = vmatprep.mubr.f32.mxu0 0.0
      %1479 = vmatmul.mubr.f32.gmra.mxu0 %v638
      %v1480 = vpop.f32.mrf.mxu0
      %v1481 = vadd.f32 %v1016, %v1480
      %v1482 = vpop.f32.mrf.mxu0
      %1483 = vmatprep.mubr.f32.mxu0 0.0
      %1484 = vmatmul.mubr.f32.gmra.mxu0 %v641
      %v1485 = vpop.f32.mrf.mxu0
      %v1486 = vadd.f32 %v1021, %v1485
      %v1487 = vpop.f32.mrf.mxu0
      %1488 = vmatprep.mubr.f32.mxu0 0.0
      %1489 = vmatmul.mubr.f32.gmra.mxu0 %v644
      %v1490 = vpop.f32.mrf.mxu0
      %v1491 = vadd.f32 %v1026, %v1490
      %v1492 = vpop.f32.mrf.mxu0
      %1493 = vmatprep.mubr.f32.mxu0 0.0
      %1494 = vmatmul.mubr.f32.gmra.mxu0 %v647
      %v1495 = vpop.f32.mrf.mxu0
      %v1496 = vadd.f32 %v1031, %v1495
      %v1497 = vpop.f32.mrf.mxu0
      %1498 = vmatprep.mubr.f32.mxu0 0.0
      %1499 = vmatmul.mubr.f32.gmra.mxu0 %v650
      %v1500 = vpop.f32.mrf.mxu0
      %v1501 = vadd.f32 %v1036, %v1500
      %v1502 = vpop.f32.mrf.mxu0
      %1503 = vmatprep.mubr.f32.mxu0 0.0
      %1504 = vmatmul.mubr.f32.gmra.mxu0 %v653
      %v1505 = vpop.f32.mrf.mxu0
      %v1506 = vadd.f32 %v1041, %v1505
      %v1507 = vpop.f32.mrf.mxu0
      %1508 = vmatprep.mubr.f32.mxu0 0.0
      %1509 = vmatmul.mubr.f32.gmra.mxu0 %v656
      %v1510 = vpop.f32.mrf.mxu0
      %v1511 = vadd.f32 %v1046, %v1510
      %v1512 = vpop.f32.mrf.mxu0
      %1513 = vmatprep.mubr.f32.mxu0 0.0
      %1514 = vmatmul.mubr.f32.gmra.mxu0 %v659
      %v1515 = vpop.f32.mrf.mxu0
      %v1516 = vadd.f32 %v1051, %v1515
      %v1517 = vpop.f32.mrf.mxu0
      %1518 = vmatprep.mubr.f32.mxu0 0.0
      %1519 = vmatmul.mubr.f32.gmra.mxu0 %v662
      %v1520 = vpop.f32.mrf.mxu0
      %v1521 = vadd.f32 %v1056, %v1520
      %v1522 = vpop.f32.mrf.mxu0
      %1523 = vmatprep.mubr.f32.mxu0 0.0
      %1524 = vmatmul.mubr.f32.gmra.mxu0 %v665
      %v1525 = vpop.f32.mrf.mxu0
      %v1526 = vadd.f32 %v1061, %v1525
      %v1527 = vpop.f32.mrf.mxu0
      %1528 = vmatprep.mubr.f32.mxu0 0.0
      %1529 = vmatmul.mubr.f32.gmra.mxu0 %v668
      %v1530 = vpop.f32.mrf.mxu0
      %v1531 = vadd.f32 %v1066, %v1530
      %v1532 = vpop.f32.mrf.mxu0
      %1533 = vmatprep.mubr.f32.mxu0 0.0
      %1534 = vmatmul.mubr.f32.gmra.mxu0 %v671
      %v1535 = vpop.f32.mrf.mxu0
      %v1536 = vadd.f32 %v1071, %v1535
      %v1537 = vpop.f32.mrf.mxu0
      %1538 = vmatprep.mubr.f32.mxu0 0.0
      %1539 = vmatmul.mubr.f32.gmra.mxu0 %v674
      %v1540 = vpop.f32.mrf.mxu0
      %v1541 = vadd.f32 %v1076, %v1540
      %v1542 = vpop.f32.mrf.mxu0
      %1543 = vmatprep.mubr.f32.mxu0 0.0
      %1544 = vmatmul.mubr.f32.gmra.mxu0 %v677
      %v1545 = vpop.f32.mrf.mxu0
      %v1546 = vadd.f32 %v1081, %v1545
      %v1547 = vpop.f32.mrf.mxu0
      %1548 = vmatprep.mubr.f32.mxu0 0.0
      %1549 = vmatmul.mubr.f32.gmra.mxu0 %v680
      %v1550 = vpop.f32.mrf.mxu0
      %v1551 = vadd.f32 %v1086, %v1550
      %v1552 = vpop.f32.mrf.mxu0
      %1553 = vmatprep.mubr.f32.mxu0 0.0
      %1554 = vmatmul.mubr.f32.gmra.mxu0 %v683
      %v1555 = vpop.f32.mrf.mxu0
      %v1556 = vadd.f32 %v1091, %v1555
      %v1557 = vpop.f32.mrf.mxu0
      %1558 = vmatprep.mubr.f32.mxu0 0.0
      %1559 = vmatmul.mubr.f32.gmra.mxu0 %v686
      %v1560 = vpop.f32.mrf.mxu0
      %v1561 = vadd.f32 %v1096, %v1560
      %v1562 = vpop.f32.mrf.mxu0
      %1563 = vmatprep.mubr.f32.mxu0 0.0
      %1564 = vmatmul.mubr.f32.gmra.mxu0 %v689
      %v1565 = vpop.f32.mrf.mxu0
      %v1566 = vadd.f32 %v1101, %v1565
      %v1567 = vpop.f32.mrf.mxu0
      %1568 = vmatprep.mubr.f32.mxu0 0.0
      %1569 = vmatmul.mubr.f32.gmra.mxu0 %v692
      %v1570 = vpop.f32.mrf.mxu0
      %v1571 = vadd.f32 %v1106, %v1570
      %v1572 = vpop.f32.mrf.mxu0
      %1573 = vmatprep.mubr.f32.mxu0 0.0
      %1574 = vmatmul.mubr.f32.gmra.mxu0 %v695
      %v1575 = vpop.f32.mrf.mxu0
      %v1576 = vadd.f32 %v1111, %v1575
      %v1577 = vpop.f32.mrf.mxu0
      %1578 = vmatprep.mubr.f32.mxu0 0.0
      %1579 = vmatmul.mubr.f32.gmra.mxu0 %v698
      %v1580 = vpop.f32.mrf.mxu0
      %v1581 = vadd.f32 %v1116, %v1580
      %v1582 = vpop.f32.mrf.mxu0
      %1583 = vmatprep.mubr.f32.mxu0 0.0
      %1584 = vmatmul.mubr.f32.gmra.mxu0 %v701
      %v1585 = vpop.f32.mrf.mxu0
      %v1586 = vadd.f32 %v1121, %v1585
      %v1587 = vpop.f32.mrf.mxu0
      %1588 = vmatprep.mubr.f32.mxu0 0.0
      %1589 = vmatmul.mubr.f32.gmra.mxu0 %v704
      %v1590 = vpop.f32.mrf.mxu0
      %v1591 = vadd.f32 %v1126, %v1590
      %v1592 = vpop.f32.mrf.mxu0
      %1593 = vmatprep.mubr.f32.mxu0 0.0
      %1594 = vmatmul.mubr.f32.gmra.mxu0 %v707
      %v1595 = vpop.f32.mrf.mxu0
      %v1596 = vadd.f32 %v1131, %v1595
      %v1597 = vpop.f32.mrf.mxu0
      %1598 = vmatprep.mubr.f32.mxu0 0.0
      %1599 = vmatmul.mubr.f32.gmra.mxu0 %v710
      %v1600 = vpop.f32.mrf.mxu0
      %v1601 = vadd.f32 %v1136, %v1600
      %v1602 = vpop.f32.mrf.mxu0
      %1603 = vmatprep.mubr.f32.mxu0 0.0
      %1604 = vmatmul.mubr.f32.gmra.mxu0 %v713
      %v1605 = vpop.f32.mrf.mxu0
      %v1606 = vadd.f32 %v1141, %v1605
      %v1607 = vpop.f32.mrf.mxu0
      %1608 = vmatprep.mubr.f32.mxu0 0.0
      %1609 = vmatmul.mubr.f32.gmra.mxu0 %v716
      %v1610 = vpop.f32.mrf.mxu0
      %v1611 = vadd.f32 %v1146, %v1610
      %v1612 = vpop.f32.mrf.mxu0
      %1613 = vmatprep.mubr.f32.mxu0 0.0
      %1614 = vmatmul.mubr.f32.gmra.mxu0 %v719
      %v1615 = vpop.f32.mrf.mxu0
      %v1616 = vadd.f32 %v1151, %v1615
      %v1617 = vpop.f32.mrf.mxu0
      %1618 = vmatprep.mubr.f32.mxu0 0.0
      %1619 = vmatmul.mubr.f32.gmra.mxu0 %v722
      %v1620 = vpop.f32.mrf.mxu0
      %v1621 = vadd.f32 %v1156, %v1620
      %v1622 = vpop.f32.mrf.mxu0
      %1623 = vmatprep.mubr.f32.mxu0 0.0
      %1624 = vmatmul.mubr.f32.gmra.mxu0 %v725
      %v1625 = vpop.f32.mrf.mxu0
      %v1626 = vadd.f32 %v1161, %v1625
      %v1627 = vpop.f32.mrf.mxu0
      %1628 = vmatprep.mubr.f32.mxu0 0.0
      %1629 = vmatmul.mubr.f32.gmra.mxu0 %v728
      %v1630 = vpop.f32.mrf.mxu0
      %v1631 = vadd.f32 %v1166, %v1630
      %v1632 = vpop.f32.mrf.mxu0
      %1633 = vmatprep.mubr.f32.mxu0 0.0
      %1634 = vmatmul.mubr.f32.gmra.mxu0 %v731
      %v1635 = vpop.f32.mrf.mxu0
      %v1636 = vadd.f32 %v1171, %v1635
      %v1637 = vpop.f32.mrf.mxu0
      %1638 = vmatprep.mubr.f32.mxu0 0.0
      %1639 = vmatmul.mubr.f32.gmra.mxu0 %v734
      %v1640 = vpop.f32.mrf.mxu0
      %v1641 = vadd.f32 %v1176, %v1640
      %v1642 = vpop.f32.mrf.mxu0
      %1643 = vmatprep.mubr.f32.mxu0 0.0
      %1644 = vmatmul.mubr.f32.gmra.mxu0 %v737
      %v1645 = vpop.f32.mrf.mxu0
      %v1646 = vadd.f32 %v1181, %v1645
      %v1647 = vpop.f32.mrf.mxu0
      %1648 = vmatprep.mubr.f32.mxu0 0.0
      %1649 = vmatmul.mubr.f32.gmra.mxu0 %v740
      %v1650 = vpop.f32.mrf.mxu0
      %v1651 = vadd.f32 %v1186, %v1650
      %v1652 = vpop.f32.mrf.mxu0
      %1653 = vmatprep.mubr.f32.mxu0 0.0
      %1654 = vmatmul.mubr.f32.gmra.mxu0 %v743
      %v1655 = vpop.f32.mrf.mxu0
      %v1656 = vadd.f32 %v1191, %v1655
      %v1657 = vpop.f32.mrf.mxu0
      %1658 = vmatprep.mubr.f32.mxu0 0.0
      %1659 = vmatmul.mubr.f32.gmra.mxu0 %v746
      %v1660 = vpop.f32.mrf.mxu0
      %v1661 = vadd.f32 %v1196, %v1660
      %v1662 = vpop.f32.mrf.mxu0
      %1663 = vmatprep.mubr.f32.mxu0 0.0
      %1664 = vmatmul.mubr.f32.gmra.mxu0 %v749
      %v1665 = vpop.f32.mrf.mxu0
      %v1666 = vadd.f32 %v1201, %v1665
      %v1667 = vpop.f32.mrf.mxu0
      %1668 = vmatprep.mubr.f32.mxu0 0.0
      %1669 = vmatmul.mubr.f32.gmra.mxu0 %v752
      %v1670 = vpop.f32.mrf.mxu0
      %v1671 = vadd.f32 %v1206, %v1670
      %v1672 = vpop.f32.mrf.mxu0
      %1673 = vmatprep.mubr.f32.mxu0 0.0
      %1674 = vmatmul.mubr.f32.gmra.mxu0 %v755
      %v1675 = vpop.f32.mrf.mxu0
      %v1676 = vadd.f32 %v1211, %v1675
      %v1677 = vpop.f32.mrf.mxu0
      %1678 = vmatprep.mubr.f32.mxu0 0.0
      %1679 = vmatmul.mubr.f32.gmra.mxu0 %v758
      %v1680 = vpop.f32.mrf.mxu0
      %v1681 = vadd.f32 %v1216, %v1680
      %v1682 = vpop.f32.mrf.mxu0
      %1683 = vmatprep.mubr.f32.mxu0 0.0
      %1684 = vmatmul.mubr.f32.gmra.mxu0 %v761
      %v1685 = vpop.f32.mrf.mxu0
      %v1686 = vadd.f32 %v1221, %v1685
      %v1687 = vpop.f32.mrf.mxu0
      %1688 = vmatprep.mubr.f32.mxu0 0.0
      %1689 = vmatmul.mubr.f32.gmra.mxu0 %v764
      %v1690 = vpop.f32.mrf.mxu0
      %v1691 = vadd.f32 %v1226, %v1690
      %v1692 = vpop.f32.mrf.mxu0
      %1693 = vmatprep.mubr.f32.mxu0 0.0
      %1694 = vmatmul.mubr.f32.gmra.mxu0 %v767
      %v1695 = vpop.f32.mrf.mxu0
      %v1696 = vadd.f32 %v1231, %v1695
      %v1697 = vpop.f32.mrf.mxu0
      %1698 = vdwg.mxu0
      %vm1699 = vcmask 400384
      %v1700 = vsel %vm1699, %v1301, 0.0
      %1701 = vadd.xlane.f32.xlu0 %v1700
      %v1702 = vpop.xlane.xlu0 %1701
      %v1703 = vsel %vm1699, %v1306, 0.0
      %1704 = vadd.xlane.f32.xlu0 %v1703
      %v1705 = vpop.xlane.xlu0 %1704
      %v1706 = vsel %vm1699, %v1311, 0.0
      %1707 = vadd.xlane.f32.xlu0 %v1706
      %v1708 = vpop.xlane.xlu0 %1707
      %v1709 = vsel %vm1699, %v1316, 0.0
      %1710 = vadd.xlane.f32.xlu0 %v1709
      %v1711 = vpop.xlane.xlu0 %1710
      %v1712 = vsel %vm1699, %v1321, 0.0
      %1713 = vadd.xlane.f32.xlu0 %v1712
      %v1714 = vpop.xlane.xlu0 %1713
      %v1715 = vsel %vm1699, %v1326, 0.0
      %1716 = vadd.xlane.f32.xlu0 %v1715
      %v1717 = vpop.xlane.xlu0 %1716
      %v1718 = vsel %vm1699, %v1331, 0.0
      %1719 = vadd.xlane.f32.xlu0 %v1718
      %v1720 = vpop.xlane.xlu0 %1719
      %v1721 = vsel %vm1699, %v1336, 0.0
      %1722 = vadd.xlane.f32.xlu0 %v1721
      %v1723 = vpop.xlane.xlu0 %1722
      %v1724 = vsel %vm1699, %v1341, 0.0
      %1725 = vadd.xlane.f32.xlu0 %v1724
      %v1726 = vpop.xlane.xlu0 %1725
      %v1727 = vsel %vm1699, %v1346, 0.0
      %1728 = vadd.xlane.f32.xlu0 %v1727
      %v1729 = vpop.xlane.xlu0 %1728
      %v1730 = vsel %vm1699, %v1351, 0.0
      %1731 = vadd.xlane.f32.xlu0 %v1730
      %v1732 = vpop.xlane.xlu0 %1731
      %v1733 = vsel %vm1699, %v1356, 0.0
      %1734 = vadd.xlane.f32.xlu0 %v1733
      %v1735 = vpop.xlane.xlu0 %1734
      %v1736 = vsel %vm1699, %v1361, 0.0
      %1737 = vadd.xlane.f32.xlu0 %v1736
      %v1738 = vpop.xlane.xlu0 %1737
      %v1739 = vsel %vm1699, %v1366, 0.0
      %1740 = vadd.xlane.f32.xlu0 %v1739
      %v1741 = vpop.xlane.xlu0 %1740
      %v1742 = vsel %vm1699, %v1371, 0.0
      %1743 = vadd.xlane.f32.xlu0 %v1742
      %v1744 = vpop.xlane.xlu0 %1743
      %v1745 = vsel %vm1699, %v1376, 0.0
      %1746 = vadd.xlane.f32.xlu0 %v1745
      %v1747 = vpop.xlane.xlu0 %1746
      %v1748 = vsel %vm1699, %v1381, 0.0
      %1749 = vadd.xlane.f32.xlu0 %v1748
      %v1750 = vpop.xlane.xlu0 %1749
      %v1751 = vsel %vm1699, %v1386, 0.0
      %1752 = vadd.xlane.f32.xlu0 %v1751
      %v1753 = vpop.xlane.xlu0 %1752
      %v1754 = vsel %vm1699, %v1391, 0.0
      %1755 = vadd.xlane.f32.xlu0 %v1754
      %v1756 = vpop.xlane.xlu0 %1755
      %v1757 = vsel %vm1699, %v1396, 0.0
      %1758 = vadd.xlane.f32.xlu0 %v1757
      %v1759 = vpop.xlane.xlu0 %1758
      %v1760 = vsel %vm1699, %v1401, 0.0
      %1761 = vadd.xlane.f32.xlu0 %v1760
      %v1762 = vpop.xlane.xlu0 %1761
      %v1763 = vsel %vm1699, %v1406, 0.0
      %1764 = vadd.xlane.f32.xlu0 %v1763
      %v1765 = vpop.xlane.xlu0 %1764
      %v1766 = vsel %vm1699, %v1411, 0.0
      %1767 = vadd.xlane.f32.xlu0 %v1766
      %v1768 = vpop.xlane.xlu0 %1767
      %v1769 = vsel %vm1699, %v1416, 0.0
      %1770 = vadd.xlane.f32.xlu0 %v1769
      %v1771 = vpop.xlane.xlu0 %1770
      %v1772 = vsel %vm1699, %v1421, 0.0
      %1773 = vadd.xlane.f32.xlu0 %v1772
      %v1774 = vpop.xlane.xlu0 %1773
      %v1775 = vsel %vm1699, %v1426, 0.0
      %1776 = vadd.xlane.f32.xlu0 %v1775
      %v1777 = vpop.xlane.xlu0 %1776
      %v1778 = vsel %vm1699, %v1431, 0.0
      %1779 = vadd.xlane.f32.xlu0 %v1778
      %v1780 = vpop.xlane.xlu0 %1779
      %v1781 = vsel %vm1699, %v1436, 0.0
      %1782 = vadd.xlane.f32.xlu0 %v1781
      %v1783 = vpop.xlane.xlu0 %1782
      %v1784 = vsel %vm1699, %v1441, 0.0
      %1785 = vadd.xlane.f32.xlu0 %v1784
      %v1786 = vpop.xlane.xlu0 %1785
      %v1787 = vsel %vm1699, %v1446, 0.0
      %1788 = vadd.xlane.f32.xlu0 %v1787
      %v1789 = vpop.xlane.xlu0 %1788
      %v1790 = vsel %vm1699, %v1451, 0.0
      %1791 = vadd.xlane.f32.xlu0 %v1790
      %v1792 = vpop.xlane.xlu0 %1791
      %v1793 = vsel %vm1699, %v1456, 0.0
      %1794 = vadd.xlane.f32.xlu0 %v1793
      %v1795 = vpop.xlane.xlu0 %1794
      %v1796 = vsel %vm1699, %v1461, 0.0
      %1797 = vadd.xlane.f32.xlu0 %v1796
      %v1798 = vpop.xlane.xlu0 %1797
      %v1799 = vsel %vm1699, %v1466, 0.0
      %1800 = vadd.xlane.f32.xlu0 %v1799
      %v1801 = vpop.xlane.xlu0 %1800
      %v1802 = vsel %vm1699, %v1471, 0.0
      %1803 = vadd.xlane.f32.xlu0 %v1802
      %v1804 = vpop.xlane.xlu0 %1803
      %v1805 = vsel %vm1699, %v1476, 0.0
      %1806 = vadd.xlane.f32.xlu0 %v1805
      %v1807 = vpop.xlane.xlu0 %1806
      %v1808 = vsel %vm1699, %v1481, 0.0
      %1809 = vadd.xlane.f32.xlu0 %v1808
      %v1810 = vpop.xlane.xlu0 %1809
      %v1811 = vsel %vm1699, %v1486, 0.0
      %1812 = vadd.xlane.f32.xlu0 %v1811
      %v1813 = vpop.xlane.xlu0 %1812
      %v1814 = vsel %vm1699, %v1491, 0.0
      %1815 = vadd.xlane.f32.xlu0 %v1814
      %v1816 = vpop.xlane.xlu0 %1815
      %v1817 = vsel %vm1699, %v1496, 0.0
      %1818 = vadd.xlane.f32.xlu0 %v1817
      %v1819 = vpop.xlane.xlu0 %1818
      %v1820 = vsel %vm1699, %v1501, 0.0
      %1821 = vadd.xlane.f32.xlu0 %v1820
      %v1822 = vpop.xlane.xlu0 %1821
      %v1823 = vsel %vm1699, %v1506, 0.0
      %1824 = vadd.xlane.f32.xlu0 %v1823
      %v1825 = vpop.xlane.xlu0 %1824
      %v1826 = vsel %vm1699, %v1511, 0.0
      %1827 = vadd.xlane.f32.xlu0 %v1826
      %v1828 = vpop.xlane.xlu0 %1827
      %v1829 = vsel %vm1699, %v1516, 0.0
      %1830 = vadd.xlane.f32.xlu0 %v1829
      %v1831 = vpop.xlane.xlu0 %1830
      %v1832 = vsel %vm1699, %v1521, 0.0
      %1833 = vadd.xlane.f32.xlu0 %v1832
      %v1834 = vpop.xlane.xlu0 %1833
      %v1835 = vsel %vm1699, %v1526, 0.0
      %1836 = vadd.xlane.f32.xlu0 %v1835
      %v1837 = vpop.xlane.xlu0 %1836
      %v1838 = vsel %vm1699, %v1531, 0.0
      %1839 = vadd.xlane.f32.xlu0 %v1838
      %v1840 = vpop.xlane.xlu0 %1839
      %v1841 = vsel %vm1699, %v1536, 0.0
      %1842 = vadd.xlane.f32.xlu0 %v1841
      %v1843 = vpop.xlane.xlu0 %1842
      %v1844 = vsel %vm1699, %v1541, 0.0
      %1845 = vadd.xlane.f32.xlu0 %v1844
      %v1846 = vpop.xlane.xlu0 %1845
      %v1847 = vsel %vm1699, %v1546, 0.0
      %1848 = vadd.xlane.f32.xlu0 %v1847
      %v1849 = vpop.xlane.xlu0 %1848
      %v1850 = vsel %vm1699, %v1551, 0.0
      %1851 = vadd.xlane.f32.xlu0 %v1850
      %v1852 = vpop.xlane.xlu0 %1851
      %v1853 = vsel %vm1699, %v1556, 0.0
      %1854 = vadd.xlane.f32.xlu0 %v1853
      %v1855 = vpop.xlane.xlu0 %1854
      %v1856 = vsel %vm1699, %v1561, 0.0
      %1857 = vadd.xlane.f32.xlu0 %v1856
      %v1858 = vpop.xlane.xlu0 %1857
      %v1859 = vsel %vm1699, %v1566, 0.0
      %1860 = vadd.xlane.f32.xlu0 %v1859
      %v1861 = vpop.xlane.xlu0 %1860
      %v1862 = vsel %vm1699, %v1571, 0.0
      %1863 = vadd.xlane.f32.xlu0 %v1862
      %v1864 = vpop.xlane.xlu0 %1863
      %v1865 = vsel %vm1699, %v1576, 0.0
      %1866 = vadd.xlane.f32.xlu0 %v1865
      %v1867 = vpop.xlane.xlu0 %1866
      %v1868 = vsel %vm1699, %v1581, 0.0
      %1869 = vadd.xlane.f32.xlu0 %v1868
      %v1870 = vpop.xlane.xlu0 %1869
      %v1871 = vsel %vm1699, %v1586, 0.0
      %1872 = vadd.xlane.f32.xlu0 %v1871
      %v1873 = vpop.xlane.xlu0 %1872
      %v1874 = vsel %vm1699, %v1591, 0.0
      %1875 = vadd.xlane.f32.xlu0 %v1874
      %v1876 = vpop.xlane.xlu0 %1875
      %v1877 = vsel %vm1699, %v1596, 0.0
      %1878 = vadd.xlane.f32.xlu0 %v1877
      %v1879 = vpop.xlane.xlu0 %1878
      %v1880 = vsel %vm1699, %v1601, 0.0
      %1881 = vadd.xlane.f32.xlu0 %v1880
      %v1882 = vpop.xlane.xlu0 %1881
      %v1883 = vsel %vm1699, %v1606, 0.0
      %1884 = vadd.xlane.f32.xlu0 %v1883
      %v1885 = vpop.xlane.xlu0 %1884
      %v1886 = vsel %vm1699, %v1611, 0.0
      %1887 = vadd.xlane.f32.xlu0 %v1886
      %v1888 = vpop.xlane.xlu0 %1887
      %v1889 = vsel %vm1699, %v1616, 0.0
      %1890 = vadd.xlane.f32.xlu0 %v1889
      %v1891 = vpop.xlane.xlu0 %1890
      %v1892 = vsel %vm1699, %v1621, 0.0
      %1893 = vadd.xlane.f32.xlu0 %v1892
      %v1894 = vpop.xlane.xlu0 %1893
      %v1895 = vsel %vm1699, %v1626, 0.0
      %1896 = vadd.xlane.f32.xlu0 %v1895
      %v1897 = vpop.xlane.xlu0 %1896
      %v1898 = vsel %vm1699, %v1631, 0.0
      %1899 = vadd.xlane.f32.xlu0 %v1898
      %v1900 = vpop.xlane.xlu0 %1899
      %v1901 = vsel %vm1699, %v1636, 0.0
      %1902 = vadd.xlane.f32.xlu0 %v1901
      %v1903 = vpop.xlane.xlu0 %1902
      %v1904 = vsel %vm1699, %v1641, 0.0
      %1905 = vadd.xlane.f32.xlu0 %v1904
      %v1906 = vpop.xlane.xlu0 %1905
      %v1907 = vsel %vm1699, %v1646, 0.0
      %1908 = vadd.xlane.f32.xlu0 %v1907
      %v1909 = vpop.xlane.xlu0 %1908
      %v1910 = vsel %vm1699, %v1651, 0.0
      %1911 = vadd.xlane.f32.xlu0 %v1910
      %v1912 = vpop.xlane.xlu0 %1911
      %v1913 = vsel %vm1699, %v1656, 0.0
      %1914 = vadd.xlane.f32.xlu0 %v1913
      %v1915 = vpop.xlane.xlu0 %1914
      %v1916 = vsel %vm1699, %v1661, 0.0
      %1917 = vadd.xlane.f32.xlu0 %v1916
      %v1918 = vpop.xlane.xlu0 %1917
      %v1919 = vsel %vm1699, %v1666, 0.0
      %1920 = vadd.xlane.f32.xlu0 %v1919
      %v1921 = vpop.xlane.xlu0 %1920
      %v1922 = vsel %vm1699, %v1671, 0.0
      %1923 = vadd.xlane.f32.xlu0 %v1922
      %v1924 = vpop.xlane.xlu0 %1923
      %v1925 = vsel %vm1699, %v1676, 0.0
      %1926 = vadd.xlane.f32.xlu0 %v1925
      %v1927 = vpop.xlane.xlu0 %1926
      %v1928 = vsel %vm1699, %v1681, 0.0
      %1929 = vadd.xlane.f32.xlu0 %v1928
      %v1930 = vpop.xlane.xlu0 %1929
      %v1931 = vsel %vm1699, %v1686, 0.0
      %1932 = vadd.xlane.f32.xlu0 %v1931
      %v1933 = vpop.xlane.xlu0 %1932
      %v1934 = vsel %vm1699, %v1691, 0.0
      %1935 = vadd.xlane.f32.xlu0 %v1934
      %v1936 = vpop.xlane.xlu0 %1935
      %v1937 = vsel %vm1699, %v1696, 0.0
      %1938 = vadd.xlane.f32.xlu0 %v1937
      %v1939 = vpop.xlane.xlu0 %1938
      %v1940 = vmul.f32 %v1301, %v1301
      %v1941 = vmul.f32 %v1306, %v1306
      %v1942 = vmul.f32 %v1311, %v1311
      %v1943 = vmul.f32 %v1316, %v1316
      %v1944 = vmul.f32 %v1321, %v1321
      %v1945 = vmul.f32 %v1326, %v1326
      %v1946 = vmul.f32 %v1331, %v1331
      %v1947 = vmul.f32 %v1336, %v1336
      %v1948 = vmul.f32 %v1341, %v1341
      %v1949 = vmul.f32 %v1346, %v1346
      %v1950 = vmul.f32 %v1351, %v1351
      %v1951 = vmul.f32 %v1356, %v1356
      %v1952 = vmul.f32 %v1361, %v1361
      %v1953 = vmul.f32 %v1366, %v1366
      %v1954 = vmul.f32 %v1371, %v1371
      %v1955 = vmul.f32 %v1376, %v1376
      %v1956 = vmul.f32 %v1381, %v1381
      %v1957 = vmul.f32 %v1386, %v1386
      %v1958 = vmul.f32 %v1391, %v1391
      %v1959 = vmul.f32 %v1396, %v1396
      %v1960 = vmul.f32 %v1401, %v1401
      %v1961 = vmul.f32 %v1406, %v1406
      %v1962 = vmul.f32 %v1411, %v1411
      %v1963 = vmul.f32 %v1416, %v1416
      %v1964 = vmul.f32 %v1421, %v1421
      %v1965 = vmul.f32 %v1426, %v1426
      %v1966 = vmul.f32 %v1431, %v1431
      %v1967 = vmul.f32 %v1436, %v1436
      %v1968 = vmul.f32 %v1441, %v1441
      %v1969 = vmul.f32 %v1446, %v1446
      %v1970 = vmul.f32 %v1451, %v1451
      %v1971 = vmul.f32 %v1456, %v1456
      %v1972 = vmul.f32 %v1461, %v1461
      %v1973 = vmul.f32 %v1466, %v1466
      %v1974 = vmul.f32 %v1471, %v1471
      %v1975 = vmul.f32 %v1476, %v1476
      %v1976 = vmul.f32 %v1481, %v1481
      %v1977 = vmul.f32 %v1486, %v1486
      %v1978 = vmul.f32 %v1491, %v1491
      %v1979 = vmul.f32 %v1496, %v1496
      %v1980 = vmul.f32 %v1501, %v1501
      %v1981 = vmul.f32 %v1506, %v1506
      %v1982 = vmul.f32 %v1511, %v1511
      %v1983 = vmul.f32 %v1516, %v1516
      %v1984 = vmul.f32 %v1521, %v1521
      %v1985 = vmul.f32 %v1526, %v1526
      %v1986 = vmul.f32 %v1531, %v1531
      %v1987 = vmul.f32 %v1536, %v1536
      %v1988 = vmul.f32 %v1541, %v1541
      %v1989 = vmul.f32 %v1546, %v1546
      %v1990 = vmul.f32 %v1551, %v1551
      %v1991 = vmul.f32 %v1556, %v1556
      %v1992 = vmul.f32 %v1561, %v1561
      %v1993 = vmul.f32 %v1566, %v1566
      %v1994 = vmul.f32 %v1571, %v1571
      %v1995 = vmul.f32 %v1576, %v1576
      %v1996 = vmul.f32 %v1581, %v1581
      %v1997 = vmul.f32 %v1586, %v1586
      %v1998 = vmul.f32 %v1591, %v1591
      %v1999 = vmul.f32 %v1596, %v1596
      %v2000 = vmul.f32 %v1601, %v1601
      %v2001 = vmul.f32 %v1606, %v1606
      %v2002 = vmul.f32 %v1611, %v1611
      %v2003 = vmul.f32 %v1616, %v1616
      %v2004 = vmul.f32 %v1621, %v1621
      %v2005 = vmul.f32 %v1626, %v1626
      %v2006 = vmul.f32 %v1631, %v1631
      %v2007 = vmul.f32 %v1636, %v1636
      %v2008 = vmul.f32 %v1641, %v1641
      %v2009 = vmul.f32 %v1646, %v1646
      %v2010 = vmul.f32 %v1651, %v1651
      %v2011 = vmul.f32 %v1656, %v1656
      %v2012 = vmul.f32 %v1661, %v1661
      %v2013 = vmul.f32 %v1666, %v1666
      %v2014 = vmul.f32 %v1671, %v1671
      %v2015 = vmul.f32 %v1676, %v1676
      %v2016 = vmul.f32 %v1681, %v1681
      %v2017 = vmul.f32 %v1686, %v1686
      %v2018 = vmul.f32 %v1691, %v1691
      %v2019 = vmul.f32 %v1696, %v1696
      %v2020 = vsel %vm1699, %v1940, 0.0
      %2021 = vadd.xlane.f32.xlu0 %v2020
      %v2022 = vpop.xlane.xlu0 %2021
      %v2023 = vsel %vm1699, %v1941, 0.0
      %2024 = vadd.xlane.f32.xlu0 %v2023
      %v2025 = vpop.xlane.xlu0 %2024
      %v2026 = vsel %vm1699, %v1942, 0.0
      %2027 = vadd.xlane.f32.xlu0 %v2026
      %v2028 = vpop.xlane.xlu0 %2027
      %v2029 = vsel %vm1699, %v1943, 0.0
      %2030 = vadd.xlane.f32.xlu0 %v2029
      %v2031 = vpop.xlane.xlu0 %2030
      %v2032 = vsel %vm1699, %v1944, 0.0
      %2033 = vadd.xlane.f32.xlu0 %v2032
      %v2034 = vpop.xlane.xlu0 %2033
      %v2035 = vsel %vm1699, %v1945, 0.0
      %2036 = vadd.xlane.f32.xlu0 %v2035
      %v2037 = vpop.xlane.xlu0 %2036
      %v2038 = vsel %vm1699, %v1946, 0.0
      %2039 = vadd.xlane.f32.xlu0 %v2038
      %v2040 = vpop.xlane.xlu0 %2039
      %v2041 = vsel %vm1699, %v1947, 0.0
      %2042 = vadd.xlane.f32.xlu0 %v2041
      %v2043 = vpop.xlane.xlu0 %2042
      %v2044 = vsel %vm1699, %v1948, 0.0
      %2045 = vadd.xlane.f32.xlu0 %v2044
      %v2046 = vpop.xlane.xlu0 %2045
      %v2047 = vsel %vm1699, %v1949, 0.0
      %2048 = vadd.xlane.f32.xlu0 %v2047
      %v2049 = vpop.xlane.xlu0 %2048
      %v2050 = vsel %vm1699, %v1950, 0.0
      %2051 = vadd.xlane.f32.xlu0 %v2050
      %v2052 = vpop.xlane.xlu0 %2051
      %v2053 = vsel %vm1699, %v1951, 0.0
      %2054 = vadd.xlane.f32.xlu0 %v2053
      %v2055 = vpop.xlane.xlu0 %2054
      %v2056 = vsel %vm1699, %v1952, 0.0
      %2057 = vadd.xlane.f32.xlu0 %v2056
      %v2058 = vpop.xlane.xlu0 %2057
      %v2059 = vsel %vm1699, %v1953, 0.0
      %2060 = vadd.xlane.f32.xlu0 %v2059
      %v2061 = vpop.xlane.xlu0 %2060
      %v2062 = vsel %vm1699, %v1954, 0.0
      %2063 = vadd.xlane.f32.xlu0 %v2062
      %v2064 = vpop.xlane.xlu0 %2063
      %v2065 = vsel %vm1699, %v1955, 0.0
      %2066 = vadd.xlane.f32.xlu0 %v2065
      %v2067 = vpop.xlane.xlu0 %2066
      %v2068 = vsel %vm1699, %v1956, 0.0
      %2069 = vadd.xlane.f32.xlu0 %v2068
      %v2070 = vpop.xlane.xlu0 %2069
      %v2071 = vsel %vm1699, %v1957, 0.0
      %2072 = vadd.xlane.f32.xlu0 %v2071
      %v2073 = vpop.xlane.xlu0 %2072
      %v2074 = vsel %vm1699, %v1958, 0.0
      %2075 = vadd.xlane.f32.xlu0 %v2074
      %v2076 = vpop.xlane.xlu0 %2075
      %v2077 = vsel %vm1699, %v1959, 0.0
      %2078 = vadd.xlane.f32.xlu0 %v2077
      %v2079 = vpop.xlane.xlu0 %2078
      %v2080 = vsel %vm1699, %v1960, 0.0
      %2081 = vadd.xlane.f32.xlu0 %v2080
      %v2082 = vpop.xlane.xlu0 %2081
      %v2083 = vsel %vm1699, %v1961, 0.0
      %2084 = vadd.xlane.f32.xlu0 %v2083
      %v2085 = vpop.xlane.xlu0 %2084
      %v2086 = vsel %vm1699, %v1962, 0.0
      %2087 = vadd.xlane.f32.xlu0 %v2086
      %v2088 = vpop.xlane.xlu0 %2087
      %v2089 = vsel %vm1699, %v1963, 0.0
      %2090 = vadd.xlane.f32.xlu0 %v2089
      %v2091 = vpop.xlane.xlu0 %2090
      %v2092 = vsel %vm1699, %v1964, 0.0
      %2093 = vadd.xlane.f32.xlu0 %v2092
      %v2094 = vpop.xlane.xlu0 %2093
      %v2095 = vsel %vm1699, %v1965, 0.0
      %2096 = vadd.xlane.f32.xlu0 %v2095
      %v2097 = vpop.xlane.xlu0 %2096
      %v2098 = vsel %vm1699, %v1966, 0.0
      %2099 = vadd.xlane.f32.xlu0 %v2098
      %v2100 = vpop.xlane.xlu0 %2099
      %v2101 = vsel %vm1699, %v1967, 0.0
      %2102 = vadd.xlane.f32.xlu0 %v2101
      %v2103 = vpop.xlane.xlu0 %2102
      %v2104 = vsel %vm1699, %v1968, 0.0
      %2105 = vadd.xlane.f32.xlu0 %v2104
      %v2106 = vpop.xlane.xlu0 %2105
      %v2107 = vsel %vm1699, %v1969, 0.0
      %2108 = vadd.xlane.f32.xlu0 %v2107
      %v2109 = vpop.xlane.xlu0 %2108
      %v2110 = vsel %vm1699, %v1970, 0.0
      %2111 = vadd.xlane.f32.xlu0 %v2110
      %v2112 = vpop.xlane.xlu0 %2111
      %v2113 = vsel %vm1699, %v1971, 0.0
      %2114 = vadd.xlane.f32.xlu0 %v2113
      %v2115 = vpop.xlane.xlu0 %2114
      %v2116 = vsel %vm1699, %v1972, 0.0
      %2117 = vadd.xlane.f32.xlu0 %v2116
      %v2118 = vpop.xlane.xlu0 %2117
      %v2119 = vsel %vm1699, %v1973, 0.0
      %2120 = vadd.xlane.f32.xlu0 %v2119
      %v2121 = vpop.xlane.xlu0 %2120
      %v2122 = vsel %vm1699, %v1974, 0.0
      %2123 = vadd.xlane.f32.xlu0 %v2122
      %v2124 = vpop.xlane.xlu0 %2123
      %v2125 = vsel %vm1699, %v1975, 0.0
      %2126 = vadd.xlane.f32.xlu0 %v2125
      %v2127 = vpop.xlane.xlu0 %2126
      %v2128 = vsel %vm1699, %v1976, 0.0
      %2129 = vadd.xlane.f32.xlu0 %v2128
      %v2130 = vpop.xlane.xlu0 %2129
      %v2131 = vsel %vm1699, %v1977, 0.0
      %2132 = vadd.xlane.f32.xlu0 %v2131
      %v2133 = vpop.xlane.xlu0 %2132
      %v2134 = vsel %vm1699, %v1978, 0.0
      %2135 = vadd.xlane.f32.xlu0 %v2134
      %v2136 = vpop.xlane.xlu0 %2135
      %v2137 = vsel %vm1699, %v1979, 0.0
      %2138 = vadd.xlane.f32.xlu0 %v2137
      %v2139 = vpop.xlane.xlu0 %2138
      %v2140 = vsel %vm1699, %v1980, 0.0
      %2141 = vadd.xlane.f32.xlu0 %v2140
      %v2142 = vpop.xlane.xlu0 %2141
      %v2143 = vsel %vm1699, %v1981, 0.0
      %2144 = vadd.xlane.f32.xlu0 %v2143
      %v2145 = vpop.xlane.xlu0 %2144
      %v2146 = vsel %vm1699, %v1982, 0.0
      %2147 = vadd.xlane.f32.xlu0 %v2146
      %v2148 = vpop.xlane.xlu0 %2147
      %v2149 = vsel %vm1699, %v1983, 0.0
      %2150 = vadd.xlane.f32.xlu0 %v2149
      %v2151 = vpop.xlane.xlu0 %2150
      %v2152 = vsel %vm1699, %v1984, 0.0
      %2153 = vadd.xlane.f32.xlu0 %v2152
      %v2154 = vpop.xlane.xlu0 %2153
      %v2155 = vsel %vm1699, %v1985, 0.0
      %2156 = vadd.xlane.f32.xlu0 %v2155
      %v2157 = vpop.xlane.xlu0 %2156
      %v2158 = vsel %vm1699, %v1986, 0.0
      %2159 = vadd.xlane.f32.xlu0 %v2158
      %v2160 = vpop.xlane.xlu0 %2159
      %v2161 = vsel %vm1699, %v1987, 0.0
      %2162 = vadd.xlane.f32.xlu0 %v2161
      %v2163 = vpop.xlane.xlu0 %2162
      %v2164 = vsel %vm1699, %v1988, 0.0
      %2165 = vadd.xlane.f32.xlu0 %v2164
      %v2166 = vpop.xlane.xlu0 %2165
      %v2167 = vsel %vm1699, %v1989, 0.0
      %2168 = vadd.xlane.f32.xlu0 %v2167
      %v2169 = vpop.xlane.xlu0 %2168
      %v2170 = vsel %vm1699, %v1990, 0.0
      %2171 = vadd.xlane.f32.xlu0 %v2170
      %v2172 = vpop.xlane.xlu0 %2171
      %v2173 = vsel %vm1699, %v1991, 0.0
      %2174 = vadd.xlane.f32.xlu0 %v2173
      %v2175 = vpop.xlane.xlu0 %2174
      %v2176 = vsel %vm1699, %v1992, 0.0
      %2177 = vadd.xlane.f32.xlu0 %v2176
      %v2178 = vpop.xlane.xlu0 %2177
      %v2179 = vsel %vm1699, %v1993, 0.0
      %2180 = vadd.xlane.f32.xlu0 %v2179
      %v2181 = vpop.xlane.xlu0 %2180
      %v2182 = vsel %vm1699, %v1994, 0.0
      %2183 = vadd.xlane.f32.xlu0 %v2182
      %v2184 = vpop.xlane.xlu0 %2183
      %v2185 = vsel %vm1699, %v1995, 0.0
      %2186 = vadd.xlane.f32.xlu0 %v2185
      %v2187 = vpop.xlane.xlu0 %2186
      %v2188 = vsel %vm1699, %v1996, 0.0
      %2189 = vadd.xlane.f32.xlu0 %v2188
      %v2190 = vpop.xlane.xlu0 %2189
      %v2191 = vsel %vm1699, %v1997, 0.0
      %2192 = vadd.xlane.f32.xlu0 %v2191
      %v2193 = vpop.xlane.xlu0 %2192
      %v2194 = vsel %vm1699, %v1998, 0.0
      %2195 = vadd.xlane.f32.xlu0 %v2194
      %v2196 = vpop.xlane.xlu0 %2195
      %v2197 = vsel %vm1699, %v1999, 0.0
      %2198 = vadd.xlane.f32.xlu0 %v2197
      %v2199 = vpop.xlane.xlu0 %2198
      %v2200 = vsel %vm1699, %v2000, 0.0
      %2201 = vadd.xlane.f32.xlu0 %v2200
      %v2202 = vpop.xlane.xlu0 %2201
      %v2203 = vsel %vm1699, %v2001, 0.0
      %2204 = vadd.xlane.f32.xlu0 %v2203
      %v2205 = vpop.xlane.xlu0 %2204
      %v2206 = vsel %vm1699, %v2002, 0.0
      %2207 = vadd.xlane.f32.xlu0 %v2206
      %v2208 = vpop.xlane.xlu0 %2207
      %v2209 = vsel %vm1699, %v2003, 0.0
      %2210 = vadd.xlane.f32.xlu0 %v2209
      %v2211 = vpop.xlane.xlu0 %2210
      %v2212 = vsel %vm1699, %v2004, 0.0
      %2213 = vadd.xlane.f32.xlu0 %v2212
      %v2214 = vpop.xlane.xlu0 %2213
      %v2215 = vsel %vm1699, %v2005, 0.0
      %2216 = vadd.xlane.f32.xlu0 %v2215
      %v2217 = vpop.xlane.xlu0 %2216
      %v2218 = vsel %vm1699, %v2006, 0.0
      %2219 = vadd.xlane.f32.xlu0 %v2218
      %v2220 = vpop.xlane.xlu0 %2219
      %v2221 = vsel %vm1699, %v2007, 0.0
      %2222 = vadd.xlane.f32.xlu0 %v2221
      %v2223 = vpop.xlane.xlu0 %2222
      %v2224 = vsel %vm1699, %v2008, 0.0
      %2225 = vadd.xlane.f32.xlu0 %v2224
      %v2226 = vpop.xlane.xlu0 %2225
      %v2227 = vsel %vm1699, %v2009, 0.0
      %2228 = vadd.xlane.f32.xlu0 %v2227
      %v2229 = vpop.xlane.xlu0 %2228
      %v2230 = vsel %vm1699, %v2010, 0.0
      %2231 = vadd.xlane.f32.xlu0 %v2230
      %v2232 = vpop.xlane.xlu0 %2231
      %v2233 = vsel %vm1699, %v2011, 0.0
      %2234 = vadd.xlane.f32.xlu0 %v2233
      %v2235 = vpop.xlane.xlu0 %2234
      %v2236 = vsel %vm1699, %v2012, 0.0
      %2237 = vadd.xlane.f32.xlu0 %v2236
      %v2238 = vpop.xlane.xlu0 %2237
      %v2239 = vsel %vm1699, %v2013, 0.0
      %2240 = vadd.xlane.f32.xlu0 %v2239
      %v2241 = vpop.xlane.xlu0 %2240
      %v2242 = vsel %vm1699, %v2014, 0.0
      %2243 = vadd.xlane.f32.xlu0 %v2242
      %v2244 = vpop.xlane.xlu0 %2243
      %v2245 = vsel %vm1699, %v2015, 0.0
      %2246 = vadd.xlane.f32.xlu0 %v2245
      %v2247 = vpop.xlane.xlu0 %2246
      %v2248 = vsel %vm1699, %v2016, 0.0
      %2249 = vadd.xlane.f32.xlu0 %v2248
      %v2250 = vpop.xlane.xlu0 %2249
      %v2251 = vsel %vm1699, %v2017, 0.0
      %2252 = vadd.xlane.f32.xlu0 %v2251
      %v2253 = vpop.xlane.xlu0 %2252
      %v2254 = vsel %vm1699, %v2018, 0.0
      %2255 = vadd.xlane.f32.xlu0 %v2254
      %v2256 = vpop.xlane.xlu0 %2255
      %v2257 = vsel %vm1699, %v2019, 0.0
      %2258 = vadd.xlane.f32.xlu0 %v2257
      %v2259 = vpop.xlane.xlu0 %2258
      %v2260 = vmul.f32 %v1702, 0.020408163
      %v2261 = vmul.f32 %v1705, 0.020408163
      %v2262 = vmul.f32 %v1708, 0.020408163
      %v2263 = vmul.f32 %v1711, 0.020408163
      %v2264 = vmul.f32 %v1714, 0.020408163
      %v2265 = vmul.f32 %v1717, 0.020408163
      %v2266 = vmul.f32 %v1720, 0.020408163
      %v2267 = vmul.f32 %v1723, 0.020408163
      %v2268 = vmul.f32 %v1726, 0.020408163
      %v2269 = vmul.f32 %v1729, 0.020408163
      %v2270 = vmul.f32 %v1732, 0.020408163
      %v2271 = vmul.f32 %v1735, 0.020408163
      %v2272 = vmul.f32 %v1738, 0.020408163
      %v2273 = vmul.f32 %v1741, 0.020408163
      %v2274 = vmul.f32 %v1744, 0.020408163
      %v2275 = vmul.f32 %v1747, 0.020408163
      %v2276 = vmul.f32 %v1750, 0.020408163
      %v2277 = vmul.f32 %v1753, 0.020408163
      %v2278 = vmul.f32 %v1756, 0.020408163
      %v2279 = vmul.f32 %v1759, 0.020408163
      %v2280 = vmul.f32 %v1762, 0.020408163
      %v2281 = vmul.f32 %v1765, 0.020408163
      %v2282 = vmul.f32 %v1768, 0.020408163
      %v2283 = vmul.f32 %v1771, 0.020408163
      %v2284 = vmul.f32 %v1774, 0.020408163
      %v2285 = vmul.f32 %v1777, 0.020408163
      %v2286 = vmul.f32 %v1780, 0.020408163
      %v2287 = vmul.f32 %v1783, 0.020408163
      %v2288 = vmul.f32 %v1786, 0.020408163
      %v2289 = vmul.f32 %v1789, 0.020408163
      %v2290 = vmul.f32 %v1792, 0.020408163
      %v2291 = vmul.f32 %v1795, 0.020408163
      %v2292 = vmul.f32 %v1798, 0.020408163
      %v2293 = vmul.f32 %v1801, 0.020408163
      %v2294 = vmul.f32 %v1804, 0.020408163
      %v2295 = vmul.f32 %v1807, 0.020408163
      %v2296 = vmul.f32 %v1810, 0.020408163
      %v2297 = vmul.f32 %v1813, 0.020408163
      %v2298 = vmul.f32 %v1816, 0.020408163
      %v2299 = vmul.f32 %v1819, 0.020408163
      %v2300 = vmul.f32 %v1822, 0.020408163
      %v2301 = vmul.f32 %v1825, 0.020408163
      %v2302 = vmul.f32 %v1828, 0.020408163
      %v2303 = vmul.f32 %v1831, 0.020408163
      %v2304 = vmul.f32 %v1834, 0.020408163
      %v2305 = vmul.f32 %v1837, 0.020408163
      %v2306 = vmul.f32 %v1840, 0.020408163
      %v2307 = vmul.f32 %v1843, 0.020408163
      %v2308 = vmul.f32 %v1846, 0.020408163
      %v2309 = vmul.f32 %v1849, 0.020408163
      %v2310 = vmul.f32 %v1852, 0.020408163
      %v2311 = vmul.f32 %v1855, 0.020408163
      %v2312 = vmul.f32 %v1858, 0.020408163
      %v2313 = vmul.f32 %v1861, 0.020408163
      %v2314 = vmul.f32 %v1864, 0.020408163
      %v2315 = vmul.f32 %v1867, 0.020408163
      %v2316 = vmul.f32 %v1870, 0.020408163
      %v2317 = vmul.f32 %v1873, 0.020408163
      %v2318 = vmul.f32 %v1876, 0.020408163
      %v2319 = vmul.f32 %v1879, 0.020408163
      %v2320 = vmul.f32 %v1882, 0.020408163
      %v2321 = vmul.f32 %v1885, 0.020408163
      %v2322 = vmul.f32 %v1888, 0.020408163
      %v2323 = vmul.f32 %v1891, 0.020408163
      %v2324 = vmul.f32 %v1894, 0.020408163
      %v2325 = vmul.f32 %v1897, 0.020408163
      %v2326 = vmul.f32 %v1900, 0.020408163
      %v2327 = vmul.f32 %v1903, 0.020408163
      %v2328 = vmul.f32 %v1906, 0.020408163
      %v2329 = vmul.f32 %v1909, 0.020408163
      %v2330 = vmul.f32 %v1912, 0.020408163
      %v2331 = vmul.f32 %v1915, 0.020408163
      %v2332 = vmul.f32 %v1918, 0.020408163
      %v2333 = vmul.f32 %v1921, 0.020408163
      %v2334 = vmul.f32 %v1924, 0.020408163
      %v2335 = vmul.f32 %v1927, 0.020408163
      %v2336 = vmul.f32 %v1930, 0.020408163
      %v2337 = vmul.f32 %v1933, 0.020408163
      %v2338 = vmul.f32 %v1936, 0.020408163
      %v2339 = vmul.f32 %v1939, 0.020408163
      %v2340 = vmul.f32 %v2022, 0.020408163
      %v2341 = vmul.f32 %v2025, 0.020408163
      %v2342 = vmul.f32 %v2028, 0.020408163
      %v2343 = vmul.f32 %v2031, 0.020408163
      %v2344 = vmul.f32 %v2034, 0.020408163
      %v2345 = vmul.f32 %v2037, 0.020408163
      %v2346 = vmul.f32 %v2040, 0.020408163
      %v2347 = vmul.f32 %v2043, 0.020408163
      %v2348 = vmul.f32 %v2046, 0.020408163
      %v2349 = vmul.f32 %v2049, 0.020408163
      %v2350 = vmul.f32 %v2052, 0.020408163
      %v2351 = vmul.f32 %v2055, 0.020408163
      %v2352 = vmul.f32 %v2058, 0.020408163
      %v2353 = vmul.f32 %v2061, 0.020408163
      %v2354 = vmul.f32 %v2064, 0.020408163
      %v2355 = vmul.f32 %v2067, 0.020408163
      %v2356 = vmul.f32 %v2070, 0.020408163
      %v2357 = vmul.f32 %v2073, 0.020408163
      %v2358 = vmul.f32 %v2076, 0.020408163
      %v2359 = vmul.f32 %v2079, 0.020408163
      %v2360 = vmul.f32 %v2082, 0.020408163
      %v2361 = vmul.f32 %v2085, 0.020408163
      %v2362 = vmul.f32 %v2088, 0.020408163
      %v2363 = vmul.f32 %v2091, 0.020408163
      %v2364 = vmul.f32 %v2094, 0.020408163
      %v2365 = vmul.f32 %v2097, 0.020408163
      %v2366 = vmul.f32 %v2100, 0.020408163
      %v2367 = vmul.f32 %v2103, 0.020408163
      %v2368 = vmul.f32 %v2106, 0.020408163
      %v2369 = vmul.f32 %v2109, 0.020408163
      %v2370 = vmul.f32 %v2112, 0.020408163
      %v2371 = vmul.f32 %v2115, 0.020408163
      %v2372 = vmul.f32 %v2118, 0.020408163
      %v2373 = vmul.f32 %v2121, 0.020408163
      %v2374 = vmul.f32 %v2124, 0.020408163
      %v2375 = vmul.f32 %v2127, 0.020408163
      %v2376 = vmul.f32 %v2130, 0.020408163
      %v2377 = vmul.f32 %v2133, 0.020408163
      %v2378 = vmul.f32 %v2136, 0.020408163
      %v2379 = vmul.f32 %v2139, 0.020408163
      %v2380 = vmul.f32 %v2142, 0.020408163
      %v2381 = vmul.f32 %v2145, 0.020408163
      %v2382 = vmul.f32 %v2148, 0.020408163
      %v2383 = vmul.f32 %v2151, 0.020408163
      %v2384 = vmul.f32 %v2154, 0.020408163
      %v2385 = vmul.f32 %v2157, 0.020408163
      %v2386 = vmul.f32 %v2160, 0.020408163
      %v2387 = vmul.f32 %v2163, 0.020408163
      %v2388 = vmul.f32 %v2166, 0.020408163
      %v2389 = vmul.f32 %v2169, 0.020408163
      %v2390 = vmul.f32 %v2172, 0.020408163
      %v2391 = vmul.f32 %v2175, 0.020408163
      %v2392 = vmul.f32 %v2178, 0.020408163
      %v2393 = vmul.f32 %v2181, 0.020408163
      %v2394 = vmul.f32 %v2184, 0.020408163
      %v2395 = vmul.f32 %v2187, 0.020408163
      %v2396 = vmul.f32 %v2190, 0.020408163
      %v2397 = vmul.f32 %v2193, 0.020408163
      %v2398 = vmul.f32 %v2196, 0.020408163
      %v2399 = vmul.f32 %v2199, 0.020408163
      %v2400 = vmul.f32 %v2202, 0.020408163
      %v2401 = vmul.f32 %v2205, 0.020408163
      %v2402 = vmul.f32 %v2208, 0.020408163
      %v2403 = vmul.f32 %v2211, 0.020408163
      %v2404 = vmul.f32 %v2214, 0.020408163
      %v2405 = vmul.f32 %v2217, 0.020408163
      %v2406 = vmul.f32 %v2220, 0.020408163
      %v2407 = vmul.f32 %v2223, 0.020408163
      %v2408 = vmul.f32 %v2226, 0.020408163
      %v2409 = vmul.f32 %v2229, 0.020408163
      %v2410 = vmul.f32 %v2232, 0.020408163
      %v2411 = vmul.f32 %v2235, 0.020408163
      %v2412 = vmul.f32 %v2238, 0.020408163
      %v2413 = vmul.f32 %v2241, 0.020408163
      %v2414 = vmul.f32 %v2244, 0.020408163
      %v2415 = vmul.f32 %v2247, 0.020408163
      %v2416 = vmul.f32 %v2250, 0.020408163
      %v2417 = vmul.f32 %v2253, 0.020408163
      %v2418 = vmul.f32 %v2256, 0.020408163
      %v2419 = vmul.f32 %v2259, 0.020408163
      %v2420 = vmul.f32 %v2260, %v2260
      %v2421 = vmul.f32 %v2261, %v2261
      %v2422 = vmul.f32 %v2262, %v2262
      %v2423 = vmul.f32 %v2263, %v2263
      %v2424 = vmul.f32 %v2264, %v2264
      %v2425 = vmul.f32 %v2265, %v2265
      %v2426 = vmul.f32 %v2266, %v2266
      %v2427 = vmul.f32 %v2267, %v2267
      %v2428 = vmul.f32 %v2268, %v2268
      %v2429 = vmul.f32 %v2269, %v2269
      %v2430 = vmul.f32 %v2270, %v2270
      %v2431 = vmul.f32 %v2271, %v2271
      %v2432 = vmul.f32 %v2272, %v2272
      %v2433 = vmul.f32 %v2273, %v2273
      %v2434 = vmul.f32 %v2274, %v2274
      %v2435 = vmul.f32 %v2275, %v2275
      %v2436 = vmul.f32 %v2276, %v2276
      %v2437 = vmul.f32 %v2277, %v2277
      %v2438 = vmul.f32 %v2278, %v2278
      %v2439 = vmul.f32 %v2279, %v2279
      %v2440 = vmul.f32 %v2280, %v2280
      %v2441 = vmul.f32 %v2281, %v2281
      %v2442 = vmul.f32 %v2282, %v2282
      %v2443 = vmul.f32 %v2283, %v2283
      %v2444 = vmul.f32 %v2284, %v2284
      %v2445 = vmul.f32 %v2285, %v2285
      %v2446 = vmul.f32 %v2286, %v2286
      %v2447 = vmul.f32 %v2287, %v2287
      %v2448 = vmul.f32 %v2288, %v2288
      %v2449 = vmul.f32 %v2289, %v2289
      %v2450 = vmul.f32 %v2290, %v2290
      %v2451 = vmul.f32 %v2291, %v2291
      %v2452 = vmul.f32 %v2292, %v2292
      %v2453 = vmul.f32 %v2293, %v2293
      %v2454 = vmul.f32 %v2294, %v2294
      %v2455 = vmul.f32 %v2295, %v2295
      %v2456 = vmul.f32 %v2296, %v2296
      %v2457 = vmul.f32 %v2297, %v2297
      %v2458 = vmul.f32 %v2298, %v2298
      %v2459 = vmul.f32 %v2299, %v2299
      %v2460 = vmul.f32 %v2300, %v2300
      %v2461 = vmul.f32 %v2301, %v2301
      %v2462 = vmul.f32 %v2302, %v2302
      %v2463 = vmul.f32 %v2303, %v2303
      %v2464 = vmul.f32 %v2304, %v2304
      %v2465 = vmul.f32 %v2305, %v2305
      %v2466 = vmul.f32 %v2306, %v2306
      %v2467 = vmul.f32 %v2307, %v2307
      %v2468 = vmul.f32 %v2308, %v2308
      %v2469 = vmul.f32 %v2309, %v2309
      %v2470 = vmul.f32 %v2310, %v2310
      %v2471 = vmul.f32 %v2311, %v2311
      %v2472 = vmul.f32 %v2312, %v2312
      %v2473 = vmul.f32 %v2313, %v2313
      %v2474 = vmul.f32 %v2314, %v2314
      %v2475 = vmul.f32 %v2315, %v2315
      %v2476 = vmul.f32 %v2316, %v2316
      %v2477 = vmul.f32 %v2317, %v2317
      %v2478 = vmul.f32 %v2318, %v2318
      %v2479 = vmul.f32 %v2319, %v2319
      %v2480 = vmul.f32 %v2320, %v2320
      %v2481 = vmul.f32 %v2321, %v2321
      %v2482 = vmul.f32 %v2322, %v2322
      %v2483 = vmul.f32 %v2323, %v2323
      %v2484 = vmul.f32 %v2324, %v2324
      %v2485 = vmul.f32 %v2325, %v2325
      %v2486 = vmul.f32 %v2326, %v2326
      %v2487 = vmul.f32 %v2327, %v2327
      %v2488 = vmul.f32 %v2328, %v2328
      %v2489 = vmul.f32 %v2329, %v2329
      %v2490 = vmul.f32 %v2330, %v2330
      %v2491 = vmul.f32 %v2331, %v2331
      %v2492 = vmul.f32 %v2332, %v2332
      %v2493 = vmul.f32 %v2333, %v2333
      %v2494 = vmul.f32 %v2334, %v2334
      %v2495 = vmul.f32 %v2335, %v2335
      %v2496 = vmul.f32 %v2336, %v2336
      %v2497 = vmul.f32 %v2337, %v2337
      %v2498 = vmul.f32 %v2338, %v2338
      %v2499 = vmul.f32 %v2339, %v2339
      %v2500 = vsub.f32 %v2340, %v2420
      %v2501 = vsub.f32 %v2341, %v2421
      %v2502 = vsub.f32 %v2342, %v2422
      %v2503 = vsub.f32 %v2343, %v2423
      %v2504 = vsub.f32 %v2344, %v2424
      %v2505 = vsub.f32 %v2345, %v2425
      %v2506 = vsub.f32 %v2346, %v2426
      %v2507 = vsub.f32 %v2347, %v2427
      %v2508 = vsub.f32 %v2348, %v2428
      %v2509 = vsub.f32 %v2349, %v2429
      %v2510 = vsub.f32 %v2350, %v2430
      %v2511 = vsub.f32 %v2351, %v2431
      %v2512 = vsub.f32 %v2352, %v2432
      %v2513 = vsub.f32 %v2353, %v2433
      %v2514 = vsub.f32 %v2354, %v2434
      %v2515 = vsub.f32 %v2355, %v2435
      %v2516 = vsub.f32 %v2356, %v2436
      %v2517 = vsub.f32 %v2357, %v2437
      %v2518 = vsub.f32 %v2358, %v2438
      %v2519 = vsub.f32 %v2359, %v2439
      %v2520 = vsub.f32 %v2360, %v2440
      %v2521 = vsub.f32 %v2361, %v2441
      %v2522 = vsub.f32 %v2362, %v2442
      %v2523 = vsub.f32 %v2363, %v2443
      %v2524 = vsub.f32 %v2364, %v2444
      %v2525 = vsub.f32 %v2365, %v2445
      %v2526 = vsub.f32 %v2366, %v2446
      %v2527 = vsub.f32 %v2367, %v2447
      %v2528 = vsub.f32 %v2368, %v2448
      %v2529 = vsub.f32 %v2369, %v2449
      %v2530 = vsub.f32 %v2370, %v2450
      %v2531 = vsub.f32 %v2371, %v2451
      %v2532 = vsub.f32 %v2372, %v2452
      %v2533 = vsub.f32 %v2373, %v2453
      %v2534 = vsub.f32 %v2374, %v2454
      %v2535 = vsub.f32 %v2375, %v2455
      %v2536 = vsub.f32 %v2376, %v2456
      %v2537 = vsub.f32 %v2377, %v2457
      %v2538 = vsub.f32 %v2378, %v2458
      %v2539 = vsub.f32 %v2379, %v2459
      %v2540 = vsub.f32 %v2380, %v2460
      %v2541 = vsub.f32 %v2381, %v2461
      %v2542 = vsub.f32 %v2382, %v2462
      %v2543 = vsub.f32 %v2383, %v2463
      %v2544 = vsub.f32 %v2384, %v2464
      %v2545 = vsub.f32 %v2385, %v2465
      %v2546 = vsub.f32 %v2386, %v2466
      %v2547 = vsub.f32 %v2387, %v2467
      %v2548 = vsub.f32 %v2388, %v2468
      %v2549 = vsub.f32 %v2389, %v2469
      %v2550 = vsub.f32 %v2390, %v2470
      %v2551 = vsub.f32 %v2391, %v2471
      %v2552 = vsub.f32 %v2392, %v2472
      %v2553 = vsub.f32 %v2393, %v2473
      %v2554 = vsub.f32 %v2394, %v2474
      %v2555 = vsub.f32 %v2395, %v2475
      %v2556 = vsub.f32 %v2396, %v2476
      %v2557 = vsub.f32 %v2397, %v2477
      %v2558 = vsub.f32 %v2398, %v2478
      %v2559 = vsub.f32 %v2399, %v2479
      %v2560 = vsub.f32 %v2400, %v2480
      %v2561 = vsub.f32 %v2401, %v2481
      %v2562 = vsub.f32 %v2402, %v2482
      %v2563 = vsub.f32 %v2403, %v2483
      %v2564 = vsub.f32 %v2404, %v2484
      %v2565 = vsub.f32 %v2405, %v2485
      %v2566 = vsub.f32 %v2406, %v2486
      %v2567 = vsub.f32 %v2407, %v2487
      %v2568 = vsub.f32 %v2408, %v2488
      %v2569 = vsub.f32 %v2409, %v2489
      %v2570 = vsub.f32 %v2410, %v2490
      %v2571 = vsub.f32 %v2411, %v2491
      %v2572 = vsub.f32 %v2412, %v2492
      %v2573 = vsub.f32 %v2413, %v2493
      %v2574 = vsub.f32 %v2414, %v2494
      %v2575 = vsub.f32 %v2415, %v2495
      %v2576 = vsub.f32 %v2416, %v2496
      %v2577 = vsub.f32 %v2417, %v2497
      %v2578 = vsub.f32 %v2418, %v2498
      %v2579 = vsub.f32 %v2419, %v2499
      %v2580 = vmax.f32 %v2500, 0.0
      %v2581 = vmax.f32 %v2501, 0.0
      %v2582 = vmax.f32 %v2502, 0.0
      %v2583 = vmax.f32 %v2503, 0.0
      %v2584 = vmax.f32 %v2504, 0.0
      %v2585 = vmax.f32 %v2505, 0.0
      %v2586 = vmax.f32 %v2506, 0.0
      %v2587 = vmax.f32 %v2507, 0.0
      %v2588 = vmax.f32 %v2508, 0.0
      %v2589 = vmax.f32 %v2509, 0.0
      %v2590 = vmax.f32 %v2510, 0.0
      %v2591 = vmax.f32 %v2511, 0.0
      %v2592 = vmax.f32 %v2512, 0.0
      %v2593 = vmax.f32 %v2513, 0.0
      %v2594 = vmax.f32 %v2514, 0.0
      %v2595 = vmax.f32 %v2515, 0.0
      %v2596 = vmax.f32 %v2516, 0.0
      %v2597 = vmax.f32 %v2517, 0.0
      %v2598 = vmax.f32 %v2518, 0.0
      %v2599 = vmax.f32 %v2519, 0.0
      %v2600 = vmax.f32 %v2520, 0.0
      %v2601 = vmax.f32 %v2521, 0.0
      %v2602 = vmax.f32 %v2522, 0.0
      %v2603 = vmax.f32 %v2523, 0.0
      %v2604 = vmax.f32 %v2524, 0.0
      %v2605 = vmax.f32 %v2525, 0.0
      %v2606 = vmax.f32 %v2526, 0.0
      %v2607 = vmax.f32 %v2527, 0.0
      %v2608 = vmax.f32 %v2528, 0.0
      %v2609 = vmax.f32 %v2529, 0.0
      %v2610 = vmax.f32 %v2530, 0.0
      %v2611 = vmax.f32 %v2531, 0.0
      %v2612 = vmax.f32 %v2532, 0.0
      %v2613 = vmax.f32 %v2533, 0.0
      %v2614 = vmax.f32 %v2534, 0.0
      %v2615 = vmax.f32 %v2535, 0.0
      %v2616 = vmax.f32 %v2536, 0.0
      %v2617 = vmax.f32 %v2537, 0.0
      %v2618 = vmax.f32 %v2538, 0.0
      %v2619 = vmax.f32 %v2539, 0.0
      %v2620 = vmax.f32 %v2540, 0.0
      %v2621 = vmax.f32 %v2541, 0.0
      %v2622 = vmax.f32 %v2542, 0.0
      %v2623 = vmax.f32 %v2543, 0.0
      %v2624 = vmax.f32 %v2544, 0.0
      %v2625 = vmax.f32 %v2545, 0.0
      %v2626 = vmax.f32 %v2546, 0.0
      %v2627 = vmax.f32 %v2547, 0.0
      %v2628 = vmax.f32 %v2548, 0.0
      %v2629 = vmax.f32 %v2549, 0.0
      %v2630 = vmax.f32 %v2550, 0.0
      %v2631 = vmax.f32 %v2551, 0.0
      %v2632 = vmax.f32 %v2552, 0.0
      %v2633 = vmax.f32 %v2553, 0.0
      %v2634 = vmax.f32 %v2554, 0.0
      %v2635 = vmax.f32 %v2555, 0.0
      %v2636 = vmax.f32 %v2556, 0.0
      %v2637 = vmax.f32 %v2557, 0.0
      %v2638 = vmax.f32 %v2558, 0.0
      %v2639 = vmax.f32 %v2559, 0.0
      %v2640 = vmax.f32 %v2560, 0.0
      %v2641 = vmax.f32 %v2561, 0.0
      %v2642 = vmax.f32 %v2562, 0.0
      %v2643 = vmax.f32 %v2563, 0.0
      %v2644 = vmax.f32 %v2564, 0.0
      %v2645 = vmax.f32 %v2565, 0.0
      %v2646 = vmax.f32 %v2566, 0.0
      %v2647 = vmax.f32 %v2567, 0.0
      %v2648 = vmax.f32 %v2568, 0.0
      %v2649 = vmax.f32 %v2569, 0.0
      %v2650 = vmax.f32 %v2570, 0.0
      %v2651 = vmax.f32 %v2571, 0.0
      %v2652 = vmax.f32 %v2572, 0.0
      %v2653 = vmax.f32 %v2573, 0.0
      %v2654 = vmax.f32 %v2574, 0.0
      %v2655 = vmax.f32 %v2575, 0.0
      %v2656 = vmax.f32 %v2576, 0.0
      %v2657 = vmax.f32 %v2577, 0.0
      %v2658 = vmax.f32 %v2578, 0.0
      %v2659 = vmax.f32 %v2579, 0.0
      %v2660 = vld [vmem:[%s234] sm:$0xff]
      %v2661 = vld [vmem:[%s234 + $0x8] sm:$0xff]
      %v2662 = vld [vmem:[%s234 + $0x10] sm:$0xff]
      %v2663 = vld [vmem:[%s234 + $0x18] sm:$0xff]
      %v2664 = vld [vmem:[%s234 + $0x20] sm:$0xff]
      %v2665 = vld [vmem:[%s234 + $0x28] sm:$0xff]
      %v2666 = vld [vmem:[%s234 + $0x30] sm:$0xff]
      %v2667 = vld [vmem:[%s234 + $0x38] sm:$0xff]
      %v2668 = vld [vmem:[%s234 + $0x40] sm:$0xff]
      %v2669 = vld [vmem:[%s234 + $0x48] sm:$0xff]
      %v2670 = vld [vmem:[%s234 + $0x50] sm:$0xff]
      %v2671 = vld [vmem:[%s234 + $0x58] sm:$0xff]
      %v2672 = vld [vmem:[%s234 + $0x60] sm:$0xff]
      %v2673 = vld [vmem:[%s234 + $0x68] sm:$0xff]
      %v2674 = vld [vmem:[%s234 + $0x70] sm:$0xff]
      %v2675 = vld [vmem:[%s234 + $0x78] sm:$0xff]
      %v2676 = vld [vmem:[%s234 + $0x80] sm:$0xff]
      %v2677 = vld [vmem:[%s234 + $0x88] sm:$0xff]
      %v2678 = vld [vmem:[%s234 + $0x90] sm:$0xff]
      %v2679 = vld [vmem:[%s234 + $0x98] sm:$0xff]
      %v2680 = vld [vmem:[%s234 + $0xa0] sm:$0xff]
      %v2681 = vld [vmem:[%s234 + $0xa8] sm:$0xff]
      %v2682 = vld [vmem:[%s234 + $0xb0] sm:$0xff]
      %v2683 = vld [vmem:[%s234 + $0xb8] sm:$0xff]
      %v2684 = vld [vmem:[%s234 + $0xc0] sm:$0xff]
      %v2685 = vld [vmem:[%s234 + $0xc8] sm:$0xff]
      %v2686 = vld [vmem:[%s234 + $0xd0] sm:$0xff]
      %v2687 = vld [vmem:[%s234 + $0xd8] sm:$0xff]
      %v2688 = vld [vmem:[%s234 + $0xe0] sm:$0xff]
      %v2689 = vld [vmem:[%s234 + $0xe8] sm:$0xff]
      %v2690 = vld [vmem:[%s234 + $0xf0] sm:$0xff]
      %v2691 = vld [vmem:[%s234 + $0xf8] sm:$0xff]
      %v2692 = vld [vmem:[%s234 + $0x100] sm:$0xff]
      %v2693 = vld [vmem:[%s234 + $0x108] sm:$0xff]
      %v2694 = vld [vmem:[%s234 + $0x110] sm:$0xff]
      %v2695 = vld [vmem:[%s234 + $0x118] sm:$0xff]
      %v2696 = vld [vmem:[%s234 + $0x120] sm:$0xff]
      %v2697 = vld [vmem:[%s234 + $0x128] sm:$0xff]
      %v2698 = vld [vmem:[%s234 + $0x130] sm:$0xff]
      %v2699 = vld [vmem:[%s234 + $0x138] sm:$0xff]
      %v2700 = vld [vmem:[%s234 + $0x140] sm:$0xff]
      %v2701 = vld [vmem:[%s234 + $0x148] sm:$0xff]
      %v2702 = vld [vmem:[%s234 + $0x150] sm:$0xff]
      %v2703 = vld [vmem:[%s234 + $0x158] sm:$0xff]
      %v2704 = vld [vmem:[%s234 + $0x160] sm:$0xff]
      %v2705 = vld [vmem:[%s234 + $0x168] sm:$0xff]
      %v2706 = vld [vmem:[%s234 + $0x170] sm:$0xff]
      %v2707 = vld [vmem:[%s234 + $0x178] sm:$0xff]
      %v2708 = vld [vmem:[%s234 + $0x180] sm:$0xff]
      %v2709 = vld [vmem:[%s234 + $0x188] sm:$0xff]
      %v2710 = vld [vmem:[%s234 + $0x190] sm:$0xff]
      %v2711 = vld [vmem:[%s234 + $0x198] sm:$0xff]
      %v2712 = vld [vmem:[%s234 + $0x1a0] sm:$0xff]
      %v2713 = vld [vmem:[%s234 + $0x1a8] sm:$0xff]
      %v2714 = vld [vmem:[%s234 + $0x1b0] sm:$0xff]
      %v2715 = vld [vmem:[%s234 + $0x1b8] sm:$0xff]
      %v2716 = vld [vmem:[%s234 + $0x1c0] sm:$0xff]
      %v2717 = vld [vmem:[%s234 + $0x1c8] sm:$0xff]
      %v2718 = vld [vmem:[%s234 + $0x1d0] sm:$0xff]
      %v2719 = vld [vmem:[%s234 + $0x1d8] sm:$0xff]
      %v2720 = vld [vmem:[%s234 + $0x1e0] sm:$0xff]
      %v2721 = vld [vmem:[%s234 + $0x1e8] sm:$0xff]
      %v2722 = vld [vmem:[%s234 + $0x1f0] sm:$0xff]
      %v2723 = vld [vmem:[%s234 + $0x1f8] sm:$0xff]
      %v2724 = vld [vmem:[%s234 + $0x200] sm:$0xff]
      %v2725 = vld [vmem:[%s234 + $0x208] sm:$0xff]
      %v2726 = vld [vmem:[%s234 + $0x210] sm:$0xff]
      %v2727 = vld [vmem:[%s234 + $0x218] sm:$0xff]
      %v2728 = vld [vmem:[%s234 + $0x220] sm:$0xff]
      %v2729 = vld [vmem:[%s234 + $0x228] sm:$0xff]
      %v2730 = vld [vmem:[%s234 + $0x230] sm:$0xff]
      %v2731 = vld [vmem:[%s234 + $0x238] sm:$0xff]
      %v2732 = vld [vmem:[%s234 + $0x240] sm:$0xff]
      %v2733 = vld [vmem:[%s234 + $0x248] sm:$0xff]
      %v2734 = vld [vmem:[%s234 + $0x250] sm:$0xff]
      %v2735 = vld [vmem:[%s234 + $0x258] sm:$0xff]
      %v2736 = vld [vmem:[%s234 + $0x260] sm:$0xff]
      %v2737 = vld [vmem:[%s234 + $0x268] sm:$0xff]
      %v2738 = vld [vmem:[%s234 + $0x270] sm:$0xff]
      %v2739 = vld [vmem:[%s234 + $0x278] sm:$0xff]
      %v2740 = vadd.f32 %v2580, 1e-05
      %v2741 = vadd.f32 %v2581, 1e-05
      %v2742 = vadd.f32 %v2582, 1e-05
      %v2743 = vadd.f32 %v2583, 1e-05
      %v2744 = vadd.f32 %v2584, 1e-05
      %v2745 = vadd.f32 %v2585, 1e-05
      %v2746 = vadd.f32 %v2586, 1e-05
      %v2747 = vadd.f32 %v2587, 1e-05
      %v2748 = vadd.f32 %v2588, 1e-05
      %v2749 = vadd.f32 %v2589, 1e-05
      %v2750 = vadd.f32 %v2590, 1e-05
      %v2751 = vadd.f32 %v2591, 1e-05
      %v2752 = vadd.f32 %v2592, 1e-05
      %v2753 = vadd.f32 %v2593, 1e-05
      %v2754 = vadd.f32 %v2594, 1e-05
      %v2755 = vadd.f32 %v2595, 1e-05
      %v2756 = vadd.f32 %v2596, 1e-05
      %v2757 = vadd.f32 %v2597, 1e-05
      %v2758 = vadd.f32 %v2598, 1e-05
      %v2759 = vadd.f32 %v2599, 1e-05
      %v2760 = vadd.f32 %v2600, 1e-05
      %v2761 = vadd.f32 %v2601, 1e-05
      %v2762 = vadd.f32 %v2602, 1e-05
      %v2763 = vadd.f32 %v2603, 1e-05
      %v2764 = vadd.f32 %v2604, 1e-05
      %v2765 = vadd.f32 %v2605, 1e-05
      %v2766 = vadd.f32 %v2606, 1e-05
      %v2767 = vadd.f32 %v2607, 1e-05
      %v2768 = vadd.f32 %v2608, 1e-05
      %v2769 = vadd.f32 %v2609, 1e-05
      %v2770 = vadd.f32 %v2610, 1e-05
      %v2771 = vadd.f32 %v2611, 1e-05
      %v2772 = vadd.f32 %v2612, 1e-05
      %v2773 = vadd.f32 %v2613, 1e-05
      %v2774 = vadd.f32 %v2614, 1e-05
      %v2775 = vadd.f32 %v2615, 1e-05
      %v2776 = vadd.f32 %v2616, 1e-05
      %v2777 = vadd.f32 %v2617, 1e-05
      %v2778 = vadd.f32 %v2618, 1e-05
      %v2779 = vadd.f32 %v2619, 1e-05
      %v2780 = vadd.f32 %v2620, 1e-05
      %v2781 = vadd.f32 %v2621, 1e-05
      %v2782 = vadd.f32 %v2622, 1e-05
      %v2783 = vadd.f32 %v2623, 1e-05
      %v2784 = vadd.f32 %v2624, 1e-05
      %v2785 = vadd.f32 %v2625, 1e-05
      %v2786 = vadd.f32 %v2626, 1e-05
      %v2787 = vadd.f32 %v2627, 1e-05
      %v2788 = vadd.f32 %v2628, 1e-05
      %v2789 = vadd.f32 %v2629, 1e-05
      %v2790 = vadd.f32 %v2630, 1e-05
      %v2791 = vadd.f32 %v2631, 1e-05
      %v2792 = vadd.f32 %v2632, 1e-05
      %v2793 = vadd.f32 %v2633, 1e-05
      %v2794 = vadd.f32 %v2634, 1e-05
      %v2795 = vadd.f32 %v2635, 1e-05
      %v2796 = vadd.f32 %v2636, 1e-05
      %v2797 = vadd.f32 %v2637, 1e-05
      %v2798 = vadd.f32 %v2638, 1e-05
      %v2799 = vadd.f32 %v2639, 1e-05
      %v2800 = vadd.f32 %v2640, 1e-05
      %v2801 = vadd.f32 %v2641, 1e-05
      %v2802 = vadd.f32 %v2642, 1e-05
      %v2803 = vadd.f32 %v2643, 1e-05
      %v2804 = vadd.f32 %v2644, 1e-05
      %v2805 = vadd.f32 %v2645, 1e-05
      %v2806 = vadd.f32 %v2646, 1e-05
      %v2807 = vadd.f32 %v2647, 1e-05
      %v2808 = vadd.f32 %v2648, 1e-05
      %v2809 = vadd.f32 %v2649, 1e-05
      %v2810 = vadd.f32 %v2650, 1e-05
      %v2811 = vadd.f32 %v2651, 1e-05
      %v2812 = vadd.f32 %v2652, 1e-05
      %v2813 = vadd.f32 %v2653, 1e-05
      %v2814 = vadd.f32 %v2654, 1e-05
      %v2815 = vadd.f32 %v2655, 1e-05
      %v2816 = vadd.f32 %v2656, 1e-05
      %v2817 = vadd.f32 %v2657, 1e-05
      %v2818 = vadd.f32 %v2658, 1e-05
      %v2819 = vadd.f32 %v2659, 1e-05
      %v2820 = vrsqrt.pop %v2740
      %v2821 = vrsqrt.pop %v2741
      %v2822 = vrsqrt.pop %v2742
      %v2823 = vrsqrt.pop %v2743
      %v2824 = vrsqrt.pop %v2744
      %v2825 = vrsqrt.pop %v2745
      %v2826 = vrsqrt.pop %v2746
      %v2827 = vrsqrt.pop %v2747
      %v2828 = vrsqrt.pop %v2748
      %v2829 = vrsqrt.pop %v2749
      %v2830 = vrsqrt.pop %v2750
      %v2831 = vrsqrt.pop %v2751
      %v2832 = vrsqrt.pop %v2752
      %v2833 = vrsqrt.pop %v2753
      %v2834 = vrsqrt.pop %v2754
      %v2835 = vrsqrt.pop %v2755
      %v2836 = vrsqrt.pop %v2756
      %v2837 = vrsqrt.pop %v2757
      %v2838 = vrsqrt.pop %v2758
      %v2839 = vrsqrt.pop %v2759
      %v2840 = vrsqrt.pop %v2760
      %v2841 = vrsqrt.pop %v2761
      %v2842 = vrsqrt.pop %v2762
      %v2843 = vrsqrt.pop %v2763
      %v2844 = vrsqrt.pop %v2764
      %v2845 = vrsqrt.pop %v2765
      %v2846 = vrsqrt.pop %v2766
      %v2847 = vrsqrt.pop %v2767
      %v2848 = vrsqrt.pop %v2768
      %v2849 = vrsqrt.pop %v2769
      %v2850 = vrsqrt.pop %v2770
      %v2851 = vrsqrt.pop %v2771
      %v2852 = vrsqrt.pop %v2772
      %v2853 = vrsqrt.pop %v2773
      %v2854 = vrsqrt.pop %v2774
      %v2855 = vrsqrt.pop %v2775
      %v2856 = vrsqrt.pop %v2776
      %v2857 = vrsqrt.pop %v2777
      %v2858 = vrsqrt.pop %v2778
      %v2859 = vrsqrt.pop %v2779
      %v2860 = vrsqrt.pop %v2780
      %v2861 = vrsqrt.pop %v2781
      %v2862 = vrsqrt.pop %v2782
      %v2863 = vrsqrt.pop %v2783
      %v2864 = vrsqrt.pop %v2784
      %v2865 = vrsqrt.pop %v2785
      %v2866 = vrsqrt.pop %v2786
      %v2867 = vrsqrt.pop %v2787
      %v2868 = vrsqrt.pop %v2788
      %v2869 = vrsqrt.pop %v2789
      %v2870 = vrsqrt.pop %v2790
      %v2871 = vrsqrt.pop %v2791
      %v2872 = vrsqrt.pop %v2792
      %v2873 = vrsqrt.pop %v2793
      %v2874 = vrsqrt.pop %v2794
      %v2875 = vrsqrt.pop %v2795
      %v2876 = vrsqrt.pop %v2796
      %v2877 = vrsqrt.pop %v2797
      %v2878 = vrsqrt.pop %v2798
      %v2879 = vrsqrt.pop %v2799
      %v2880 = vrsqrt.pop %v2800
      %v2881 = vrsqrt.pop %v2801
      %v2882 = vrsqrt.pop %v2802
      %v2883 = vrsqrt.pop %v2803
      %v2884 = vrsqrt.pop %v2804
      %v2885 = vrsqrt.pop %v2805
      %v2886 = vrsqrt.pop %v2806
      %v2887 = vrsqrt.pop %v2807
      %v2888 = vrsqrt.pop %v2808
      %v2889 = vrsqrt.pop %v2809
      %v2890 = vrsqrt.pop %v2810
      %v2891 = vrsqrt.pop %v2811
      %v2892 = vrsqrt.pop %v2812
      %v2893 = vrsqrt.pop %v2813
      %v2894 = vrsqrt.pop %v2814
      %v2895 = vrsqrt.pop %v2815
      %v2896 = vrsqrt.pop %v2816
      %v2897 = vrsqrt.pop %v2817
      %v2898 = vrsqrt.pop %v2818
      %v2899 = vrsqrt.pop %v2819
      %v2900 = vmul.f32 %v2660, %v2820
      %v2901 = vmul.f32 %v2661, %v2821
      %v2902 = vmul.f32 %v2662, %v2822
      %v2903 = vmul.f32 %v2663, %v2823
      %v2904 = vmul.f32 %v2664, %v2824
      %v2905 = vmul.f32 %v2665, %v2825
      %v2906 = vmul.f32 %v2666, %v2826
      %v2907 = vmul.f32 %v2667, %v2827
      %v2908 = vmul.f32 %v2668, %v2828
      %v2909 = vmul.f32 %v2669, %v2829
      %v2910 = vmul.f32 %v2670, %v2830
      %v2911 = vmul.f32 %v2671, %v2831
      %v2912 = vmul.f32 %v2672, %v2832
      %v2913 = vmul.f32 %v2673, %v2833
      %v2914 = vmul.f32 %v2674, %v2834
      %v2915 = vmul.f32 %v2675, %v2835
      %v2916 = vmul.f32 %v2676, %v2836
      %v2917 = vmul.f32 %v2677, %v2837
      %v2918 = vmul.f32 %v2678, %v2838
      %v2919 = vmul.f32 %v2679, %v2839
      %v2920 = vmul.f32 %v2680, %v2840
      %v2921 = vmul.f32 %v2681, %v2841
      %v2922 = vmul.f32 %v2682, %v2842
      %v2923 = vmul.f32 %v2683, %v2843
      %v2924 = vmul.f32 %v2684, %v2844
      %v2925 = vmul.f32 %v2685, %v2845
      %v2926 = vmul.f32 %v2686, %v2846
      %v2927 = vmul.f32 %v2687, %v2847
      %v2928 = vmul.f32 %v2688, %v2848
      %v2929 = vmul.f32 %v2689, %v2849
      %v2930 = vmul.f32 %v2690, %v2850
      %v2931 = vmul.f32 %v2691, %v2851
      %v2932 = vmul.f32 %v2692, %v2852
      %v2933 = vmul.f32 %v2693, %v2853
      %v2934 = vmul.f32 %v2694, %v2854
      %v2935 = vmul.f32 %v2695, %v2855
      %v2936 = vmul.f32 %v2696, %v2856
      %v2937 = vmul.f32 %v2697, %v2857
      %v2938 = vmul.f32 %v2698, %v2858
      %v2939 = vmul.f32 %v2699, %v2859
      %v2940 = vmul.f32 %v2700, %v2860
      %v2941 = vmul.f32 %v2701, %v2861
      %v2942 = vmul.f32 %v2702, %v2862
      %v2943 = vmul.f32 %v2703, %v2863
      %v2944 = vmul.f32 %v2704, %v2864
      %v2945 = vmul.f32 %v2705, %v2865
      %v2946 = vmul.f32 %v2706, %v2866
      %v2947 = vmul.f32 %v2707, %v2867
      %v2948 = vmul.f32 %v2708, %v2868
      %v2949 = vmul.f32 %v2709, %v2869
      %v2950 = vmul.f32 %v2710, %v2870
      %v2951 = vmul.f32 %v2711, %v2871
      %v2952 = vmul.f32 %v2712, %v2872
      %v2953 = vmul.f32 %v2713, %v2873
      %v2954 = vmul.f32 %v2714, %v2874
      %v2955 = vmul.f32 %v2715, %v2875
      %v2956 = vmul.f32 %v2716, %v2876
      %v2957 = vmul.f32 %v2717, %v2877
      %v2958 = vmul.f32 %v2718, %v2878
      %v2959 = vmul.f32 %v2719, %v2879
      %v2960 = vmul.f32 %v2720, %v2880
      %v2961 = vmul.f32 %v2721, %v2881
      %v2962 = vmul.f32 %v2722, %v2882
      %v2963 = vmul.f32 %v2723, %v2883
      %v2964 = vmul.f32 %v2724, %v2884
      %v2965 = vmul.f32 %v2725, %v2885
      %v2966 = vmul.f32 %v2726, %v2886
      %v2967 = vmul.f32 %v2727, %v2887
      %v2968 = vmul.f32 %v2728, %v2888
      %v2969 = vmul.f32 %v2729, %v2889
      %v2970 = vmul.f32 %v2730, %v2890
      %v2971 = vmul.f32 %v2731, %v2891
      %v2972 = vmul.f32 %v2732, %v2892
      %v2973 = vmul.f32 %v2733, %v2893
      %v2974 = vmul.f32 %v2734, %v2894
      %v2975 = vmul.f32 %v2735, %v2895
      %v2976 = vmul.f32 %v2736, %v2896
      %v2977 = vmul.f32 %v2737, %v2897
      %v2978 = vmul.f32 %v2738, %v2898
      %v2979 = vmul.f32 %v2739, %v2899
      %v2980 = vld [vmem:[%s240] sm:$0xff]
      %v2981 = vld [vmem:[%s240 + $0x8] sm:$0xff]
      %v2982 = vld [vmem:[%s240 + $0x10] sm:$0xff]
      %v2983 = vld [vmem:[%s240 + $0x18] sm:$0xff]
      %v2984 = vld [vmem:[%s240 + $0x20] sm:$0xff]
      %v2985 = vld [vmem:[%s240 + $0x28] sm:$0xff]
      %v2986 = vld [vmem:[%s240 + $0x30] sm:$0xff]
      %v2987 = vld [vmem:[%s240 + $0x38] sm:$0xff]
      %v2988 = vld [vmem:[%s240 + $0x40] sm:$0xff]
      %v2989 = vld [vmem:[%s240 + $0x48] sm:$0xff]
      %v2990 = vld [vmem:[%s240 + $0x50] sm:$0xff]
      %v2991 = vld [vmem:[%s240 + $0x58] sm:$0xff]
      %v2992 = vld [vmem:[%s240 + $0x60] sm:$0xff]
      %v2993 = vld [vmem:[%s240 + $0x68] sm:$0xff]
      %v2994 = vld [vmem:[%s240 + $0x70] sm:$0xff]
      %v2995 = vld [vmem:[%s240 + $0x78] sm:$0xff]
      %v2996 = vld [vmem:[%s240 + $0x80] sm:$0xff]
      %v2997 = vld [vmem:[%s240 + $0x88] sm:$0xff]
      %v2998 = vld [vmem:[%s240 + $0x90] sm:$0xff]
      %v2999 = vld [vmem:[%s240 + $0x98] sm:$0xff]
      %v3000 = vld [vmem:[%s240 + $0xa0] sm:$0xff]
      %v3001 = vld [vmem:[%s240 + $0xa8] sm:$0xff]
      %v3002 = vld [vmem:[%s240 + $0xb0] sm:$0xff]
      %v3003 = vld [vmem:[%s240 + $0xb8] sm:$0xff]
      %v3004 = vld [vmem:[%s240 + $0xc0] sm:$0xff]
      %v3005 = vld [vmem:[%s240 + $0xc8] sm:$0xff]
      %v3006 = vld [vmem:[%s240 + $0xd0] sm:$0xff]
      %v3007 = vld [vmem:[%s240 + $0xd8] sm:$0xff]
      %v3008 = vld [vmem:[%s240 + $0xe0] sm:$0xff]
      %v3009 = vld [vmem:[%s240 + $0xe8] sm:$0xff]
      %v3010 = vld [vmem:[%s240 + $0xf0] sm:$0xff]
      %v3011 = vld [vmem:[%s240 + $0xf8] sm:$0xff]
      %v3012 = vld [vmem:[%s240 + $0x100] sm:$0xff]
      %v3013 = vld [vmem:[%s240 + $0x108] sm:$0xff]
      %v3014 = vld [vmem:[%s240 + $0x110] sm:$0xff]
      %v3015 = vld [vmem:[%s240 + $0x118] sm:$0xff]
      %v3016 = vld [vmem:[%s240 + $0x120] sm:$0xff]
      %v3017 = vld [vmem:[%s240 + $0x128] sm:$0xff]
      %v3018 = vld [vmem:[%s240 + $0x130] sm:$0xff]
      %v3019 = vld [vmem:[%s240 + $0x138] sm:$0xff]
      %v3020 = vld [vmem:[%s240 + $0x140] sm:$0xff]
      %v3021 = vld [vmem:[%s240 + $0x148] sm:$0xff]
      %v3022 = vld [vmem:[%s240 + $0x150] sm:$0xff]
      %v3023 = vld [vmem:[%s240 + $0x158] sm:$0xff]
      %v3024 = vld [vmem:[%s240 + $0x160] sm:$0xff]
      %v3025 = vld [vmem:[%s240 + $0x168] sm:$0xff]
      %v3026 = vld [vmem:[%s240 + $0x170] sm:$0xff]
      %v3027 = vld [vmem:[%s240 + $0x178] sm:$0xff]
      %v3028 = vld [vmem:[%s240 + $0x180] sm:$0xff]
      %v3029 = vld [vmem:[%s240 + $0x188] sm:$0xff]
      %v3030 = vld [vmem:[%s240 + $0x190] sm:$0xff]
      %v3031 = vld [vmem:[%s240 + $0x198] sm:$0xff]
      %v3032 = vld [vmem:[%s240 + $0x1a0] sm:$0xff]
      %v3033 = vld [vmem:[%s240 + $0x1a8] sm:$0xff]
      %v3034 = vld [vmem:[%s240 + $0x1b0] sm:$0xff]
      %v3035 = vld [vmem:[%s240 + $0x1b8] sm:$0xff]
      %v3036 = vld [vmem:[%s240 + $0x1c0] sm:$0xff]
      %v3037 = vld [vmem:[%s240 + $0x1c8] sm:$0xff]
      %v3038 = vld [vmem:[%s240 + $0x1d0] sm:$0xff]
      %v3039 = vld [vmem:[%s240 + $0x1d8] sm:$0xff]
      %v3040 = vld [vmem:[%s240 + $0x1e0] sm:$0xff]
      %v3041 = vld [vmem:[%s240 + $0x1e8] sm:$0xff]
      %v3042 = vld [vmem:[%s240 + $0x1f0] sm:$0xff]
      %v3043 = vld [vmem:[%s240 + $0x1f8] sm:$0xff]
      %v3044 = vld [vmem:[%s240 + $0x200] sm:$0xff]
      %v3045 = vld [vmem:[%s240 + $0x208] sm:$0xff]
      %v3046 = vld [vmem:[%s240 + $0x210] sm:$0xff]
      %v3047 = vld [vmem:[%s240 + $0x218] sm:$0xff]
      %v3048 = vld [vmem:[%s240 + $0x220] sm:$0xff]
      %v3049 = vld [vmem:[%s240 + $0x228] sm:$0xff]
      %v3050 = vld [vmem:[%s240 + $0x230] sm:$0xff]
      %v3051 = vld [vmem:[%s240 + $0x238] sm:$0xff]
      %v3052 = vld [vmem:[%s240 + $0x240] sm:$0xff]
      %v3053 = vld [vmem:[%s240 + $0x248] sm:$0xff]
      %v3054 = vld [vmem:[%s240 + $0x250] sm:$0xff]
      %v3055 = vld [vmem:[%s240 + $0x258] sm:$0xff]
      %v3056 = vld [vmem:[%s240 + $0x260] sm:$0xff]
      %v3057 = vld [vmem:[%s240 + $0x268] sm:$0xff]
      %v3058 = vld [vmem:[%s240 + $0x270] sm:$0xff]
      %v3059 = vld [vmem:[%s240 + $0x278] sm:$0xff]
      %v3060 = vmul.f32 %v2260, %v2900
      %v3061 = vmul.f32 %v2261, %v2901
      %v3062 = vmul.f32 %v2262, %v2902
      %v3063 = vmul.f32 %v2263, %v2903
      %v3064 = vmul.f32 %v2264, %v2904
      %v3065 = vmul.f32 %v2265, %v2905
      %v3066 = vmul.f32 %v2266, %v2906
      %v3067 = vmul.f32 %v2267, %v2907
      %v3068 = vmul.f32 %v2268, %v2908
      %v3069 = vmul.f32 %v2269, %v2909
      %v3070 = vmul.f32 %v2270, %v2910
      %v3071 = vmul.f32 %v2271, %v2911
      %v3072 = vmul.f32 %v2272, %v2912
      %v3073 = vmul.f32 %v2273, %v2913
      %v3074 = vmul.f32 %v2274, %v2914
      %v3075 = vmul.f32 %v2275, %v2915
      %v3076 = vmul.f32 %v2276, %v2916
      %v3077 = vmul.f32 %v2277, %v2917
      %v3078 = vmul.f32 %v2278, %v2918
      %v3079 = vmul.f32 %v2279, %v2919
      %v3080 = vmul.f32 %v2280, %v2920
      %v3081 = vmul.f32 %v2281, %v2921
      %v3082 = vmul.f32 %v2282, %v2922
      %v3083 = vmul.f32 %v2283, %v2923
      %v3084 = vmul.f32 %v2284, %v2924
      %v3085 = vmul.f32 %v2285, %v2925
      %v3086 = vmul.f32 %v2286, %v2926
      %v3087 = vmul.f32 %v2287, %v2927
      %v3088 = vmul.f32 %v2288, %v2928
      %v3089 = vmul.f32 %v2289, %v2929
      %v3090 = vmul.f32 %v2290, %v2930
      %v3091 = vmul.f32 %v2291, %v2931
      %v3092 = vmul.f32 %v2292, %v2932
      %v3093 = vmul.f32 %v2293, %v2933
      %v3094 = vmul.f32 %v2294, %v2934
      %v3095 = vmul.f32 %v2295, %v2935
      %v3096 = vmul.f32 %v2296, %v2936
      %v3097 = vmul.f32 %v2297, %v2937
      %v3098 = vmul.f32 %v2298, %v2938
      %v3099 = vmul.f32 %v2299, %v2939
      %v3100 = vmul.f32 %v2300, %v2940
      %v3101 = vmul.f32 %v2301, %v2941
      %v3102 = vmul.f32 %v2302, %v2942
      %v3103 = vmul.f32 %v2303, %v2943
      %v3104 = vmul.f32 %v2304, %v2944
      %v3105 = vmul.f32 %v2305, %v2945
      %v3106 = vmul.f32 %v2306, %v2946
      %v3107 = vmul.f32 %v2307, %v2947
      %v3108 = vmul.f32 %v2308, %v2948
      %v3109 = vmul.f32 %v2309, %v2949
      %v3110 = vmul.f32 %v2310, %v2950
      %v3111 = vmul.f32 %v2311, %v2951
      %v3112 = vmul.f32 %v2312, %v2952
      %v3113 = vmul.f32 %v2313, %v2953
      %v3114 = vmul.f32 %v2314, %v2954
      %v3115 = vmul.f32 %v2315, %v2955
      %v3116 = vmul.f32 %v2316, %v2956
      %v3117 = vmul.f32 %v2317, %v2957
      %v3118 = vmul.f32 %v2318, %v2958
      %v3119 = vmul.f32 %v2319, %v2959
      %v3120 = vmul.f32 %v2320, %v2960
      %v3121 = vmul.f32 %v2321, %v2961
      %v3122 = vmul.f32 %v2322, %v2962
      %v3123 = vmul.f32 %v2323, %v2963
      %v3124 = vmul.f32 %v2324, %v2964
      %v3125 = vmul.f32 %v2325, %v2965
      %v3126 = vmul.f32 %v2326, %v2966
      %v3127 = vmul.f32 %v2327, %v2967
      %v3128 = vmul.f32 %v2328, %v2968
      %v3129 = vmul.f32 %v2329, %v2969
      %v3130 = vmul.f32 %v2330, %v2970
      %v3131 = vmul.f32 %v2331, %v2971
      %v3132 = vmul.f32 %v2332, %v2972
      %v3133 = vmul.f32 %v2333, %v2973
      %v3134 = vmul.f32 %v2334, %v2974
      %v3135 = vmul.f32 %v2335, %v2975
      %v3136 = vmul.f32 %v2336, %v2976
      %v3137 = vmul.f32 %v2337, %v2977
      %v3138 = vmul.f32 %v2338, %v2978
      %v3139 = vmul.f32 %v2339, %v2979
      %v3140 = vsub.f32 %v2980, %v3060
      %v3141 = vsub.f32 %v2981, %v3061
      %v3142 = vsub.f32 %v2982, %v3062
      %v3143 = vsub.f32 %v2983, %v3063
      %v3144 = vsub.f32 %v2984, %v3064
      %v3145 = vsub.f32 %v2985, %v3065
      %v3146 = vsub.f32 %v2986, %v3066
      %v3147 = vsub.f32 %v2987, %v3067
      %v3148 = vsub.f32 %v2988, %v3068
      %v3149 = vsub.f32 %v2989, %v3069
      %v3150 = vsub.f32 %v2990, %v3070
      %v3151 = vsub.f32 %v2991, %v3071
      %v3152 = vsub.f32 %v2992, %v3072
      %v3153 = vsub.f32 %v2993, %v3073
      %v3154 = vsub.f32 %v2994, %v3074
      %v3155 = vsub.f32 %v2995, %v3075
      %v3156 = vsub.f32 %v2996, %v3076
      %v3157 = vsub.f32 %v2997, %v3077
      %v3158 = vsub.f32 %v2998, %v3078
      %v3159 = vsub.f32 %v2999, %v3079
      %v3160 = vsub.f32 %v3000, %v3080
      %v3161 = vsub.f32 %v3001, %v3081
      %v3162 = vsub.f32 %v3002, %v3082
      %v3163 = vsub.f32 %v3003, %v3083
      %v3164 = vsub.f32 %v3004, %v3084
      %v3165 = vsub.f32 %v3005, %v3085
      %v3166 = vsub.f32 %v3006, %v3086
      %v3167 = vsub.f32 %v3007, %v3087
      %v3168 = vsub.f32 %v3008, %v3088
      %v3169 = vsub.f32 %v3009, %v3089
      %v3170 = vsub.f32 %v3010, %v3090
      %v3171 = vsub.f32 %v3011, %v3091
      %v3172 = vsub.f32 %v3012, %v3092
      %v3173 = vsub.f32 %v3013, %v3093
      %v3174 = vsub.f32 %v3014, %v3094
      %v3175 = vsub.f32 %v3015, %v3095
      %v3176 = vsub.f32 %v3016, %v3096
      %v3177 = vsub.f32 %v3017, %v3097
      %v3178 = vsub.f32 %v3018, %v3098
      %v3179 = vsub.f32 %v3019, %v3099
      %v3180 = vsub.f32 %v3020, %v3100
      %v3181 = vsub.f32 %v3021, %v3101
      %v3182 = vsub.f32 %v3022, %v3102
      %v3183 = vsub.f32 %v3023, %v3103
      %v3184 = vsub.f32 %v3024, %v3104
      %v3185 = vsub.f32 %v3025, %v3105
      %v3186 = vsub.f32 %v3026, %v3106
      %v3187 = vsub.f32 %v3027, %v3107
      %v3188 = vsub.f32 %v3028, %v3108
      %v3189 = vsub.f32 %v3029, %v3109
      %v3190 = vsub.f32 %v3030, %v3110
      %v3191 = vsub.f32 %v3031, %v3111
      %v3192 = vsub.f32 %v3032, %v3112
      %v3193 = vsub.f32 %v3033, %v3113
      %v3194 = vsub.f32 %v3034, %v3114
      %v3195 = vsub.f32 %v3035, %v3115
      %v3196 = vsub.f32 %v3036, %v3116
      %v3197 = vsub.f32 %v3037, %v3117
      %v3198 = vsub.f32 %v3038, %v3118
      %v3199 = vsub.f32 %v3039, %v3119
      %v3200 = vsub.f32 %v3040, %v3120
      %v3201 = vsub.f32 %v3041, %v3121
      %v3202 = vsub.f32 %v3042, %v3122
      %v3203 = vsub.f32 %v3043, %v3123
      %v3204 = vsub.f32 %v3044, %v3124
      %v3205 = vsub.f32 %v3045, %v3125
      %v3206 = vsub.f32 %v3046, %v3126
      %v3207 = vsub.f32 %v3047, %v3127
      %v3208 = vsub.f32 %v3048, %v3128
      %v3209 = vsub.f32 %v3049, %v3129
      %v3210 = vsub.f32 %v3050, %v3130
      %v3211 = vsub.f32 %v3051, %v3131
      %v3212 = vsub.f32 %v3052, %v3132
      %v3213 = vsub.f32 %v3053, %v3133
      %v3214 = vsub.f32 %v3054, %v3134
      %v3215 = vsub.f32 %v3055, %v3135
      %v3216 = vsub.f32 %v3056, %v3136
      %v3217 = vsub.f32 %v3057, %v3137
      %v3218 = vsub.f32 %v3058, %v3138
      %v3219 = vsub.f32 %v3059, %v3139
      %3221 = vset.pattern.permute.xlu0 0
      %3222 = vperm.xlu0 %3221, %v2900
      %v3223 = vpop.permute.xlu0 %3222
      %3226 = vset.pattern.permute.xlu0 0
      %3227 = vperm.xlu0 %3226, %v2901
      %v3228 = vpop.permute.xlu0 %3227
      %3231 = vset.pattern.permute.xlu0 0
      %3232 = vperm.xlu0 %3231, %v2902
      %v3233 = vpop.permute.xlu0 %3232
      %3236 = vset.pattern.permute.xlu0 0
      %3237 = vperm.xlu0 %3236, %v2903
      %v3238 = vpop.permute.xlu0 %3237
      %3241 = vset.pattern.permute.xlu0 0
      %3242 = vperm.xlu0 %3241, %v2904
      %v3243 = vpop.permute.xlu0 %3242
      %3246 = vset.pattern.permute.xlu0 0
      %3247 = vperm.xlu0 %3246, %v2905
      %v3248 = vpop.permute.xlu0 %3247
      %3251 = vset.pattern.permute.xlu0 0
      %3252 = vperm.xlu0 %3251, %v2906
      %v3253 = vpop.permute.xlu0 %3252
      %3256 = vset.pattern.permute.xlu0 0
      %3257 = vperm.xlu0 %3256, %v2907
      %v3258 = vpop.permute.xlu0 %3257
      %3261 = vset.pattern.permute.xlu0 0
      %3262 = vperm.xlu0 %3261, %v2908
      %v3263 = vpop.permute.xlu0 %3262
      %3266 = vset.pattern.permute.xlu0 0
      %3267 = vperm.xlu0 %3266, %v2909
      %v3268 = vpop.permute.xlu0 %3267
      %3271 = vset.pattern.permute.xlu0 0
      %3272 = vperm.xlu0 %3271, %v2910
      %v3273 = vpop.permute.xlu0 %3272
      %3276 = vset.pattern.permute.xlu0 0
      %3277 = vperm.xlu0 %3276, %v2911
      %v3278 = vpop.permute.xlu0 %3277
      %3281 = vset.pattern.permute.xlu0 0
      %3282 = vperm.xlu0 %3281, %v2912
      %v3283 = vpop.permute.xlu0 %3282
      %3286 = vset.pattern.permute.xlu0 0
      %3287 = vperm.xlu0 %3286, %v2913
      %v3288 = vpop.permute.xlu0 %3287
      %3291 = vset.pattern.permute.xlu0 0
      %3292 = vperm.xlu0 %3291, %v2914
      %v3293 = vpop.permute.xlu0 %3292
      %3296 = vset.pattern.permute.xlu0 0
      %3297 = vperm.xlu0 %3296, %v2915
      %v3298 = vpop.permute.xlu0 %3297
      %3301 = vset.pattern.permute.xlu0 0
      %3302 = vperm.xlu0 %3301, %v2916
      %v3303 = vpop.permute.xlu0 %3302
      %3306 = vset.pattern.permute.xlu0 0
      %3307 = vperm.xlu0 %3306, %v2917
      %v3308 = vpop.permute.xlu0 %3307
      %3311 = vset.pattern.permute.xlu0 0
      %3312 = vperm.xlu0 %3311, %v2918
      %v3313 = vpop.permute.xlu0 %3312
      %3316 = vset.pattern.permute.xlu0 0
      %3317 = vperm.xlu0 %3316, %v2919
      %v3318 = vpop.permute.xlu0 %3317
      %3321 = vset.pattern.permute.xlu0 0
      %3322 = vperm.xlu0 %3321, %v2920
      %v3323 = vpop.permute.xlu0 %3322
      %3326 = vset.pattern.permute.xlu0 0
      %3327 = vperm.xlu0 %3326, %v2921
      %v3328 = vpop.permute.xlu0 %3327
      %3331 = vset.pattern.permute.xlu0 0
      %3332 = vperm.xlu0 %3331, %v2922
      %v3333 = vpop.permute.xlu0 %3332
      %3336 = vset.pattern.permute.xlu0 0
      %3337 = vperm.xlu0 %3336, %v2923
      %v3338 = vpop.permute.xlu0 %3337
      %3341 = vset.pattern.permute.xlu0 0
      %3342 = vperm.xlu0 %3341, %v2924
      %v3343 = vpop.permute.xlu0 %3342
      %3346 = vset.pattern.permute.xlu0 0
      %3347 = vperm.xlu0 %3346, %v2925
      %v3348 = vpop.permute.xlu0 %3347
      %3351 = vset.pattern.permute.xlu0 0
      %3352 = vperm.xlu0 %3351, %v2926
      %v3353 = vpop.permute.xlu0 %3352
      %3356 = vset.pattern.permute.xlu0 0
      %3357 = vperm.xlu0 %3356, %v2927
      %v3358 = vpop.permute.xlu0 %3357
      %3361 = vset.pattern.permute.xlu0 0
      %3362 = vperm.xlu0 %3361, %v2928
      %v3363 = vpop.permute.xlu0 %3362
      %3366 = vset.pattern.permute.xlu0 0
      %3367 = vperm.xlu0 %3366, %v2929
      %v3368 = vpop.permute.xlu0 %3367
      %3371 = vset.pattern.permute.xlu0 0
      %3372 = vperm.xlu0 %3371, %v2930
      %v3373 = vpop.permute.xlu0 %3372
      %3376 = vset.pattern.permute.xlu0 0
      %3377 = vperm.xlu0 %3376, %v2931
      %v3378 = vpop.permute.xlu0 %3377
      %3381 = vset.pattern.permute.xlu0 0
      %3382 = vperm.xlu0 %3381, %v2932
      %v3383 = vpop.permute.xlu0 %3382
      %3386 = vset.pattern.permute.xlu0 0
      %3387 = vperm.xlu0 %3386, %v2933
      %v3388 = vpop.permute.xlu0 %3387
      %3391 = vset.pattern.permute.xlu0 0
      %3392 = vperm.xlu0 %3391, %v2934
      %v3393 = vpop.permute.xlu0 %3392
      %3396 = vset.pattern.permute.xlu0 0
      %3397 = vperm.xlu0 %3396, %v2935
      %v3398 = vpop.permute.xlu0 %3397
      %3401 = vset.pattern.permute.xlu0 0
      %3402 = vperm.xlu0 %3401, %v2936
      %v3403 = vpop.permute.xlu0 %3402
      %3406 = vset.pattern.permute.xlu0 0
      %3407 = vperm.xlu0 %3406, %v2937
      %v3408 = vpop.permute.xlu0 %3407
      %3411 = vset.pattern.permute.xlu0 0
      %3412 = vperm.xlu0 %3411, %v2938
      %v3413 = vpop.permute.xlu0 %3412
      %3416 = vset.pattern.permute.xlu0 0
      %3417 = vperm.xlu0 %3416, %v2939
      %v3418 = vpop.permute.xlu0 %3417
      %3421 = vset.pattern.permute.xlu0 0
      %3422 = vperm.xlu0 %3421, %v2940
      %v3423 = vpop.permute.xlu0 %3422
      %3426 = vset.pattern.permute.xlu0 0
      %3427 = vperm.xlu0 %3426, %v2941
      %v3428 = vpop.permute.xlu0 %3427
      %3431 = vset.pattern.permute.xlu0 0
      %3432 = vperm.xlu0 %3431, %v2942
      %v3433 = vpop.permute.xlu0 %3432
      %3436 = vset.pattern.permute.xlu0 0
      %3437 = vperm.xlu0 %3436, %v2943
      %v3438 = vpop.permute.xlu0 %3437
      %3441 = vset.pattern.permute.xlu0 0
      %3442 = vperm.xlu0 %3441, %v2944
      %v3443 = vpop.permute.xlu0 %3442
      %3446 = vset.pattern.permute.xlu0 0
      %3447 = vperm.xlu0 %3446, %v2945
      %v3448 = vpop.permute.xlu0 %3447
      %3451 = vset.pattern.permute.xlu0 0
      %3452 = vperm.xlu0 %3451, %v2946
      %v3453 = vpop.permute.xlu0 %3452
      %3456 = vset.pattern.permute.xlu0 0
      %3457 = vperm.xlu0 %3456, %v2947
      %v3458 = vpop.permute.xlu0 %3457
      %3461 = vset.pattern.permute.xlu0 0
      %3462 = vperm.xlu0 %3461, %v2948
      %v3463 = vpop.permute.xlu0 %3462
      %3466 = vset.pattern.permute.xlu0 0
      %3467 = vperm.xlu0 %3466, %v2949
      %v3468 = vpop.permute.xlu0 %3467
      %3471 = vset.pattern.permute.xlu0 0
      %3472 = vperm.xlu0 %3471, %v2950
      %v3473 = vpop.permute.xlu0 %3472
      %3476 = vset.pattern.permute.xlu0 0
      %3477 = vperm.xlu0 %3476, %v2951
      %v3478 = vpop.permute.xlu0 %3477
      %3481 = vset.pattern.permute.xlu0 0
      %3482 = vperm.xlu0 %3481, %v2952
      %v3483 = vpop.permute.xlu0 %3482
      %3486 = vset.pattern.permute.xlu0 0
      %3487 = vperm.xlu0 %3486, %v2953
      %v3488 = vpop.permute.xlu0 %3487
      %3491 = vset.pattern.permute.xlu0 0
      %3492 = vperm.xlu0 %3491, %v2954
      %v3493 = vpop.permute.xlu0 %3492
      %3496 = vset.pattern.permute.xlu0 0
      %3497 = vperm.xlu0 %3496, %v2955
      %v3498 = vpop.permute.xlu0 %3497
      %3501 = vset.pattern.permute.xlu0 0
      %3502 = vperm.xlu0 %3501, %v2956
      %v3503 = vpop.permute.xlu0 %3502
      %3506 = vset.pattern.permute.xlu0 0
      %3507 = vperm.xlu0 %3506, %v2957
      %v3508 = vpop.permute.xlu0 %3507
      %3511 = vset.pattern.permute.xlu0 0
      %3512 = vperm.xlu0 %3511, %v2958
      %v3513 = vpop.permute.xlu0 %3512
      %3516 = vset.pattern.permute.xlu0 0
      %3517 = vperm.xlu0 %3516, %v2959
      %v3518 = vpop.permute.xlu0 %3517
      %3521 = vset.pattern.permute.xlu0 0
      %3522 = vperm.xlu0 %3521, %v2960
      %v3523 = vpop.permute.xlu0 %3522
      %3526 = vset.pattern.permute.xlu0 0
      %3527 = vperm.xlu0 %3526, %v2961
      %v3528 = vpop.permute.xlu0 %3527
      %3531 = vset.pattern.permute.xlu0 0
      %3532 = vperm.xlu0 %3531, %v2962
      %v3533 = vpop.permute.xlu0 %3532
      %3536 = vset.pattern.permute.xlu0 0
      %3537 = vperm.xlu0 %3536, %v2963
      %v3538 = vpop.permute.xlu0 %3537
      %3541 = vset.pattern.permute.xlu0 0
      %3542 = vperm.xlu0 %3541, %v2964
      %v3543 = vpop.permute.xlu0 %3542
      %3546 = vset.pattern.permute.xlu0 0
      %3547 = vperm.xlu0 %3546, %v2965
      %v3548 = vpop.permute.xlu0 %3547
      %3551 = vset.pattern.permute.xlu0 0
      %3552 = vperm.xlu0 %3551, %v2966
      %v3553 = vpop.permute.xlu0 %3552
      %3556 = vset.pattern.permute.xlu0 0
      %3557 = vperm.xlu0 %3556, %v2967
      %v3558 = vpop.permute.xlu0 %3557
      %3561 = vset.pattern.permute.xlu0 0
      %3562 = vperm.xlu0 %3561, %v2968
      %v3563 = vpop.permute.xlu0 %3562
      %3566 = vset.pattern.permute.xlu0 0
      %3567 = vperm.xlu0 %3566, %v2969
      %v3568 = vpop.permute.xlu0 %3567
      %3571 = vset.pattern.permute.xlu0 0
      %3572 = vperm.xlu0 %3571, %v2970
      %v3573 = vpop.permute.xlu0 %3572
      %3576 = vset.pattern.permute.xlu0 0
      %3577 = vperm.xlu0 %3576, %v2971
      %v3578 = vpop.permute.xlu0 %3577
      %3581 = vset.pattern.permute.xlu0 0
      %3582 = vperm.xlu0 %3581, %v2972
      %v3583 = vpop.permute.xlu0 %3582
      %3586 = vset.pattern.permute.xlu0 0
      %3587 = vperm.xlu0 %3586, %v2973
      %v3588 = vpop.permute.xlu0 %3587
      %3591 = vset.pattern.permute.xlu0 0
      %3592 = vperm.xlu0 %3591, %v2974
      %v3593 = vpop.permute.xlu0 %3592
      %3596 = vset.pattern.permute.xlu0 0
      %3597 = vperm.xlu0 %3596, %v2975
      %v3598 = vpop.permute.xlu0 %3597
      %3601 = vset.pattern.permute.xlu0 0
      %3602 = vperm.xlu0 %3601, %v2976
      %v3603 = vpop.permute.xlu0 %3602
      %3606 = vset.pattern.permute.xlu0 0
      %3607 = vperm.xlu0 %3606, %v2977
      %v3608 = vpop.permute.xlu0 %3607
      %3611 = vset.pattern.permute.xlu0 0
      %3612 = vperm.xlu0 %3611, %v2978
      %v3613 = vpop.permute.xlu0 %3612
      %3616 = vset.pattern.permute.xlu0 0
      %3617 = vperm.xlu0 %3616, %v2979
      %v3618 = vpop.permute.xlu0 %3617
      %v3620 = vmul.f32 %v1301, %v3223
      %v3621 = vmul.f32 %v1306, %v3228
      %v3622 = vmul.f32 %v1311, %v3233
      %v3623 = vmul.f32 %v1316, %v3238
      %v3624 = vmul.f32 %v1321, %v3243
      %v3625 = vmul.f32 %v1326, %v3248
      %v3626 = vmul.f32 %v1331, %v3253
      %v3627 = vmul.f32 %v1336, %v3258
      %v3628 = vmul.f32 %v1341, %v3263
      %v3629 = vmul.f32 %v1346, %v3268
      %v3630 = vmul.f32 %v1351, %v3273
      %v3631 = vmul.f32 %v1356, %v3278
      %v3632 = vmul.f32 %v1361, %v3283
      %v3633 = vmul.f32 %v1366, %v3288
      %v3634 = vmul.f32 %v1371, %v3293
      %v3635 = vmul.f32 %v1376, %v3298
      %v3636 = vmul.f32 %v1381, %v3303
      %v3637 = vmul.f32 %v1386, %v3308
      %v3638 = vmul.f32 %v1391, %v3313
      %v3639 = vmul.f32 %v1396, %v3318
      %v3640 = vmul.f32 %v1401, %v3323
      %v3641 = vmul.f32 %v1406, %v3328
      %v3642 = vmul.f32 %v1411, %v3333
      %v3643 = vmul.f32 %v1416, %v3338
      %v3644 = vmul.f32 %v1421, %v3343
      %v3645 = vmul.f32 %v1426, %v3348
      %v3646 = vmul.f32 %v1431, %v3353
      %v3647 = vmul.f32 %v1436, %v3358
      %v3648 = vmul.f32 %v1441, %v3363
      %v3649 = vmul.f32 %v1446, %v3368
      %v3650 = vmul.f32 %v1451, %v3373
      %v3651 = vmul.f32 %v1456, %v3378
      %v3652 = vmul.f32 %v1461, %v3383
      %v3653 = vmul.f32 %v1466, %v3388
      %v3654 = vmul.f32 %v1471, %v3393
      %v3655 = vmul.f32 %v1476, %v3398
      %v3656 = vmul.f32 %v1481, %v3403
      %v3657 = vmul.f32 %v1486, %v3408
      %v3658 = vmul.f32 %v1491, %v3413
      %v3659 = vmul.f32 %v1496, %v3418
      %v3660 = vmul.f32 %v1501, %v3423
      %v3661 = vmul.f32 %v1506, %v3428
      %v3662 = vmul.f32 %v1511, %v3433
      %v3663 = vmul.f32 %v1516, %v3438
      %v3664 = vmul.f32 %v1521, %v3443
      %v3665 = vmul.f32 %v1526, %v3448
      %v3666 = vmul.f32 %v1531, %v3453
      %v3667 = vmul.f32 %v1536, %v3458
      %v3668 = vmul.f32 %v1541, %v3463
      %v3669 = vmul.f32 %v1546, %v3468
      %v3670 = vmul.f32 %v1551, %v3473
      %v3671 = vmul.f32 %v1556, %v3478
      %v3672 = vmul.f32 %v1561, %v3483
      %v3673 = vmul.f32 %v1566, %v3488
      %v3674 = vmul.f32 %v1571, %v3493
      %v3675 = vmul.f32 %v1576, %v3498
      %v3676 = vmul.f32 %v1581, %v3503
      %v3677 = vmul.f32 %v1586, %v3508
      %v3678 = vmul.f32 %v1591, %v3513
      %v3679 = vmul.f32 %v1596, %v3518
      %v3680 = vmul.f32 %v1601, %v3523
      %v3681 = vmul.f32 %v1606, %v3528
      %v3682 = vmul.f32 %v1611, %v3533
      %v3683 = vmul.f32 %v1616, %v3538
      %v3684 = vmul.f32 %v1621, %v3543
      %v3685 = vmul.f32 %v1626, %v3548
      %v3686 = vmul.f32 %v1631, %v3553
      %v3687 = vmul.f32 %v1636, %v3558
      %v3688 = vmul.f32 %v1641, %v3563
      %v3689 = vmul.f32 %v1646, %v3568
      %v3690 = vmul.f32 %v1651, %v3573
      %v3691 = vmul.f32 %v1656, %v3578
      %v3692 = vmul.f32 %v1661, %v3583
      %v3693 = vmul.f32 %v1666, %v3588
      %v3694 = vmul.f32 %v1671, %v3593
      %v3695 = vmul.f32 %v1676, %v3598
      %v3696 = vmul.f32 %v1681, %v3603
      %v3697 = vmul.f32 %v1686, %v3608
      %v3698 = vmul.f32 %v1691, %v3613
      %v3699 = vmul.f32 %v1696, %v3618
      %3701 = vset.pattern.permute.xlu0 0
      %3702 = vperm.xlu0 %3701, %v3140
      %v3703 = vpop.permute.xlu0 %3702
      %3706 = vset.pattern.permute.xlu0 0
      %3707 = vperm.xlu0 %3706, %v3141
      %v3708 = vpop.permute.xlu0 %3707
      %3711 = vset.pattern.permute.xlu0 0
      %3712 = vperm.xlu0 %3711, %v3142
      %v3713 = vpop.permute.xlu0 %3712
      %3716 = vset.pattern.permute.xlu0 0
      %3717 = vperm.xlu0 %3716, %v3143
      %v3718 = vpop.permute.xlu0 %3717
      %3721 = vset.pattern.permute.xlu0 0
      %3722 = vperm.xlu0 %3721, %v3144
      %v3723 = vpop.permute.xlu0 %3722
      %3726 = vset.pattern.permute.xlu0 0
      %3727 = vperm.xlu0 %3726, %v3145
      %v3728 = vpop.permute.xlu0 %3727
      %3731 = vset.pattern.permute.xlu0 0
      %3732 = vperm.xlu0 %3731, %v3146
      %v3733 = vpop.permute.xlu0 %3732
      %3736 = vset.pattern.permute.xlu0 0
      %3737 = vperm.xlu0 %3736, %v3147
      %v3738 = vpop.permute.xlu0 %3737
      %3741 = vset.pattern.permute.xlu0 0
      %3742 = vperm.xlu0 %3741, %v3148
      %v3743 = vpop.permute.xlu0 %3742
      %3746 = vset.pattern.permute.xlu0 0
      %3747 = vperm.xlu0 %3746, %v3149
      %v3748 = vpop.permute.xlu0 %3747
      %3751 = vset.pattern.permute.xlu0 0
      %3752 = vperm.xlu0 %3751, %v3150
      %v3753 = vpop.permute.xlu0 %3752
      %3756 = vset.pattern.permute.xlu0 0
      %3757 = vperm.xlu0 %3756, %v3151
      %v3758 = vpop.permute.xlu0 %3757
      %3761 = vset.pattern.permute.xlu0 0
      %3762 = vperm.xlu0 %3761, %v3152
      %v3763 = vpop.permute.xlu0 %3762
      %3766 = vset.pattern.permute.xlu0 0
      %3767 = vperm.xlu0 %3766, %v3153
      %v3768 = vpop.permute.xlu0 %3767
      %3771 = vset.pattern.permute.xlu0 0
      %3772 = vperm.xlu0 %3771, %v3154
      %v3773 = vpop.permute.xlu0 %3772
      %3776 = vset.pattern.permute.xlu0 0
      %3777 = vperm.xlu0 %3776, %v3155
      %v3778 = vpop.permute.xlu0 %3777
      %3781 = vset.pattern.permute.xlu0 0
      %3782 = vperm.xlu0 %3781, %v3156
      %v3783 = vpop.permute.xlu0 %3782
      %3786 = vset.pattern.permute.xlu0 0
      %3787 = vperm.xlu0 %3786, %v3157
      %v3788 = vpop.permute.xlu0 %3787
      %3791 = vset.pattern.permute.xlu0 0
      %3792 = vperm.xlu0 %3791, %v3158
      %v3793 = vpop.permute.xlu0 %3792
      %3796 = vset.pattern.permute.xlu0 0
      %3797 = vperm.xlu0 %3796, %v3159
      %v3798 = vpop.permute.xlu0 %3797
      %3801 = vset.pattern.permute.xlu0 0
      %3802 = vperm.xlu0 %3801, %v3160
      %v3803 = vpop.permute.xlu0 %3802
      %3806 = vset.pattern.permute.xlu0 0
      %3807 = vperm.xlu0 %3806, %v3161
      %v3808 = vpop.permute.xlu0 %3807
      %3811 = vset.pattern.permute.xlu0 0
      %3812 = vperm.xlu0 %3811, %v3162
      %v3813 = vpop.permute.xlu0 %3812
      %3816 = vset.pattern.permute.xlu0 0
      %3817 = vperm.xlu0 %3816, %v3163
      %v3818 = vpop.permute.xlu0 %3817
      %3821 = vset.pattern.permute.xlu0 0
      %3822 = vperm.xlu0 %3821, %v3164
      %v3823 = vpop.permute.xlu0 %3822
      %3826 = vset.pattern.permute.xlu0 0
      %3827 = vperm.xlu0 %3826, %v3165
      %v3828 = vpop.permute.xlu0 %3827
      %3831 = vset.pattern.permute.xlu0 0
      %3832 = vperm.xlu0 %3831, %v3166
      %v3833 = vpop.permute.xlu0 %3832
      %3836 = vset.pattern.permute.xlu0 0
      %3837 = vperm.xlu0 %3836, %v3167
      %v3838 = vpop.permute.xlu0 %3837
      %3841 = vset.pattern.permute.xlu0 0
      %3842 = vperm.xlu0 %3841, %v3168
      %v3843 = vpop.permute.xlu0 %3842
      %3846 = vset.pattern.permute.xlu0 0
      %3847 = vperm.xlu0 %3846, %v3169
      %v3848 = vpop.permute.xlu0 %3847
      %3851 = vset.pattern.permute.xlu0 0
      %3852 = vperm.xlu0 %3851, %v3170
      %v3853 = vpop.permute.xlu0 %3852
      %3856 = vset.pattern.permute.xlu0 0
      %3857 = vperm.xlu0 %3856, %v3171
      %v3858 = vpop.permute.xlu0 %3857
      %3861 = vset.pattern.permute.xlu0 0
      %3862 = vperm.xlu0 %3861, %v3172
      %v3863 = vpop.permute.xlu0 %3862
      %3866 = vset.pattern.permute.xlu0 0
      %3867 = vperm.xlu0 %3866, %v3173
      %v3868 = vpop.permute.xlu0 %3867
      %3871 = vset.pattern.permute.xlu0 0
      %3872 = vperm.xlu0 %3871, %v3174
      %v3873 = vpop.permute.xlu0 %3872
      %3876 = vset.pattern.permute.xlu0 0
      %3877 = vperm.xlu0 %3876, %v3175
      %v3878 = vpop.permute.xlu0 %3877
      %3881 = vset.pattern.permute.xlu0 0
      %3882 = vperm.xlu0 %3881, %v3176
      %v3883 = vpop.permute.xlu0 %3882
      %3886 = vset.pattern.permute.xlu0 0
      %3887 = vperm.xlu0 %3886, %v3177
      %v3888 = vpop.permute.xlu0 %3887
      %3891 = vset.pattern.permute.xlu0 0
      %3892 = vperm.xlu0 %3891, %v3178
      %v3893 = vpop.permute.xlu0 %3892
      %3896 = vset.pattern.permute.xlu0 0
      %3897 = vperm.xlu0 %3896, %v3179
      %v3898 = vpop.permute.xlu0 %3897
      %3901 = vset.pattern.permute.xlu0 0
      %3902 = vperm.xlu0 %3901, %v3180
      %v3903 = vpop.permute.xlu0 %3902
      %3906 = vset.pattern.permute.xlu0 0
      %3907 = vperm.xlu0 %3906, %v3181
      %v3908 = vpop.permute.xlu0 %3907
      %3911 = vset.pattern.permute.xlu0 0
      %3912 = vperm.xlu0 %3911, %v3182
      %v3913 = vpop.permute.xlu0 %3912
      %3916 = vset.pattern.permute.xlu0 0
      %3917 = vperm.xlu0 %3916, %v3183
      %v3918 = vpop.permute.xlu0 %3917
      %3921 = vset.pattern.permute.xlu0 0
      %3922 = vperm.xlu0 %3921, %v3184
      %v3923 = vpop.permute.xlu0 %3922
      %3926 = vset.pattern.permute.xlu0 0
      %3927 = vperm.xlu0 %3926, %v3185
      %v3928 = vpop.permute.xlu0 %3927
      %3931 = vset.pattern.permute.xlu0 0
      %3932 = vperm.xlu0 %3931, %v3186
      %v3933 = vpop.permute.xlu0 %3932
      %3936 = vset.pattern.permute.xlu0 0
      %3937 = vperm.xlu0 %3936, %v3187
      %v3938 = vpop.permute.xlu0 %3937
      %3941 = vset.pattern.permute.xlu0 0
      %3942 = vperm.xlu0 %3941, %v3188
      %v3943 = vpop.permute.xlu0 %3942
      %3946 = vset.pattern.permute.xlu0 0
      %3947 = vperm.xlu0 %3946, %v3189
      %v3948 = vpop.permute.xlu0 %3947
      %3951 = vset.pattern.permute.xlu0 0
      %3952 = vperm.xlu0 %3951, %v3190
      %v3953 = vpop.permute.xlu0 %3952
      %3956 = vset.pattern.permute.xlu0 0
      %3957 = vperm.xlu0 %3956, %v3191
      %v3958 = vpop.permute.xlu0 %3957
      %3961 = vset.pattern.permute.xlu0 0
      %3962 = vperm.xlu0 %3961, %v3192
      %v3963 = vpop.permute.xlu0 %3962
      %3966 = vset.pattern.permute.xlu0 0
      %3967 = vperm.xlu0 %3966, %v3193
      %v3968 = vpop.permute.xlu0 %3967
      %3971 = vset.pattern.permute.xlu0 0
      %3972 = vperm.xlu0 %3971, %v3194
      %v3973 = vpop.permute.xlu0 %3972
      %3976 = vset.pattern.permute.xlu0 0
      %3977 = vperm.xlu0 %3976, %v3195
      %v3978 = vpop.permute.xlu0 %3977
      %3981 = vset.pattern.permute.xlu0 0
      %3982 = vperm.xlu0 %3981, %v3196
      %v3983 = vpop.permute.xlu0 %3982
      %3986 = vset.pattern.permute.xlu0 0
      %3987 = vperm.xlu0 %3986, %v3197
      %v3988 = vpop.permute.xlu0 %3987
      %3991 = vset.pattern.permute.xlu0 0
      %3992 = vperm.xlu0 %3991, %v3198
      %v3993 = vpop.permute.xlu0 %3992
      %3996 = vset.pattern.permute.xlu0 0
      %3997 = vperm.xlu0 %3996, %v3199
      %v3998 = vpop.permute.xlu0 %3997
      %4001 = vset.pattern.permute.xlu0 0
      %4002 = vperm.xlu0 %4001, %v3200
      %v4003 = vpop.permute.xlu0 %4002
      %4006 = vset.pattern.permute.xlu0 0
      %4007 = vperm.xlu0 %4006, %v3201
      %v4008 = vpop.permute.xlu0 %4007
      %4011 = vset.pattern.permute.xlu0 0
      %4012 = vperm.xlu0 %4011, %v3202
      %v4013 = vpop.permute.xlu0 %4012
      %4016 = vset.pattern.permute.xlu0 0
      %4017 = vperm.xlu0 %4016, %v3203
      %v4018 = vpop.permute.xlu0 %4017
      %4021 = vset.pattern.permute.xlu0 0
      %4022 = vperm.xlu0 %4021, %v3204
      %v4023 = vpop.permute.xlu0 %4022
      %4026 = vset.pattern.permute.xlu0 0
      %4027 = vperm.xlu0 %4026, %v3205
      %v4028 = vpop.permute.xlu0 %4027
      %4031 = vset.pattern.permute.xlu0 0
      %4032 = vperm.xlu0 %4031, %v3206
      %v4033 = vpop.permute.xlu0 %4032
      %4036 = vset.pattern.permute.xlu0 0
      %4037 = vperm.xlu0 %4036, %v3207
      %v4038 = vpop.permute.xlu0 %4037
      %4041 = vset.pattern.permute.xlu0 0
      %4042 = vperm.xlu0 %4041, %v3208
      %v4043 = vpop.permute.xlu0 %4042
      %4046 = vset.pattern.permute.xlu0 0
      %4047 = vperm.xlu0 %4046, %v3209
      %v4048 = vpop.permute.xlu0 %4047
      %4051 = vset.pattern.permute.xlu0 0
      %4052 = vperm.xlu0 %4051, %v3210
      %v4053 = vpop.permute.xlu0 %4052
      %4056 = vset.pattern.permute.xlu0 0
      %4057 = vperm.xlu0 %4056, %v3211
      %v4058 = vpop.permute.xlu0 %4057
      %4061 = vset.pattern.permute.xlu0 0
      %4062 = vperm.xlu0 %4061, %v3212
      %v4063 = vpop.permute.xlu0 %4062
      %4066 = vset.pattern.permute.xlu0 0
      %4067 = vperm.xlu0 %4066, %v3213
      %v4068 = vpop.permute.xlu0 %4067
      %4071 = vset.pattern.permute.xlu0 0
      %4072 = vperm.xlu0 %4071, %v3214
      %v4073 = vpop.permute.xlu0 %4072
      %4076 = vset.pattern.permute.xlu0 0
      %4077 = vperm.xlu0 %4076, %v3215
      %v4078 = vpop.permute.xlu0 %4077
      %4081 = vset.pattern.permute.xlu0 0
      %4082 = vperm.xlu0 %4081, %v3216
      %v4083 = vpop.permute.xlu0 %4082
      %4086 = vset.pattern.permute.xlu0 0
      %4087 = vperm.xlu0 %4086, %v3217
      %v4088 = vpop.permute.xlu0 %4087
      %4091 = vset.pattern.permute.xlu0 0
      %4092 = vperm.xlu0 %4091, %v3218
      %v4093 = vpop.permute.xlu0 %4092
      %4096 = vset.pattern.permute.xlu0 0
      %4097 = vperm.xlu0 %4096, %v3219
      %v4098 = vpop.permute.xlu0 %4097
      %v4100 = vadd.f32 %v3620, %v3703
      %v4101 = vadd.f32 %v3621, %v3708
      %v4102 = vadd.f32 %v3622, %v3713
      %v4103 = vadd.f32 %v3623, %v3718
      %v4104 = vadd.f32 %v3624, %v3723
      %v4105 = vadd.f32 %v3625, %v3728
      %v4106 = vadd.f32 %v3626, %v3733
      %v4107 = vadd.f32 %v3627, %v3738
      %v4108 = vadd.f32 %v3628, %v3743
      %v4109 = vadd.f32 %v3629, %v3748
      %v4110 = vadd.f32 %v3630, %v3753
      %v4111 = vadd.f32 %v3631, %v3758
      %v4112 = vadd.f32 %v3632, %v3763
      %v4113 = vadd.f32 %v3633, %v3768
      %v4114 = vadd.f32 %v3634, %v3773
      %v4115 = vadd.f32 %v3635, %v3778
      %v4116 = vadd.f32 %v3636, %v3783
      %v4117 = vadd.f32 %v3637, %v3788
      %v4118 = vadd.f32 %v3638, %v3793
      %v4119 = vadd.f32 %v3639, %v3798
      %v4120 = vadd.f32 %v3640, %v3803
      %v4121 = vadd.f32 %v3641, %v3808
      %v4122 = vadd.f32 %v3642, %v3813
      %v4123 = vadd.f32 %v3643, %v3818
      %v4124 = vadd.f32 %v3644, %v3823
      %v4125 = vadd.f32 %v3645, %v3828
      %v4126 = vadd.f32 %v3646, %v3833
      %v4127 = vadd.f32 %v3647, %v3838
      %v4128 = vadd.f32 %v3648, %v3843
      %v4129 = vadd.f32 %v3649, %v3848
      %v4130 = vadd.f32 %v3650, %v3853
      %v4131 = vadd.f32 %v3651, %v3858
      %v4132 = vadd.f32 %v3652, %v3863
      %v4133 = vadd.f32 %v3653, %v3868
      %v4134 = vadd.f32 %v3654, %v3873
      %v4135 = vadd.f32 %v3655, %v3878
      %v4136 = vadd.f32 %v3656, %v3883
      %v4137 = vadd.f32 %v3657, %v3888
      %v4138 = vadd.f32 %v3658, %v3893
      %v4139 = vadd.f32 %v3659, %v3898
      %v4140 = vadd.f32 %v3660, %v3903
      %v4141 = vadd.f32 %v3661, %v3908
      %v4142 = vadd.f32 %v3662, %v3913
      %v4143 = vadd.f32 %v3663, %v3918
      %v4144 = vadd.f32 %v3664, %v3923
      %v4145 = vadd.f32 %v3665, %v3928
      %v4146 = vadd.f32 %v3666, %v3933
      %v4147 = vadd.f32 %v3667, %v3938
      %v4148 = vadd.f32 %v3668, %v3943
      %v4149 = vadd.f32 %v3669, %v3948
      %v4150 = vadd.f32 %v3670, %v3953
      %v4151 = vadd.f32 %v3671, %v3958
      %v4152 = vadd.f32 %v3672, %v3963
      %v4153 = vadd.f32 %v3673, %v3968
      %v4154 = vadd.f32 %v3674, %v3973
      %v4155 = vadd.f32 %v3675, %v3978
      %v4156 = vadd.f32 %v3676, %v3983
      %v4157 = vadd.f32 %v3677, %v3988
      %v4158 = vadd.f32 %v3678, %v3993
      %v4159 = vadd.f32 %v3679, %v3998
      %v4160 = vadd.f32 %v3680, %v4003
      %v4161 = vadd.f32 %v3681, %v4008
      %v4162 = vadd.f32 %v3682, %v4013
      %v4163 = vadd.f32 %v3683, %v4018
      %v4164 = vadd.f32 %v3684, %v4023
      %v4165 = vadd.f32 %v3685, %v4028
      %v4166 = vadd.f32 %v3686, %v4033
      %v4167 = vadd.f32 %v3687, %v4038
      %v4168 = vadd.f32 %v3688, %v4043
      %v4169 = vadd.f32 %v3689, %v4048
      %v4170 = vadd.f32 %v3690, %v4053
      %v4171 = vadd.f32 %v3691, %v4058
      %v4172 = vadd.f32 %v3692, %v4063
      %v4173 = vadd.f32 %v3693, %v4068
      %v4174 = vadd.f32 %v3694, %v4073
      %v4175 = vadd.f32 %v3695, %v4078
      %v4176 = vadd.f32 %v3696, %v4083
      %v4177 = vadd.f32 %v3697, %v4088
      %v4178 = vadd.f32 %v3698, %v4093
      %v4179 = vadd.f32 %v3699, %v4098
      %v4180 = vmax.f32 %v4100, 0.0
      %v4181 = vmax.f32 %v4101, 0.0
      %v4182 = vmax.f32 %v4102, 0.0
      %v4183 = vmax.f32 %v4103, 0.0
      %v4184 = vmax.f32 %v4104, 0.0
      %v4185 = vmax.f32 %v4105, 0.0
      %v4186 = vmax.f32 %v4106, 0.0
      %v4187 = vmax.f32 %v4107, 0.0
      %v4188 = vmax.f32 %v4108, 0.0
      %v4189 = vmax.f32 %v4109, 0.0
      %v4190 = vmax.f32 %v4110, 0.0
      %v4191 = vmax.f32 %v4111, 0.0
      %v4192 = vmax.f32 %v4112, 0.0
      %v4193 = vmax.f32 %v4113, 0.0
      %v4194 = vmax.f32 %v4114, 0.0
      %v4195 = vmax.f32 %v4115, 0.0
      %v4196 = vmax.f32 %v4116, 0.0
      %v4197 = vmax.f32 %v4117, 0.0
      %v4198 = vmax.f32 %v4118, 0.0
      %v4199 = vmax.f32 %v4119, 0.0
      %v4200 = vmax.f32 %v4120, 0.0
      %v4201 = vmax.f32 %v4121, 0.0
      %v4202 = vmax.f32 %v4122, 0.0
      %v4203 = vmax.f32 %v4123, 0.0
      %v4204 = vmax.f32 %v4124, 0.0
      %v4205 = vmax.f32 %v4125, 0.0
      %v4206 = vmax.f32 %v4126, 0.0
      %v4207 = vmax.f32 %v4127, 0.0
      %v4208 = vmax.f32 %v4128, 0.0
      %v4209 = vmax.f32 %v4129, 0.0
      %v4210 = vmax.f32 %v4130, 0.0
      %v4211 = vmax.f32 %v4131, 0.0
      %v4212 = vmax.f32 %v4132, 0.0
      %v4213 = vmax.f32 %v4133, 0.0
      %v4214 = vmax.f32 %v4134, 0.0
      %v4215 = vmax.f32 %v4135, 0.0
      %v4216 = vmax.f32 %v4136, 0.0
      %v4217 = vmax.f32 %v4137, 0.0
      %v4218 = vmax.f32 %v4138, 0.0
      %v4219 = vmax.f32 %v4139, 0.0
      %v4220 = vmax.f32 %v4140, 0.0
      %v4221 = vmax.f32 %v4141, 0.0
      %v4222 = vmax.f32 %v4142, 0.0
      %v4223 = vmax.f32 %v4143, 0.0
      %v4224 = vmax.f32 %v4144, 0.0
      %v4225 = vmax.f32 %v4145, 0.0
      %v4226 = vmax.f32 %v4146, 0.0
      %v4227 = vmax.f32 %v4147, 0.0
      %v4228 = vmax.f32 %v4148, 0.0
      %v4229 = vmax.f32 %v4149, 0.0
      %v4230 = vmax.f32 %v4150, 0.0
      %v4231 = vmax.f32 %v4151, 0.0
      %v4232 = vmax.f32 %v4152, 0.0
      %v4233 = vmax.f32 %v4153, 0.0
      %v4234 = vmax.f32 %v4154, 0.0
      %v4235 = vmax.f32 %v4155, 0.0
      %v4236 = vmax.f32 %v4156, 0.0
      %v4237 = vmax.f32 %v4157, 0.0
      %v4238 = vmax.f32 %v4158, 0.0
      %v4239 = vmax.f32 %v4159, 0.0
      %v4240 = vmax.f32 %v4160, 0.0
      %v4241 = vmax.f32 %v4161, 0.0
      %v4242 = vmax.f32 %v4162, 0.0
      %v4243 = vmax.f32 %v4163, 0.0
      %v4244 = vmax.f32 %v4164, 0.0
      %v4245 = vmax.f32 %v4165, 0.0
      %v4246 = vmax.f32 %v4166, 0.0
      %v4247 = vmax.f32 %v4167, 0.0
      %v4248 = vmax.f32 %v4168, 0.0
      %v4249 = vmax.f32 %v4169, 0.0
      %v4250 = vmax.f32 %v4170, 0.0
      %v4251 = vmax.f32 %v4171, 0.0
      %v4252 = vmax.f32 %v4172, 0.0
      %v4253 = vmax.f32 %v4173, 0.0
      %v4254 = vmax.f32 %v4174, 0.0
      %v4255 = vmax.f32 %v4175, 0.0
      %v4256 = vmax.f32 %v4176, 0.0
      %v4257 = vmax.f32 %v4177, 0.0
      %v4258 = vmax.f32 %v4178, 0.0
      %v4259 = vmax.f32 %v4179, 0.0
      %4260 = vst.msk [vmem:[%s246] sm:$0xff] %vm1699, %v4180
      %4261 = vst.msk [vmem:[%s246 + $0x8] sm:$0xff] %vm1699, %v4181
      %4262 = vst.msk [vmem:[%s246 + $0x10] sm:$0xff] %vm1699, %v4182
      %4263 = vst.msk [vmem:[%s246 + $0x18] sm:$0xff] %vm1699, %v4183
      %4264 = vst.msk [vmem:[%s246 + $0x20] sm:$0xff] %vm1699, %v4184
      %4265 = vst.msk [vmem:[%s246 + $0x28] sm:$0xff] %vm1699, %v4185
      %4266 = vst.msk [vmem:[%s246 + $0x30] sm:$0xff] %vm1699, %v4186
      %4267 = vst.msk [vmem:[%s246 + $0x38] sm:$0xff] %vm1699, %v4187
      %4268 = vst.msk [vmem:[%s246 + $0x40] sm:$0xff] %vm1699, %v4188
      %4269 = vst.msk [vmem:[%s246 + $0x48] sm:$0xff] %vm1699, %v4189
      %4270 = vst.msk [vmem:[%s246 + $0x50] sm:$0xff] %vm1699, %v4190
      %4271 = vst.msk [vmem:[%s246 + $0x58] sm:$0xff] %vm1699, %v4191
      %4272 = vst.msk [vmem:[%s246 + $0x60] sm:$0xff] %vm1699, %v4192
      %4273 = vst.msk [vmem:[%s246 + $0x68] sm:$0xff] %vm1699, %v4193
      %4274 = vst.msk [vmem:[%s246 + $0x70] sm:$0xff] %vm1699, %v4194
      %4275 = vst.msk [vmem:[%s246 + $0x78] sm:$0xff] %vm1699, %v4195
      %4276 = vst.msk [vmem:[%s246 + $0x80] sm:$0xff] %vm1699, %v4196
      %4277 = vst.msk [vmem:[%s246 + $0x88] sm:$0xff] %vm1699, %v4197
      %4278 = vst.msk [vmem:[%s246 + $0x90] sm:$0xff] %vm1699, %v4198
      %4279 = vst.msk [vmem:[%s246 + $0x98] sm:$0xff] %vm1699, %v4199
      %4280 = vst.msk [vmem:[%s246 + $0xa0] sm:$0xff] %vm1699, %v4200
      %4281 = vst.msk [vmem:[%s246 + $0xa8] sm:$0xff] %vm1699, %v4201
      %4282 = vst.msk [vmem:[%s246 + $0xb0] sm:$0xff] %vm1699, %v4202
      %4283 = vst.msk [vmem:[%s246 + $0xb8] sm:$0xff] %vm1699, %v4203
      %4284 = vst.msk [vmem:[%s246 + $0xc0] sm:$0xff] %vm1699, %v4204
      %4285 = vst.msk [vmem:[%s246 + $0xc8] sm:$0xff] %vm1699, %v4205
      %4286 = vst.msk [vmem:[%s246 + $0xd0] sm:$0xff] %vm1699, %v4206
      %4287 = vst.msk [vmem:[%s246 + $0xd8] sm:$0xff] %vm1699, %v4207
      %4288 = vst.msk [vmem:[%s246 + $0xe0] sm:$0xff] %vm1699, %v4208
      %4289 = vst.msk [vmem:[%s246 + $0xe8] sm:$0xff] %vm1699, %v4209
      %4290 = vst.msk [vmem:[%s246 + $0xf0] sm:$0xff] %vm1699, %v4210
      %4291 = vst.msk [vmem:[%s246 + $0xf8] sm:$0xff] %vm1699, %v4211
      %4292 = vst.msk [vmem:[%s246 + $0x100] sm:$0xff] %vm1699, %v4212
      %4293 = vst.msk [vmem:[%s246 + $0x108] sm:$0xff] %vm1699, %v4213
      %4294 = vst.msk [vmem:[%s246 + $0x110] sm:$0xff] %vm1699, %v4214
      %4295 = vst.msk [vmem:[%s246 + $0x118] sm:$0xff] %vm1699, %v4215
      %4296 = vst.msk [vmem:[%s246 + $0x120] sm:$0xff] %vm1699, %v4216
      %4297 = vst.msk [vmem:[%s246 + $0x128] sm:$0xff] %vm1699, %v4217
      %4298 = vst.msk [vmem:[%s246 + $0x130] sm:$0xff] %vm1699, %v4218
      %4299 = vst.msk [vmem:[%s246 + $0x138] sm:$0xff] %vm1699, %v4219
      %4300 = vst.msk [vmem:[%s246 + $0x140] sm:$0xff] %vm1699, %v4220
      %4301 = vst.msk [vmem:[%s246 + $0x148] sm:$0xff] %vm1699, %v4221
      %4302 = vst.msk [vmem:[%s246 + $0x150] sm:$0xff] %vm1699, %v4222
      %4303 = vst.msk [vmem:[%s246 + $0x158] sm:$0xff] %vm1699, %v4223
      %4304 = vst.msk [vmem:[%s246 + $0x160] sm:$0xff] %vm1699, %v4224
      %4305 = vst.msk [vmem:[%s246 + $0x168] sm:$0xff] %vm1699, %v4225
      %4306 = vst.msk [vmem:[%s246 + $0x170] sm:$0xff] %vm1699, %v4226
      %4307 = vst.msk [vmem:[%s246 + $0x178] sm:$0xff] %vm1699, %v4227
      %4308 = vst.msk [vmem:[%s246 + $0x180] sm:$0xff] %vm1699, %v4228
      %4309 = vst.msk [vmem:[%s246 + $0x188] sm:$0xff] %vm1699, %v4229
      %4310 = vst.msk [vmem:[%s246 + $0x190] sm:$0xff] %vm1699, %v4230
      %4311 = vst.msk [vmem:[%s246 + $0x198] sm:$0xff] %vm1699, %v4231
      %4312 = vst.msk [vmem:[%s246 + $0x1a0] sm:$0xff] %vm1699, %v4232
      %4313 = vst.msk [vmem:[%s246 + $0x1a8] sm:$0xff] %vm1699, %v4233
      %4314 = vst.msk [vmem:[%s246 + $0x1b0] sm:$0xff] %vm1699, %v4234
      %4315 = vst.msk [vmem:[%s246 + $0x1b8] sm:$0xff] %vm1699, %v4235
      %4316 = vst.msk [vmem:[%s246 + $0x1c0] sm:$0xff] %vm1699, %v4236
      %4317 = vst.msk [vmem:[%s246 + $0x1c8] sm:$0xff] %vm1699, %v4237
      %4318 = vst.msk [vmem:[%s246 + $0x1d0] sm:$0xff] %vm1699, %v4238
      %4319 = vst.msk [vmem:[%s246 + $0x1d8] sm:$0xff] %vm1699, %v4239
      %4320 = vst.msk [vmem:[%s246 + $0x1e0] sm:$0xff] %vm1699, %v4240
      %4321 = vst.msk [vmem:[%s246 + $0x1e8] sm:$0xff] %vm1699, %v4241
      %4322 = vst.msk [vmem:[%s246 + $0x1f0] sm:$0xff] %vm1699, %v4242
      %4323 = vst.msk [vmem:[%s246 + $0x1f8] sm:$0xff] %vm1699, %v4243
      %4324 = vst.msk [vmem:[%s246 + $0x200] sm:$0xff] %vm1699, %v4244
      %4325 = vst.msk [vmem:[%s246 + $0x208] sm:$0xff] %vm1699, %v4245
      %4326 = vst.msk [vmem:[%s246 + $0x210] sm:$0xff] %vm1699, %v4246
      %4327 = vst.msk [vmem:[%s246 + $0x218] sm:$0xff] %vm1699, %v4247
      %4328 = vst.msk [vmem:[%s246 + $0x220] sm:$0xff] %vm1699, %v4248
      %4329 = vst.msk [vmem:[%s246 + $0x228] sm:$0xff] %vm1699, %v4249
      %4330 = vst.msk [vmem:[%s246 + $0x230] sm:$0xff] %vm1699, %v4250
      %4331 = vst.msk [vmem:[%s246 + $0x238] sm:$0xff] %vm1699, %v4251
      %4332 = vst.msk [vmem:[%s246 + $0x240] sm:$0xff] %vm1699, %v4252
      %4333 = vst.msk [vmem:[%s246 + $0x248] sm:$0xff] %vm1699, %v4253
      %4334 = vst.msk [vmem:[%s246 + $0x250] sm:$0xff] %vm1699, %v4254
      %4335 = vst.msk [vmem:[%s246 + $0x258] sm:$0xff] %vm1699, %v4255
      %4336 = vst.msk [vmem:[%s246 + $0x260] sm:$0xff] %vm1699, %v4256
      %4337 = vst.msk [vmem:[%s246 + $0x268] sm:$0xff] %vm1699, %v4257
      %4338 = vst.msk [vmem:[%s246 + $0x270] sm:$0xff] %vm1699, %v4258
      %4339 = vst.msk [vmem:[%s246 + $0x278] sm:$0xff] %vm1699, %v4259
      %s4340 = smul.u32 80, %s15
      %p4341 = scmp.lt.s32.totalorder %s4340, 159
      %s4342 = scalar_select %p4341, %s4340, 159
      %s4343 = smul.addr %s4342, 8
      %s4344 = scalar_lea.vmem %s4, %s4343
      // Predicated region
      $region37: #{tpu_custom_call.1} parent=35 // pred_check
        %p4345 = pneg %p132
      $region38: #{tpu_custom_call.1} parent=35 // pred_check_branch
        %4347 = sbr.rel (%p4345) target = $region40
      $region39: #{tpu_custom_call.1} parent=35 // pred_region
        %s4348 = smul.u32 80, %s15
      $region40: #{tpu_custom_call.1} parent=35 // pred_fallthru
        _
    $region36: #{tpu_custom_call.1} parent=5 // pred_fallthru
      _
    %p4349 = scmp.le.s32.totalorder 2, %s10
    // Predicated region
    $region41: #{tpu_custom_call.1} parent=5 // pred_check
      %p4350 = pneg %p4349
    $region42: #{tpu_custom_call.1} parent=5 // pred_check_branch
      %4352 = sbr.rel (%p4350) target = $region44
    $region43: #{tpu_custom_call.1} parent=5 // pred_region
      %s4353 = ssub.s32 %s10, 2
      // Predicated region
      $region45: #{tpu_custom_call.1} parent=43 // pred_check
        %p4354 = pneg %p138
      $region46: #{tpu_custom_call.1} parent=43 // pred_check_branch
        %4356 = sbr.rel (%p4354) target = $region48
      $region47: #{tpu_custom_call.1} parent=43 // pred_region
        %s4357 = smul.u32 80, %s16
        %p4358 = scmp.lt.s32.totalorder %s4357, 159
        %s4359 = scalar_select %p4358, %s4357, 159
        %s4360 = smul.addr %s4359, 8
        %s4361 = scalar_lea.vmem %s4, %s4360
      $region48: #{tpu_custom_call.1} parent=43 // pred_fallthru
        _
    $region44: #{tpu_custom_call.1} parent=5 // pred_fallthru
      _
  $region6: #{tpu_custom_call.1} parent=0 // loop_footer
    %s14 = sadd.s32 1, %s10
  $region7: #{tpu_custom_call.1} parent=0 // loop_footer_branch
    %9 = sbr.rel target = $region3
  $region8: #{tpu_custom_call.1} parent=0 // loop_exit
    _

</llo_original>
